<compile_context>
chip_gen: v5e
topology: v5e:2x2
jax: 0.10.0
libtpu: 0.0.40
codegen_flags: <defaults>
</compile_context>

<pallas_src>
import math

import numpy as np
import jax
import jax.numpy as jnp
from jax import lax
from jax.experimental import pallas as pl
from jax.experimental.pallas import tpu as pltpu

COND_DIM = 16    # config.COND_DIM
EPS = 1e-5       # GroupNorm default eps
NUM_GROUPS = 8
NUM_HEADS = 4

# Only the tiny (1,C)x(C,G) group-stat dots keep exact f32 precision.
_GN_PREC = lax.Precision.HIGHEST


# ----------------------------------------------------------------------------
# In-kernel math helpers
# ----------------------------------------------------------------------------
def _gelu(x):
    # tanh-approximate GELU: the tanh runs on the EUP slot (otherwise idle);
    # max abs deviation from the exact erf GELU is ~3e-3.
    c = jnp.float32(math.sqrt(2.0 / math.pi))
    return 0.5 * x * (1.0 + jnp.tanh(c * (x + jnp.float32(0.044715) * x * x * x)))


def _groupnorm(x, gamma, beta, gmat):
    """Two-pass GroupNorm over contiguous channel groups. x:(HW,C), gmat:(C,G)."""
    hw, c = x.shape
    g = gmat.shape[1]
    n = jnp.float32(hw * (c // g))
    s = jnp.sum(x, axis=0, keepdims=True)                       # (1, C)
    mean_g = jnp.dot(s, gmat, precision=_GN_PREC,
                     preferred_element_type=jnp.float32) / n    # (1, G)
    mean_c = lax.dot_general(mean_g, gmat, (((1,), (1,)), ((), ())),
                             precision=_GN_PREC,
                             preferred_element_type=jnp.float32)  # (1, C)
    xc = x - mean_c                                              # centered pass
    ss = jnp.sum(xc * xc, axis=0, keepdims=True)                 # (1, C)
    var_g = jnp.dot(ss, gmat, precision=_GN_PREC,
                    preferred_element_type=jnp.float32) / n      # (1, G)
    var_c = lax.dot_general(var_g, gmat, (((1,), (1,)), ((), ())),
                            precision=_GN_PREC,
                            preferred_element_type=jnp.float32)
    inv = lax.rsqrt(var_c + EPS)
    return xc * inv * gamma + beta


def _conv3x3(act, row, col, w_ref, b_ref, h, w_sp):
    """3x3 'same' cross-correlation on a flat (HW, Cin) VMEM-resident tile.

    Each tap is a pltpu.roll (XLU) of the flat activation; out-of-image /
    wrapped positions are zeroed with iota-derived masks (no mask operand
    DMA'd).  w_ref: (9, Cin, Cout) bf16 tap weights (tap index = kh*3 + kw).
    """
    hw = act.shape[0]
    cout = w_ref.shape[2]
    taps = [(dy, dx) for dy in (-1, 0, 1) for dx in (-1, 0, 1)]
    acc = jnp.zeros((hw, cout), jnp.float32)
    for t, (dy, dx) in enumerate(taps):                          # static unroll
        d = dy * w_sp + dx
        src = act if d == 0 else pltpu.roll(act, shift=(-d) % hw, axis=0)
        conds = []
        if dy == -1:
            conds.append(row >= 1)
        elif dy == 1:
            conds.append(row < h - 1)
        if dx == -1:
            conds.append(col >= 1)
        elif dx == 1:
            conds.append(col < w_sp - 1)
        if conds:                                                # center: no mask
            m = conds[0]
            for extra in conds[1:]:
                m = jnp.logical_and(m, extra)
            src = src * m.astype(jnp.float32)                    # (HW,1) bcast
        acc = acc + jnp.dot(src.astype(jnp.bfloat16), w_ref[t],
                            preferred_element_type=jnp.float32)
    return acc + b_ref[...]


def _attention(x, wqkv_ref, bqkv_ref, wo_ref, bo_ref, num_heads):
    """MHA on a VMEM-resident (S, C) tile; heads statically unrolled.

    bf16 operands feed the MXU at native rate (f32 accumulation).  Each head
    is accumulated directly into the output projection through a
    sublane-aligned row slice of Wo (no concatenate / cross-lane relayout).
    """
    s_len, c = x.shape
    hd = c // num_heads
    inv_sqrt = jnp.float32(1.0 / math.sqrt(hd))
    qkv = jnp.dot(x.astype(jnp.bfloat16), wqkv_ref[...],
                  preferred_element_type=jnp.float32) + bqkv_ref[...]
    out = jnp.zeros((s_len, c), jnp.float32)
    # TODO(synk): switch to a KV-tiled (online-softmax) path once S=HW grows
    # past ~1-2k; the dense (S,S) score matrix below only scales to small S.
    for hh in range(num_heads):                                  # static unroll
        q = qkv[:, hh * hd:(hh + 1) * hd] * inv_sqrt
        k = qkv[:, c + hh * hd:c + (hh + 1) * hd]
        v = qkv[:, 2 * c + hh * hd:2 * c + (hh + 1) * hd]
        # scores stay f32 (avoids a packed-bf16 transpose of the k operand);
        # the per-head score matmul is tiny.
        s = lax.dot_general(q, k, (((1,), (1,)), ((), ())),
                            preferred_element_type=jnp.float32)  # (S, S)
        s = s - jnp.max(s, axis=-1, keepdims=True)
        p = jnp.exp(s)
        # approximate EUP reciprocal: intentional (~1e-3 rel error).
        p = p * pl.reciprocal(jnp.sum(p, axis=-1, keepdims=True), approx=True)
        head = jnp.dot(p.astype(jnp.bfloat16), v.astype(jnp.bfloat16),
                       preferred_element_type=jnp.float32)       # (S, hd)
        w_slice = wo_ref[pl.ds(hh * hd, hd), :].astype(jnp.bfloat16)  # (hd, C)
        out = out + jnp.dot(head.astype(jnp.bfloat16), w_slice,
                            preferred_element_type=jnp.float32)
    return out + bo_ref[...]


# ----------------------------------------------------------------------------
# Fused block kernel (one batch element per grid step)
# ----------------------------------------------------------------------------
def _make_block_kernel(h, w_sp, num_heads, use_res_conv):
    hw = h * w_sp

    def kernel(*refs):
        if use_res_conv:
            (x_ref, film_ref,
             gn1w_ref, gn1b_ref, gmat1_ref, c1w_ref, c1b_ref,
             wqkv_ref, bqkv_ref, wo_ref, bo_ref,
             gn2w_ref, gn2b_ref, gmat2_ref, c2w_ref, c2b_ref,
             resw_ref, resb_ref, o_ref) = refs
        else:
            (x_ref, film_ref,
             gn1w_ref, gn1b_ref, gmat1_ref, c1w_ref, c1b_ref,
             wqkv_ref, bqkv_ref, wo_ref, bo_ref,
             gn2w_ref, gn2b_ref, gmat2_ref, c2w_ref, c2b_ref,
             o_ref) = refs

        x = x_ref[0].astype(jnp.float32)                         # (HW, Cin)

        # In-kernel spatial row/col indices (replaces the DMA'd, lane-padded
        # (9, HW, 1) mask operand).  Exact for HW < 2^22.
        flat_i = lax.broadcasted_iota(jnp.int32, (hw, 1), 0)
        flat_f = flat_i.astype(jnp.float32)
        row = ((flat_f + 0.5) / jnp.float32(w_sp)).astype(jnp.int32)
        col = flat_i - row * w_sp

        # residual path (identity, or 1x1 conv as a single matmul)
        if use_res_conv:
            residual = jnp.dot(x.astype(jnp.bfloat16), resw_ref[...],
                               preferred_element_type=jnp.float32) + resb_ref[...]
        else:
            residual = x

        # GroupNorm1 + GELU + 3x3 conv1
        y = _gelu(_groupnorm(x, gn1w_ref[...], gn1b_ref[...], gmat1_ref[...]))
        y = _conv3x3(y, row, col, c1w_ref, c1b_ref, h, w_sp)     # (HW, Cout)

        # FiLM modulation (scale/shift precomputed in the wrapper)
        film = film_ref[0]                                       # (2, Cout)
        y = y * (1.0 + film[0:1, :]) + film[1:2, :]

        # multi-head self-attention
        y = _attention(y, wqkv_ref, bqkv_ref, wo_ref, bo_ref, num_heads)

        # GroupNorm2 + GELU + 3x3 conv2 + residual
        z = _gelu(_groupnorm(y, gn2w_ref[...], gn2b_ref[...], gmat2_ref[...]))
        z = _conv3x3(z, row, col, c2w_ref, c2b_ref, h, w_sp)
        o_ref[0] = (z + residual).astype(o_ref.dtype)

    return kernel


# ----------------------------------------------------------------------------
# Full block forward (single fused pallas_call + boundary layout glue)
# ----------------------------------------------------------------------------
def attention_guidance_block(x_nchw, cond, params):
    b, c_in, h, w_sp = x_nchw.shape
    cout = params["conv1_w"].shape[0]
    hw = h * w_sp

    # explicit checks instead of silent failure
    if c_in % NUM_GROUPS or cout % NUM_GROUPS:
        raise ValueError("channel counts must be divisible by NUM_GROUPS=8")
    if cout % NUM_HEADS:
        raise ValueError("out_dim must be divisible by NUM_HEADS=4")
    if hw % 8:
        raise ValueError("H*W must be a multiple of 8 (sublane roll in conv)")

    cond2 = cond.reshape(cond.shape[0], -1)[:, :COND_DIM].astype(jnp.float32)
    if cond2.shape[1] != COND_DIM:
        raise ValueError(f"cond must provide at least {COND_DIM} features")

    # FiLM params hoisted out of the kernel: one efficient (B,16)x(16,2C) gemm
    # + exact GELU in XLA, instead of an M=1 matmul per grid step.
    film = jax.nn.gelu(cond2 @ params["cond_w"].T + params["cond_b"],
                       approximate=False)                        # (B, 2*Cout)
    film = film.reshape(b, 2, cout).astype(jnp.float32)          # [scale; shift]

    # TODO(synk): keep the surrounding model NHWC so these boundary transposes
    # (full HBM read+write passes) disappear.
    x_flat = jnp.transpose(x_nchw, (0, 2, 3, 1)).reshape(b, hw, c_in)
    x_flat = x_flat.astype(jnp.float32)

    def one_hot_groups(c):
        return (jnp.arange(c)[:, None] // (c // NUM_GROUPS)
                == jnp.arange(NUM_GROUPS)[None, :]).astype(jnp.float32)

    gmat1 = one_hot_groups(c_in)
    gmat2 = one_hot_groups(cout)

    # conv weights OIHW -> (9 taps, Cin, Cout) bf16 (native MXU rate, f32 acc)
    conv1_taps = jnp.transpose(params["conv1_w"], (2, 3, 1, 0)) \
        .reshape(9, c_in, cout).astype(jnp.bfloat16)
    conv2_taps = jnp.transpose(params["conv2_w"], (2, 3, 1, 0)) \
        .reshape(9, cout, cout).astype(jnp.bfloat16)
    wqkv = jnp.transpose(params["attn_in_w"], (1, 0)).astype(jnp.bfloat16)
    # Wo stays f32 so per-head (hd, C) row slices inside the kernel stay
    # sublane-aligned; slices are cast to bf16 right before the MXU.
    wo = jnp.transpose(params["attn_out_w"], (1, 0)).astype(jnp.float32)

    use_res_conv = (c_in != cout)
    kernel = _make_block_kernel(h, w_sp, NUM_HEADS, use_res_conv)

    def full(shape):
        return pl.BlockSpec(shape, lambda i, _n=len(shape): (0,) * _n)

    def per_batch(shape):
        return pl.BlockSpec(shape, lambda i, _n=len(shape): (i,) + (0,) * (_n - 1))

    in_specs = [
        per_batch((1, hw, c_in)),                               # x
        per_batch((1, 2, cout)),                                # FiLM scale/shift
        full((1, c_in)), full((1, c_in)),                       # gn1 gamma/beta
        full((c_in, NUM_GROUPS)),                               # gmat1
        full((9, c_in, cout)), full((1, cout)),                 # conv1 w/b
        full((cout, 3 * cout)), full((1, 3 * cout)),            # attn qkv w/b
        full((cout, cout)), full((1, cout)),                    # attn out w/b
        full((1, cout)), full((1, cout)),                       # gn2 gamma/beta
        full((cout, NUM_GROUPS)),                               # gmat2
        full((9, cout, cout)), full((1, cout)),                 # conv2 w/b
    ]
    operands = [
        x_flat, film,
        params["gn1_w"].reshape(1, c_in).astype(jnp.float32),
        params["gn1_b"].reshape(1, c_in).astype(jnp.float32),
        gmat1,
        conv1_taps, params["conv1_b"].reshape(1, cout).astype(jnp.float32),
        wqkv, params["attn_in_b"].reshape(1, 3 * cout).astype(jnp.float32),
        wo, params["attn_out_b"].reshape(1, cout).astype(jnp.float32),
        params["gn2_w"].reshape(1, cout).astype(jnp.float32),
        params["gn2_b"].reshape(1, cout).astype(jnp.float32),
        gmat2,
        conv2_taps, params["conv2_b"].reshape(1, cout).astype(jnp.float32),
    ]
    if use_res_conv:
        in_specs += [full((c_in, cout)), full((1, cout))]
        operands += [
            jnp.transpose(params["res_w"].reshape(cout, c_in), (1, 0))
                .astype(jnp.bfloat16),
            params["res_b"].reshape(1, cout).astype(jnp.float32),
        ]

    # VMEM budget: double-buffered operand/output blocks + in-kernel working
    # set (incl. per-head (S,S) scores), floored at the 32 MiB default and
    # kept under v7x's 64 MiB physical VMEM.
    block_bytes = sum(int(np.prod(spec.block_shape)) * op.dtype.itemsize
                      for spec, op in zip(in_specs, operands))
    block_bytes += hw * cout * 4                                 # output block
    work_bytes = 24 * hw * max(c_in, cout, hw) * 4
    vmem_limit = int(min(max(2 * block_bytes + work_bytes, 32 * 1024 * 1024),
                         60 * 1024 * 1024))

    # TODO(synk): for v7x with B == 1, add a second "parallel" grid axis so
    # both TensorCores get work; for cout < 128, a lane-dense (padded) output
    # slab would lift lane utilization further.
    out = pl.pallas_call(
        kernel,
        out_shape=jax.ShapeDtypeStruct((b, hw, cout), jnp.float32),
        grid=(b,),
        in_specs=in_specs,
        out_specs=per_batch((1, hw, cout)),
        compiler_params=pltpu.CompilerParams(
            dimension_semantics=("parallel",),    # megacore: batch over TCs
            vmem_limit_bytes=vmem_limit),
    )(*operands)

    return jnp.transpose(out.reshape(b, h, w_sp, cout), (0, 3, 1, 2))  # NCHW


# ----------------------------------------------------------------------------
# Pure-JAX reference (mirrors the PyTorch forward) for correctness checking
# ----------------------------------------------------------------------------
def reference_forward(x, cond, params):
    b, c_in, h, w = x.shape
    cout = params["conv1_w"].shape[0]
    gelu = lambda t: jax.nn.gelu(t, approximate=False)

    def groupnorm(t, gamma, beta, groups):
        bb, cc, hh, ww = t.shape
        tg = t.reshape(bb, groups, cc // groups, hh, ww)
        mean = tg.mean(axis=(2, 3, 4), keepdims=True)
        var = tg.var(axis=(2, 3, 4), keepdims=True)
        tn = ((tg - mean) / jnp.sqrt(var + EPS)).reshape(bb, cc, hh, ww)
        return tn * gamma.reshape(1, cc, 1, 1) + beta.reshape(1, cc, 1, 1)

    def conv(t, wgt, bias):
        o = lax.conv_general_dilated(t, wgt, (1, 1), "SAME",
                                     dimension_numbers=("NCHW", "OIHW", "NCHW"))
        return o + bias.reshape(1, -1, 1, 1)

    cond2 = cond.reshape(cond.shape[0], -1)[:, :COND_DIM]
    residual = x if c_in == cout else conv(x, params["res_w"], params["res_b"])
    y = conv(gelu(groupnorm(x, params["gn1_w"], params["gn1_b"], NUM_GROUPS)),
             params["conv1_w"], params["conv1_b"])
    cp = gelu(cond2 @ params["cond_w"].T + params["cond_b"])
    scl, shf = cp[:, :cout], cp[:, cout:]
    y = y * (1 + scl[:, :, None, None]) + shf[:, :, None, None]

    s_len, hd = h * w, cout // NUM_HEADS
    xf = y.reshape(b, cout, s_len).transpose(0, 2, 1)
    qkv = xf @ params["attn_in_w"].T + params["attn_in_b"]
    q, k, v = qkv[..., :cout], qkv[..., cout:2 * cout], qkv[..., 2 * cout:]
    sp = lambda t: t.reshape(b, s_len, NUM_HEADS, hd).transpose(0, 2, 1, 3)
    qh, kh, vh = sp(q), sp(k), sp(v)
    att = jax.nn.softmax((qh @ kh.transpose(0, 1, 3, 2)) / math.sqrt(hd), axis=-1)
    oh = (att @ vh).transpose(0, 2, 1, 3).reshape(b, s_len, cout)
    attn_out = oh @ params["attn_out_w"].T + params["attn_out_b"]
    attn_img = attn_out.transpose(0, 2, 1).reshape(b, cout, h, w)

    z = conv(gelu(groupnorm(attn_img, params["gn2_w"], params["gn2_b"],
                            NUM_GROUPS)),
             params["conv2_w"], params["conv2_b"])
    return z + residual


# ----------------------------------------------------------------------------
if __name__ == "__main__":
    B, DIM, OUT_DIM, H, W = 2, 32, 32, 8, 8

    key = jax.random.PRNGKey(0)
    ks = jax.random.split(key, 16)
    nrm = lambda k, shp, s: jax.random.normal(k, shp, jnp.float32) * s

    params = {
        "gn1_w": 1.0 + 0.1 * nrm(ks[0], (DIM,), 1.0),
        "gn1_b": 0.1 * nrm(ks[1], (DIM,), 1.0),
        "conv1_w": nrm(ks[2], (OUT_DIM, DIM, 3, 3), 1.0 / math.sqrt(DIM * 9)),
        "conv1_b": nrm(ks[3], (OUT_DIM,), 0.02),
        "cond_w": nrm(ks[4], (2 * OUT_DIM, COND_DIM), 1.0 / math.sqrt(COND_DIM)),
        "cond_b": nrm(ks[5], (2 * OUT_DIM,), 0.02),
        "gn2_w": 1.0 + 0.1 * nrm(ks[6], (OUT_DIM,), 1.0),
        "gn2_b": 0.1 * nrm(ks[7], (OUT_DIM,), 1.0),
        "conv2_w": nrm(ks[8], (OUT_DIM, OUT_DIM, 3, 3), 1.0 / math.sqrt(OUT_DIM * 9)),
        "conv2_b": nrm(ks[9], (OUT_DIM,), 0.02),
        "attn_in_w": nrm(ks[10], (3 * OUT_DIM, OUT_DIM), 1.0 / math.sqrt(OUT_DIM)),
        "attn_in_b": nrm(ks[11], (3 * OUT_DIM,), 0.02),
        "attn_out_w": nrm(ks[12], (OUT_DIM, OUT_DIM), 1.0 / math.sqrt(OUT_DIM)),
        "attn_out_b": nrm(ks[13], (OUT_DIM,), 0.02),
    }

    x = jax.random.normal(ks[14], (B, DIM, H, W), jnp.float32)
    cond = jax.random.normal(ks[15], (B, COND_DIM), jnp.float32)

    out = jax.jit(attention_guidance_block)(x, cond, params)
    out = jax.block_until_ready(out)

    ref = reference_forward(x, cond, params)
    assert out.shape == (B, OUT_DIM, H, W)

    # bf16 MXU operands + tanh-GELU + approximate softmax reciprocal are
    # intentional approximations: use a loose elementwise bound plus a tight
    # RMS bound (either would still catch any real indexing / masking bug).
    out_np, ref_np = np.asarray(out), np.asarray(ref)
    np.testing.assert_allclose(out_np, ref_np, atol=1e-1, rtol=1e-1)
    rms = float(np.sqrt(np.mean((out_np - ref_np) ** 2)))
    assert rms < 3e-2, f"RMS error too large: {rms}"
    print("KERNEL_OK")
</pallas_src>

<mosaic_0001>
module attributes {stable_mosaic.version = 11 : i64} {
  func.func @kernel(%arg0: i32, %arg1: memref<1x64x32xf32, #tpu.memory_space<vmem>>, %arg2: memref<1x2x32xf32, #tpu.memory_space<vmem>>, %arg3: memref<1x32xf32, #tpu.memory_space<vmem>>, %arg4: memref<1x32xf32, #tpu.memory_space<vmem>>, %arg5: memref<32x8xf32, #tpu.memory_space<vmem>>, %arg6: memref<9x32x32xbf16, #tpu.memory_space<vmem>>, %arg7: memref<1x32xf32, #tpu.memory_space<vmem>>, %arg8: memref<32x96xbf16, #tpu.memory_space<vmem>>, %arg9: memref<1x96xf32, #tpu.memory_space<vmem>>, %arg10: memref<32x32xf32, #tpu.memory_space<vmem>>, %arg11: memref<1x32xf32, #tpu.memory_space<vmem>>, %arg12: memref<1x32xf32, #tpu.memory_space<vmem>>, %arg13: memref<1x32xf32, #tpu.memory_space<vmem>>, %arg14: memref<32x8xf32, #tpu.memory_space<vmem>>, %arg15: memref<9x32x32xbf16, #tpu.memory_space<vmem>>, %arg16: memref<1x32xf32, #tpu.memory_space<vmem>>, %arg17: memref<1x64x32xf32, #tpu.memory_space<vmem>>) attributes {dimension_semantics = [#tpu.dimension_semantics<parallel>], iteration_bounds = array<i64: 2>, scalar_prefetch = 0 : i64, scratch_operands = 0 : i64, tpu.core_type = #tpu.core_type<tc>, window_params = [{transform_indices = @transform_0, window_bounds = array<i64: 1, 64, 32>}, {transform_indices = @transform_1, window_bounds = array<i64: 1, 2, 32>}, {pipeline_mode = #tpu.pipeline_mode<synchronous>, transform_indices = @transform_2, window_bounds = array<i64: 1, 32>}, {pipeline_mode = #tpu.pipeline_mode<synchronous>, transform_indices = @transform_3, window_bounds = array<i64: 1, 32>}, {pipeline_mode = #tpu.pipeline_mode<synchronous>, transform_indices = @transform_4, window_bounds = array<i64: 32, 8>}, {pipeline_mode = #tpu.pipeline_mode<synchronous>, transform_indices = @transform_5, window_bounds = array<i64: 9, 32, 32>}, {pipeline_mode = #tpu.pipeline_mode<synchronous>, transform_indices = @transform_6, window_bounds = array<i64: 1, 32>}, {pipeline_mode = #tpu.pipeline_mode<synchronous>, transform_indices = @transform_7, window_bounds = array<i64: 32, 96>}, {pipeline_mode = #tpu.pipeline_mode<synchronous>, transform_indices = @transform_8, window_bounds = array<i64: 1, 96>}, {pipeline_mode = #tpu.pipeline_mode<synchronous>, transform_indices = @transform_9, window_bounds = array<i64: 32, 32>}, {pipeline_mode = #tpu.pipeline_mode<synchronous>, transform_indices = @transform_10, window_bounds = array<i64: 1, 32>}, {pipeline_mode = #tpu.pipeline_mode<synchronous>, transform_indices = @transform_11, window_bounds = array<i64: 1, 32>}, {pipeline_mode = #tpu.pipeline_mode<synchronous>, transform_indices = @transform_12, window_bounds = array<i64: 1, 32>}, {pipeline_mode = #tpu.pipeline_mode<synchronous>, transform_indices = @transform_13, window_bounds = array<i64: 32, 8>}, {pipeline_mode = #tpu.pipeline_mode<synchronous>, transform_indices = @transform_14, window_bounds = array<i64: 9, 32, 32>}, {pipeline_mode = #tpu.pipeline_mode<synchronous>, transform_indices = @transform_15, window_bounds = array<i64: 1, 32>}, {transform_indices = @transform_16, window_bounds = array<i64: 1, 64, 32>}]} {
    %c0 = arith.constant 0 : index
    %c0_0 = arith.constant 0 : index
    %c0_1 = arith.constant 0 : index
    %0 = vector.load %arg1[%c0, %c0_0, %c0_1] : memref<1x64x32xf32, #tpu.memory_space<vmem>>, vector<1x64x32xf32>
    %1 = vector.shape_cast %0 : vector<1x64x32xf32> to vector<64x32xf32>
    %2 = tpu.iota {dimensions = array<i32: 0>} : vector<64x1xi32>
    %3 = arith.sitofp %2 : vector<64x1xi32> to vector<64x1xf32>
    %cst = arith.constant 5.000000e-01 : f32
    %4 = vector.broadcast %cst : f32 to vector<64x1xf32>
    %5 = arith.addf %3, %4 : vector<64x1xf32>
    %cst_2 = arith.constant 8.000000e+00 : f32
    %6 = vector.broadcast %cst_2 : f32 to vector<64x1xf32>
    %7 = arith.divf %5, %6 : vector<64x1xf32>
    %8 = arith.fptosi %7 : vector<64x1xf32> to vector<64x1xi32>
    %c8_i32 = arith.constant 8 : i32
    %9 = vector.broadcast %c8_i32 : i32 to vector<64x1xi32>
    %10 = arith.muli %8, %9 : vector<64x1xi32>
    %11 = arith.subi %2, %10 : vector<64x1xi32>
    %c0_3 = arith.constant 0 : index
    %c0_4 = arith.constant 0 : index
    %12 = vector.load %arg3[%c0_3, %c0_4] : memref<1x32xf32, #tpu.memory_space<vmem>>, vector<1x32xf32>
    %c0_5 = arith.constant 0 : index
    %c0_6 = arith.constant 0 : index
    %13 = vector.load %arg4[%c0_5, %c0_6] : memref<1x32xf32, #tpu.memory_space<vmem>>, vector<1x32xf32>
    %c0_7 = arith.constant 0 : index
    %c0_8 = arith.constant 0 : index
    %14 = vector.load %arg5[%c0_7, %c0_8] : memref<32x8xf32, #tpu.memory_space<vmem>>, vector<32x8xf32>
    %cst_9 = arith.constant dense<0.000000e+00> : vector<32xf32>
    %15 = vector.multi_reduction <add>, %1, %cst_9 [0] : vector<64x32xf32> to vector<32xf32>
    %16 = vector.shape_cast %15 : vector<32xf32> to vector<1x32xf32>
    %cst_10 = arith.constant dense<0.000000e+00> : vector<1x8xf32>
    %17 = tpu.matmul %16, %14, %cst_10 {dimension_numbers = #tpu.dot_dimension_numbers<[1], [0], [0], [1], [0, 0, 1, 1], [], []>, precision = #tpu.contract_precision<fp32>} : vector<1x32xf32>, vector<32x8xf32>, vector<1x8xf32> -> vector<1x8xf32>
    %cst_11 = arith.constant 2.560000e+02 : f32
    %18 = vector.broadcast %cst_11 : f32 to vector<1x8xf32>
    %19 = arith.divf %17, %18 : vector<1x8xf32>
    %cst_12 = arith.constant dense<0.000000e+00> : vector<1x32xf32>
    %20 = tpu.matmul %19, %14, %cst_12 {dimension_numbers = #tpu.dot_dimension_numbers<[1], [1], [0], [0], [0, 0, 1, 0], [], []>, precision = #tpu.contract_precision<fp32>} : vector<1x8xf32>, vector<32x8xf32>, vector<1x32xf32> -> vector<1x32xf32>
    %21 = vector.broadcast %20 : vector<1x32xf32> to vector<64x32xf32>
    %22 = arith.subf %1, %21 : vector<64x32xf32>
    %23 = arith.mulf %22, %22 : vector<64x32xf32>
    %cst_13 = arith.constant dense<0.000000e+00> : vector<32xf32>
    %24 = vector.multi_reduction <add>, %23, %cst_13 [0] : vector<64x32xf32> to vector<32xf32>
    %25 = vector.shape_cast %24 : vector<32xf32> to vector<1x32xf32>
    %cst_14 = arith.constant dense<0.000000e+00> : vector<1x8xf32>
    %26 = tpu.matmul %25, %14, %cst_14 {dimension_numbers = #tpu.dot_dimension_numbers<[1], [0], [0], [1], [0, 0, 1, 1], [], []>, precision = #tpu.contract_precision<fp32>} : vector<1x32xf32>, vector<32x8xf32>, vector<1x8xf32> -> vector<1x8xf32>
    %cst_15 = arith.constant 2.560000e+02 : f32
    %27 = vector.broadcast %cst_15 : f32 to vector<1x8xf32>
    %28 = arith.divf %26, %27 : vector<1x8xf32>
    %cst_16 = arith.constant dense<0.000000e+00> : vector<1x32xf32>
    %29 = tpu.matmul %28, %14, %cst_16 {dimension_numbers = #tpu.dot_dimension_numbers<[1], [1], [0], [0], [0, 0, 1, 0], [], []>, precision = #tpu.contract_precision<fp32>} : vector<1x8xf32>, vector<32x8xf32>, vector<1x32xf32> -> vector<1x32xf32>
    %cst_17 = arith.constant 9.99999974E-6 : f32
    %30 = vector.broadcast %cst_17 : f32 to vector<1x32xf32>
    %31 = arith.addf %29, %30 : vector<1x32xf32>
    %32 = math.rsqrt %31 : vector<1x32xf32>
    %33 = vector.broadcast %32 : vector<1x32xf32> to vector<64x32xf32>
    %34 = arith.mulf %22, %33 : vector<64x32xf32>
    %35 = vector.broadcast %12 : vector<1x32xf32> to vector<64x32xf32>
    %36 = arith.mulf %34, %35 : vector<64x32xf32>
    %37 = vector.broadcast %13 : vector<1x32xf32> to vector<64x32xf32>
    %38 = arith.addf %36, %37 : vector<64x32xf32>
    %cst_18 = arith.constant 5.000000e-01 : f32
    %39 = vector.broadcast %cst_18 : f32 to vector<64x32xf32>
    %40 = arith.mulf %39, %38 : vector<64x32xf32>
    %cst_19 = arith.constant 4.471500e-02 : f32
    %41 = vector.broadcast %cst_19 : f32 to vector<64x32xf32>
    %42 = arith.mulf %41, %38 : vector<64x32xf32>
    %43 = arith.mulf %42, %38 : vector<64x32xf32>
    %44 = arith.mulf %43, %38 : vector<64x32xf32>
    %45 = arith.addf %38, %44 : vector<64x32xf32>
    %cst_20 = arith.constant 0.797884583 : f32
    %46 = vector.broadcast %cst_20 : f32 to vector<64x32xf32>
    %47 = arith.mulf %46, %45 : vector<64x32xf32>
    %48 = math.tanh %47 : vector<64x32xf32>
    %cst_21 = arith.constant 1.000000e+00 : f32
    %49 = vector.broadcast %cst_21 : f32 to vector<64x32xf32>
    %50 = arith.addf %49, %48 : vector<64x32xf32>
    %51 = arith.mulf %40, %50 : vector<64x32xf32>
    %cst_22 = arith.constant 0.000000e+00 : f32
    %52 = vector.broadcast %cst_22 : f32 to vector<64x32xf32>
    %c9_i32 = arith.constant 9 : i32
    %53 = tpu.dynamic_rotate %51 by %c9_i32 dim 0 : vector<64x32xf32>, i32 -> vector<64x32xf32>
    %c1_i32 = arith.constant 1 : i32
    %54 = vector.broadcast %c1_i32 : i32 to vector<64x1xi32>
    %55 = arith.cmpi sge, %8, %54 : vector<64x1xi32>
    %c1_i32_23 = arith.constant 1 : i32
    %56 = vector.broadcast %c1_i32_23 : i32 to vector<64x1xi32>
    %57 = arith.cmpi sge, %11, %56 : vector<64x1xi32>
    %58 = arith.andi %55, %57 : vector<64x1xi1>
    %59 = arith.extui %58 : vector<64x1xi1> to vector<64x1xi32>
    %60 = arith.sitofp %59 : vector<64x1xi32> to vector<64x1xf32>
    %61 = vector.broadcast %60 : vector<64x1xf32> to vector<64x32xf32>
    %62 = arith.mulf %53, %61 : vector<64x32xf32>
    %63 = arith.truncf %62 : vector<64x32xf32> to vector<64x32xbf16>
    %c0_24 = arith.constant 0 : index
    %c0_25 = arith.constant 0 : index
    %c0_26 = arith.constant 0 : index
    %64 = vector.load %arg6[%c0_24, %c0_25, %c0_26] : memref<9x32x32xbf16, #tpu.memory_space<vmem>>, vector<1x32x32xbf16>
    %65 = vector.shape_cast %64 : vector<1x32x32xbf16> to vector<32x32xbf16>
    %cst_27 = arith.constant dense<0.000000e+00> : vector<64x32xf32>
    %66 = tpu.matmul %63, %65, %cst_27 {dimension_numbers = #tpu.dot_dimension_numbers<[1], [0], [0], [1], [0, 0, 1, 1], [], []>} : vector<64x32xbf16>, vector<32x32xbf16>, vector<64x32xf32> -> vector<64x32xf32>
    %67 = arith.addf %52, %66 : vector<64x32xf32>
    %c8_i32_28 = arith.constant 8 : i32
    %68 = tpu.dynamic_rotate %51 by %c8_i32_28 dim 0 : vector<64x32xf32>, i32 -> vector<64x32xf32>
    %c1_i32_29 = arith.constant 1 : i32
    %69 = vector.broadcast %c1_i32_29 : i32 to vector<64x1xi32>
    %70 = arith.cmpi sge, %8, %69 : vector<64x1xi32>
    %71 = arith.extui %70 : vector<64x1xi1> to vector<64x1xi32>
    %72 = arith.sitofp %71 : vector<64x1xi32> to vector<64x1xf32>
    %73 = vector.broadcast %72 : vector<64x1xf32> to vector<64x32xf32>
    %74 = arith.mulf %68, %73 : vector<64x32xf32>
    %75 = arith.truncf %74 : vector<64x32xf32> to vector<64x32xbf16>
    %c1 = arith.constant 1 : index
    %c0_30 = arith.constant 0 : index
    %c0_31 = arith.constant 0 : index
    %76 = vector.load %arg6[%c1, %c0_30, %c0_31] : memref<9x32x32xbf16, #tpu.memory_space<vmem>>, vector<1x32x32xbf16>
    %77 = vector.shape_cast %76 : vector<1x32x32xbf16> to vector<32x32xbf16>
    %cst_32 = arith.constant dense<0.000000e+00> : vector<64x32xf32>
    %78 = tpu.matmul %75, %77, %cst_32 {dimension_numbers = #tpu.dot_dimension_numbers<[1], [0], [0], [1], [0, 0, 1, 1], [], []>} : vector<64x32xbf16>, vector<32x32xbf16>, vector<64x32xf32> -> vector<64x32xf32>
    %79 = arith.addf %67, %78 : vector<64x32xf32>
    %c7_i32 = arith.constant 7 : i32
    %80 = tpu.dynamic_rotate %51 by %c7_i32 dim 0 : vector<64x32xf32>, i32 -> vector<64x32xf32>
    %c1_i32_33 = arith.constant 1 : i32
    %81 = vector.broadcast %c1_i32_33 : i32 to vector<64x1xi32>
    %82 = arith.cmpi sge, %8, %81 : vector<64x1xi32>
    %c7_i32_34 = arith.constant 7 : i32
    %83 = vector.broadcast %c7_i32_34 : i32 to vector<64x1xi32>
    %84 = arith.cmpi slt, %11, %83 : vector<64x1xi32>
    %85 = arith.andi %82, %84 : vector<64x1xi1>
    %86 = arith.extui %85 : vector<64x1xi1> to vector<64x1xi32>
    %87 = arith.sitofp %86 : vector<64x1xi32> to vector<64x1xf32>
    %88 = vector.broadcast %87 : vector<64x1xf32> to vector<64x32xf32>
    %89 = arith.mulf %80, %88 : vector<64x32xf32>
    %90 = arith.truncf %89 : vector<64x32xf32> to vector<64x32xbf16>
    %c2 = arith.constant 2 : index
    %c0_35 = arith.constant 0 : index
    %c0_36 = arith.constant 0 : index
    %91 = vector.load %arg6[%c2, %c0_35, %c0_36] : memref<9x32x32xbf16, #tpu.memory_space<vmem>>, vector<1x32x32xbf16>
    %92 = vector.shape_cast %91 : vector<1x32x32xbf16> to vector<32x32xbf16>
    %cst_37 = arith.constant dense<0.000000e+00> : vector<64x32xf32>
    %93 = tpu.matmul %90, %92, %cst_37 {dimension_numbers = #tpu.dot_dimension_numbers<[1], [0], [0], [1], [0, 0, 1, 1], [], []>} : vector<64x32xbf16>, vector<32x32xbf16>, vector<64x32xf32> -> vector<64x32xf32>
    %94 = arith.addf %79, %93 : vector<64x32xf32>
    %c1_i32_38 = arith.constant 1 : i32
    %95 = tpu.dynamic_rotate %51 by %c1_i32_38 dim 0 : vector<64x32xf32>, i32 -> vector<64x32xf32>
    %c1_i32_39 = arith.constant 1 : i32
    %96 = vector.broadcast %c1_i32_39 : i32 to vector<64x1xi32>
    %97 = arith.cmpi sge, %11, %96 : vector<64x1xi32>
    %98 = arith.extui %97 : vector<64x1xi1> to vector<64x1xi32>
    %99 = arith.sitofp %98 : vector<64x1xi32> to vector<64x1xf32>
    %100 = vector.broadcast %99 : vector<64x1xf32> to vector<64x32xf32>
    %101 = arith.mulf %95, %100 : vector<64x32xf32>
    %102 = arith.truncf %101 : vector<64x32xf32> to vector<64x32xbf16>
    %c3 = arith.constant 3 : index
    %c0_40 = arith.constant 0 : index
    %c0_41 = arith.constant 0 : index
    %103 = vector.load %arg6[%c3, %c0_40, %c0_41] : memref<9x32x32xbf16, #tpu.memory_space<vmem>>, vector<1x32x32xbf16>
    %104 = vector.shape_cast %103 : vector<1x32x32xbf16> to vector<32x32xbf16>
    %cst_42 = arith.constant dense<0.000000e+00> : vector<64x32xf32>
    %105 = tpu.matmul %102, %104, %cst_42 {dimension_numbers = #tpu.dot_dimension_numbers<[1], [0], [0], [1], [0, 0, 1, 1], [], []>} : vector<64x32xbf16>, vector<32x32xbf16>, vector<64x32xf32> -> vector<64x32xf32>
    %106 = arith.addf %94, %105 : vector<64x32xf32>
    %107 = arith.truncf %51 : vector<64x32xf32> to vector<64x32xbf16>
    %c4 = arith.constant 4 : index
    %c0_43 = arith.constant 0 : index
    %c0_44 = arith.constant 0 : index
    %108 = vector.load %arg6[%c4, %c0_43, %c0_44] : memref<9x32x32xbf16, #tpu.memory_space<vmem>>, vector<1x32x32xbf16>
    %109 = vector.shape_cast %108 : vector<1x32x32xbf16> to vector<32x32xbf16>
    %cst_45 = arith.constant dense<0.000000e+00> : vector<64x32xf32>
    %110 = tpu.matmul %107, %109, %cst_45 {dimension_numbers = #tpu.dot_dimension_numbers<[1], [0], [0], [1], [0, 0, 1, 1], [], []>} : vector<64x32xbf16>, vector<32x32xbf16>, vector<64x32xf32> -> vector<64x32xf32>
    %111 = arith.addf %106, %110 : vector<64x32xf32>
    %c63_i32 = arith.constant 63 : i32
    %112 = tpu.dynamic_rotate %51 by %c63_i32 dim 0 : vector<64x32xf32>, i32 -> vector<64x32xf32>
    %c7_i32_46 = arith.constant 7 : i32
    %113 = vector.broadcast %c7_i32_46 : i32 to vector<64x1xi32>
    %114 = arith.cmpi slt, %11, %113 : vector<64x1xi32>
    %115 = arith.extui %114 : vector<64x1xi1> to vector<64x1xi32>
    %116 = arith.sitofp %115 : vector<64x1xi32> to vector<64x1xf32>
    %117 = vector.broadcast %116 : vector<64x1xf32> to vector<64x32xf32>
    %118 = arith.mulf %112, %117 : vector<64x32xf32>
    %119 = arith.truncf %118 : vector<64x32xf32> to vector<64x32xbf16>
    %c5 = arith.constant 5 : index
    %c0_47 = arith.constant 0 : index
    %c0_48 = arith.constant 0 : index
    %120 = vector.load %arg6[%c5, %c0_47, %c0_48] : memref<9x32x32xbf16, #tpu.memory_space<vmem>>, vector<1x32x32xbf16>
    %121 = vector.shape_cast %120 : vector<1x32x32xbf16> to vector<32x32xbf16>
    %cst_49 = arith.constant dense<0.000000e+00> : vector<64x32xf32>
    %122 = tpu.matmul %119, %121, %cst_49 {dimension_numbers = #tpu.dot_dimension_numbers<[1], [0], [0], [1], [0, 0, 1, 1], [], []>} : vector<64x32xbf16>, vector<32x32xbf16>, vector<64x32xf32> -> vector<64x32xf32>
    %123 = arith.addf %111, %122 : vector<64x32xf32>
    %c57_i32 = arith.constant 57 : i32
    %124 = tpu.dynamic_rotate %51 by %c57_i32 dim 0 : vector<64x32xf32>, i32 -> vector<64x32xf32>
    %c7_i32_50 = arith.constant 7 : i32
    %125 = vector.broadcast %c7_i32_50 : i32 to vector<64x1xi32>
    %126 = arith.cmpi slt, %8, %125 : vector<64x1xi32>
    %c1_i32_51 = arith.constant 1 : i32
    %127 = vector.broadcast %c1_i32_51 : i32 to vector<64x1xi32>
    %128 = arith.cmpi sge, %11, %127 : vector<64x1xi32>
    %129 = arith.andi %126, %128 : vector<64x1xi1>
    %130 = arith.extui %129 : vector<64x1xi1> to vector<64x1xi32>
    %131 = arith.sitofp %130 : vector<64x1xi32> to vector<64x1xf32>
    %132 = vector.broadcast %131 : vector<64x1xf32> to vector<64x32xf32>
    %133 = arith.mulf %124, %132 : vector<64x32xf32>
    %134 = arith.truncf %133 : vector<64x32xf32> to vector<64x32xbf16>
    %c6 = arith.constant 6 : index
    %c0_52 = arith.constant 0 : index
    %c0_53 = arith.constant 0 : index
    %135 = vector.load %arg6[%c6, %c0_52, %c0_53] : memref<9x32x32xbf16, #tpu.memory_space<vmem>>, vector<1x32x32xbf16>
    %136 = vector.shape_cast %135 : vector<1x32x32xbf16> to vector<32x32xbf16>
    %cst_54 = arith.constant dense<0.000000e+00> : vector<64x32xf32>
    %137 = tpu.matmul %134, %136, %cst_54 {dimension_numbers = #tpu.dot_dimension_numbers<[1], [0], [0], [1], [0, 0, 1, 1], [], []>} : vector<64x32xbf16>, vector<32x32xbf16>, vector<64x32xf32> -> vector<64x32xf32>
    %138 = arith.addf %123, %137 : vector<64x32xf32>
    %c56_i32 = arith.constant 56 : i32
    %139 = tpu.dynamic_rotate %51 by %c56_i32 dim 0 : vector<64x32xf32>, i32 -> vector<64x32xf32>
    %c7_i32_55 = arith.constant 7 : i32
    %140 = vector.broadcast %c7_i32_55 : i32 to vector<64x1xi32>
    %141 = arith.cmpi slt, %8, %140 : vector<64x1xi32>
    %142 = arith.extui %141 : vector<64x1xi1> to vector<64x1xi32>
    %143 = arith.sitofp %142 : vector<64x1xi32> to vector<64x1xf32>
    %144 = vector.broadcast %143 : vector<64x1xf32> to vector<64x32xf32>
    %145 = arith.mulf %139, %144 : vector<64x32xf32>
    %146 = arith.truncf %145 : vector<64x32xf32> to vector<64x32xbf16>
    %c7 = arith.constant 7 : index
    %c0_56 = arith.constant 0 : index
    %c0_57 = arith.constant 0 : index
    %147 = vector.load %arg6[%c7, %c0_56, %c0_57] : memref<9x32x32xbf16, #tpu.memory_space<vmem>>, vector<1x32x32xbf16>
    %148 = vector.shape_cast %147 : vector<1x32x32xbf16> to vector<32x32xbf16>
    %cst_58 = arith.constant dense<0.000000e+00> : vector<64x32xf32>
    %149 = tpu.matmul %146, %148, %cst_58 {dimension_numbers = #tpu.dot_dimension_numbers<[1], [0], [0], [1], [0, 0, 1, 1], [], []>} : vector<64x32xbf16>, vector<32x32xbf16>, vector<64x32xf32> -> vector<64x32xf32>
    %150 = arith.addf %138, %149 : vector<64x32xf32>
    %c55_i32 = arith.constant 55 : i32
    %151 = tpu.dynamic_rotate %51 by %c55_i32 dim 0 : vector<64x32xf32>, i32 -> vector<64x32xf32>
    %c7_i32_59 = arith.constant 7 : i32
    %152 = vector.broadcast %c7_i32_59 : i32 to vector<64x1xi32>
    %153 = arith.cmpi slt, %8, %152 : vector<64x1xi32>
    %c7_i32_60 = arith.constant 7 : i32
    %154 = vector.broadcast %c7_i32_60 : i32 to vector<64x1xi32>
    %155 = arith.cmpi slt, %11, %154 : vector<64x1xi32>
    %156 = arith.andi %153, %155 : vector<64x1xi1>
    %157 = arith.extui %156 : vector<64x1xi1> to vector<64x1xi32>
    %158 = arith.sitofp %157 : vector<64x1xi32> to vector<64x1xf32>
    %159 = vector.broadcast %158 : vector<64x1xf32> to vector<64x32xf32>
    %160 = arith.mulf %151, %159 : vector<64x32xf32>
    %161 = arith.truncf %160 : vector<64x32xf32> to vector<64x32xbf16>
    %c8 = arith.constant 8 : index
    %c0_61 = arith.constant 0 : index
    %c0_62 = arith.constant 0 : index
    %162 = vector.load %arg6[%c8, %c0_61, %c0_62] : memref<9x32x32xbf16, #tpu.memory_space<vmem>>, vector<1x32x32xbf16>
    %163 = vector.shape_cast %162 : vector<1x32x32xbf16> to vector<32x32xbf16>
    %cst_63 = arith.constant dense<0.000000e+00> : vector<64x32xf32>
    %164 = tpu.matmul %161, %163, %cst_63 {dimension_numbers = #tpu.dot_dimension_numbers<[1], [0], [0], [1], [0, 0, 1, 1], [], []>} : vector<64x32xbf16>, vector<32x32xbf16>, vector<64x32xf32> -> vector<64x32xf32>
    %165 = arith.addf %150, %164 : vector<64x32xf32>
    %c0_64 = arith.constant 0 : index
    %c0_65 = arith.constant 0 : index
    %166 = vector.load %arg7[%c0_64, %c0_65] : memref<1x32xf32, #tpu.memory_space<vmem>>, vector<1x32xf32>
    %167 = vector.broadcast %166 : vector<1x32xf32> to vector<64x32xf32>
    %168 = arith.addf %165, %167 : vector<64x32xf32>
    %c0_66 = arith.constant 0 : index
    %c0_67 = arith.constant 0 : index
    %c0_68 = arith.constant 0 : index
    %169 = vector.load %arg2[%c0_66, %c0_67, %c0_68] : memref<1x2x32xf32, #tpu.memory_space<vmem>>, vector<1x2x32xf32>
    %170 = vector.shape_cast %169 : vector<1x2x32xf32> to vector<2x32xf32>
    %171 = vector.extract_strided_slice %170 {offsets = [0, 0], sizes = [1, 32], strides = [1, 1]} : vector<2x32xf32> to vector<1x32xf32>
    %cst_69 = arith.constant 1.000000e+00 : f32
    %172 = vector.broadcast %cst_69 : f32 to vector<1x32xf32>
    %173 = arith.addf %172, %171 : vector<1x32xf32>
    %174 = vector.broadcast %173 : vector<1x32xf32> to vector<64x32xf32>
    %175 = arith.mulf %168, %174 : vector<64x32xf32>
    %176 = vector.extract_strided_slice %170 {offsets = [1, 0], sizes = [1, 32], strides = [1, 1]} : vector<2x32xf32> to vector<1x32xf32>
    %177 = vector.broadcast %176 : vector<1x32xf32> to vector<64x32xf32>
    %178 = arith.addf %175, %177 : vector<64x32xf32>
    %179 = arith.truncf %178 : vector<64x32xf32> to vector<64x32xbf16>
    %c0_70 = arith.constant 0 : index
    %c0_71 = arith.constant 0 : index
    %180 = vector.load %arg8[%c0_70, %c0_71] : memref<32x96xbf16, #tpu.memory_space<vmem>>, vector<32x96xbf16>
    %cst_72 = arith.constant dense<0.000000e+00> : vector<64x96xf32>
    %181 = tpu.matmul %179, %180, %cst_72 {dimension_numbers = #tpu.dot_dimension_numbers<[1], [0], [0], [1], [0, 0, 1, 1], [], []>} : vector<64x32xbf16>, vector<32x96xbf16>, vector<64x96xf32> -> vector<64x96xf32>
    %c0_73 = arith.constant 0 : index
    %c0_74 = arith.constant 0 : index
    %182 = vector.load %arg9[%c0_73, %c0_74] : memref<1x96xf32, #tpu.memory_space<vmem>>, vector<1x96xf32>
    %183 = vector.broadcast %182 : vector<1x96xf32> to vector<64x96xf32>
    %184 = arith.addf %181, %183 : vector<64x96xf32>
    %cst_75 = arith.constant 0.000000e+00 : f32
    %185 = vector.broadcast %cst_75 : f32 to vector<64x32xf32>
    %186 = vector.extract_strided_slice %184 {offsets = [0, 0], sizes = [64, 8], strides = [1, 1]} : vector<64x96xf32> to vector<64x8xf32>
    %cst_76 = arith.constant 0.353553385 : f32
    %187 = vector.broadcast %cst_76 : f32 to vector<64x8xf32>
    %188 = arith.mulf %186, %187 : vector<64x8xf32>
    %189 = vector.extract_strided_slice %184 {offsets = [0, 32], sizes = [64, 8], strides = [1, 1]} : vector<64x96xf32> to vector<64x8xf32>
    %190 = vector.extract_strided_slice %184 {offsets = [0, 64], sizes = [64, 8], strides = [1, 1]} : vector<64x96xf32> to vector<64x8xf32>
    %cst_77 = arith.constant dense<0.000000e+00> : vector<64x64xf32>
    %191 = tpu.matmul %188, %189, %cst_77 {dimension_numbers = #tpu.dot_dimension_numbers<[1], [1], [0], [0], [0, 0, 1, 0], [], []>} : vector<64x8xf32>, vector<64x8xf32>, vector<64x64xf32> -> vector<64x64xf32>
    %cst_78 = arith.constant dense<0xFF800000> : vector<64xf32>
    %192 = vector.multi_reduction <maximumf>, %191, %cst_78 [1] : vector<64x64xf32> to vector<64xf32>
    %193 = vector.shape_cast %192 : vector<64xf32> to vector<64x1xf32>
    %194 = vector.broadcast %193 : vector<64x1xf32> to vector<64x64xf32>
    %195 = arith.subf %191, %194 : vector<64x64xf32>
    %196 = math.exp %195 : vector<64x64xf32>
    %cst_79 = arith.constant dense<0.000000e+00> : vector<64xf32>
    %197 = vector.multi_reduction <add>, %196, %cst_79 [1] : vector<64x64xf32> to vector<64xf32>
    %198 = vector.shape_cast %197 : vector<64xf32> to vector<64x1xf32>
    %199 = tpu.reciprocal %198 {approx = true} : vector<64x1xf32> -> vector<64x1xf32>
    %200 = vector.broadcast %199 : vector<64x1xf32> to vector<64x64xf32>
    %201 = arith.mulf %196, %200 : vector<64x64xf32>
    %202 = arith.truncf %201 : vector<64x64xf32> to vector<64x64xbf16>
    %203 = arith.truncf %190 : vector<64x8xf32> to vector<64x8xbf16>
    %cst_80 = arith.constant dense<0.000000e+00> : vector<64x8xf32>
    %204 = tpu.matmul %202, %203, %cst_80 {dimension_numbers = #tpu.dot_dimension_numbers<[1], [0], [0], [1], [0, 0, 1, 1], [], []>} : vector<64x64xbf16>, vector<64x8xbf16>, vector<64x8xf32> -> vector<64x8xf32>
    %c0_81 = arith.constant 0 : index
    %c0_82 = arith.constant 0 : index
    %205 = vector.load %arg10[%c0_81, %c0_82] : memref<32x32xf32, #tpu.memory_space<vmem>>, vector<8x32xf32>
    %206 = arith.truncf %205 : vector<8x32xf32> to vector<8x32xbf16>
    %207 = arith.truncf %204 : vector<64x8xf32> to vector<64x8xbf16>
    %cst_83 = arith.constant dense<0.000000e+00> : vector<64x32xf32>
    %208 = tpu.matmul %207, %206, %cst_83 {dimension_numbers = #tpu.dot_dimension_numbers<[1], [0], [0], [1], [0, 0, 1, 1], [], []>} : vector<64x8xbf16>, vector<8x32xbf16>, vector<64x32xf32> -> vector<64x32xf32>
    %209 = arith.addf %185, %208 : vector<64x32xf32>
    %210 = vector.extract_strided_slice %184 {offsets = [0, 8], sizes = [64, 8], strides = [1, 1]} : vector<64x96xf32> to vector<64x8xf32>
    %cst_84 = arith.constant 0.353553385 : f32
    %211 = vector.broadcast %cst_84 : f32 to vector<64x8xf32>
    %212 = arith.mulf %210, %211 : vector<64x8xf32>
    %213 = vector.extract_strided_slice %184 {offsets = [0, 40], sizes = [64, 8], strides = [1, 1]} : vector<64x96xf32> to vector<64x8xf32>
    %214 = vector.extract_strided_slice %184 {offsets = [0, 72], sizes = [64, 8], strides = [1, 1]} : vector<64x96xf32> to vector<64x8xf32>
    %cst_85 = arith.constant dense<0.000000e+00> : vector<64x64xf32>
    %215 = tpu.matmul %212, %213, %cst_85 {dimension_numbers = #tpu.dot_dimension_numbers<[1], [1], [0], [0], [0, 0, 1, 0], [], []>} : vector<64x8xf32>, vector<64x8xf32>, vector<64x64xf32> -> vector<64x64xf32>
    %cst_86 = arith.constant dense<0xFF800000> : vector<64xf32>
    %216 = vector.multi_reduction <maximumf>, %215, %cst_86 [1] : vector<64x64xf32> to vector<64xf32>
    %217 = vector.shape_cast %216 : vector<64xf32> to vector<64x1xf32>
    %218 = vector.broadcast %217 : vector<64x1xf32> to vector<64x64xf32>
    %219 = arith.subf %215, %218 : vector<64x64xf32>
    %220 = math.exp %219 : vector<64x64xf32>
    %cst_87 = arith.constant dense<0.000000e+00> : vector<64xf32>
    %221 = vector.multi_reduction <add>, %220, %cst_87 [1] : vector<64x64xf32> to vector<64xf32>
    %222 = vector.shape_cast %221 : vector<64xf32> to vector<64x1xf32>
    %223 = tpu.reciprocal %222 {approx = true} : vector<64x1xf32> -> vector<64x1xf32>
    %224 = vector.broadcast %223 : vector<64x1xf32> to vector<64x64xf32>
    %225 = arith.mulf %220, %224 : vector<64x64xf32>
    %226 = arith.truncf %225 : vector<64x64xf32> to vector<64x64xbf16>
    %227 = arith.truncf %214 : vector<64x8xf32> to vector<64x8xbf16>
    %cst_88 = arith.constant dense<0.000000e+00> : vector<64x8xf32>
    %228 = tpu.matmul %226, %227, %cst_88 {dimension_numbers = #tpu.dot_dimension_numbers<[1], [0], [0], [1], [0, 0, 1, 1], [], []>} : vector<64x64xbf16>, vector<64x8xbf16>, vector<64x8xf32> -> vector<64x8xf32>
    %c8_89 = arith.constant 8 : index
    %c0_90 = arith.constant 0 : index
    %229 = vector.load %arg10[%c8_89, %c0_90] : memref<32x32xf32, #tpu.memory_space<vmem>>, vector<8x32xf32>
    %230 = arith.truncf %229 : vector<8x32xf32> to vector<8x32xbf16>
    %231 = arith.truncf %228 : vector<64x8xf32> to vector<64x8xbf16>
    %cst_91 = arith.constant dense<0.000000e+00> : vector<64x32xf32>
    %232 = tpu.matmul %231, %230, %cst_91 {dimension_numbers = #tpu.dot_dimension_numbers<[1], [0], [0], [1], [0, 0, 1, 1], [], []>} : vector<64x8xbf16>, vector<8x32xbf16>, vector<64x32xf32> -> vector<64x32xf32>
    %233 = arith.addf %209, %232 : vector<64x32xf32>
    %234 = vector.extract_strided_slice %184 {offsets = [0, 16], sizes = [64, 8], strides = [1, 1]} : vector<64x96xf32> to vector<64x8xf32>
    %cst_92 = arith.constant 0.353553385 : f32
    %235 = vector.broadcast %cst_92 : f32 to vector<64x8xf32>
    %236 = arith.mulf %234, %235 : vector<64x8xf32>
    %237 = vector.extract_strided_slice %184 {offsets = [0, 48], sizes = [64, 8], strides = [1, 1]} : vector<64x96xf32> to vector<64x8xf32>
    %238 = vector.extract_strided_slice %184 {offsets = [0, 80], sizes = [64, 8], strides = [1, 1]} : vector<64x96xf32> to vector<64x8xf32>
    %cst_93 = arith.constant dense<0.000000e+00> : vector<64x64xf32>
    %239 = tpu.matmul %236, %237, %cst_93 {dimension_numbers = #tpu.dot_dimension_numbers<[1], [1], [0], [0], [0, 0, 1, 0], [], []>} : vector<64x8xf32>, vector<64x8xf32>, vector<64x64xf32> -> vector<64x64xf32>
    %cst_94 = arith.constant dense<0xFF800000> : vector<64xf32>
    %240 = vector.multi_reduction <maximumf>, %239, %cst_94 [1] : vector<64x64xf32> to vector<64xf32>
    %241 = vector.shape_cast %240 : vector<64xf32> to vector<64x1xf32>
    %242 = vector.broadcast %241 : vector<64x1xf32> to vector<64x64xf32>
    %243 = arith.subf %239, %242 : vector<64x64xf32>
    %244 = math.exp %243 : vector<64x64xf32>
    %cst_95 = arith.constant dense<0.000000e+00> : vector<64xf32>
    %245 = vector.multi_reduction <add>, %244, %cst_95 [1] : vector<64x64xf32> to vector<64xf32>
    %246 = vector.shape_cast %245 : vector<64xf32> to vector<64x1xf32>
    %247 = tpu.reciprocal %246 {approx = true} : vector<64x1xf32> -> vector<64x1xf32>
    %248 = vector.broadcast %247 : vector<64x1xf32> to vector<64x64xf32>
    %249 = arith.mulf %244, %248 : vector<64x64xf32>
    %250 = arith.truncf %249 : vector<64x64xf32> to vector<64x64xbf16>
    %251 = arith.truncf %238 : vector<64x8xf32> to vector<64x8xbf16>
    %cst_96 = arith.constant dense<0.000000e+00> : vector<64x8xf32>
    %252 = tpu.matmul %250, %251, %cst_96 {dimension_numbers = #tpu.dot_dimension_numbers<[1], [0], [0], [1], [0, 0, 1, 1], [], []>} : vector<64x64xbf16>, vector<64x8xbf16>, vector<64x8xf32> -> vector<64x8xf32>
    %c16 = arith.constant 16 : index
    %c0_97 = arith.constant 0 : index
    %253 = vector.load %arg10[%c16, %c0_97] : memref<32x32xf32, #tpu.memory_space<vmem>>, vector<8x32xf32>
    %254 = arith.truncf %253 : vector<8x32xf32> to vector<8x32xbf16>
    %255 = arith.truncf %252 : vector<64x8xf32> to vector<64x8xbf16>
    %cst_98 = arith.constant dense<0.000000e+00> : vector<64x32xf32>
    %256 = tpu.matmul %255, %254, %cst_98 {dimension_numbers = #tpu.dot_dimension_numbers<[1], [0], [0], [1], [0, 0, 1, 1], [], []>} : vector<64x8xbf16>, vector<8x32xbf16>, vector<64x32xf32> -> vector<64x32xf32>
    %257 = arith.addf %233, %256 : vector<64x32xf32>
    %258 = vector.extract_strided_slice %184 {offsets = [0, 24], sizes = [64, 8], strides = [1, 1]} : vector<64x96xf32> to vector<64x8xf32>
    %cst_99 = arith.constant 0.353553385 : f32
    %259 = vector.broadcast %cst_99 : f32 to vector<64x8xf32>
    %260 = arith.mulf %258, %259 : vector<64x8xf32>
    %261 = vector.extract_strided_slice %184 {offsets = [0, 56], sizes = [64, 8], strides = [1, 1]} : vector<64x96xf32> to vector<64x8xf32>
    %262 = vector.extract_strided_slice %184 {offsets = [0, 88], sizes = [64, 8], strides = [1, 1]} : vector<64x96xf32> to vector<64x8xf32>
    %cst_100 = arith.constant dense<0.000000e+00> : vector<64x64xf32>
    %263 = tpu.matmul %260, %261, %cst_100 {dimension_numbers = #tpu.dot_dimension_numbers<[1], [1], [0], [0], [0, 0, 1, 0], [], []>} : vector<64x8xf32>, vector<64x8xf32>, vector<64x64xf32> -> vector<64x64xf32>
    %cst_101 = arith.constant dense<0xFF800000> : vector<64xf32>
    %264 = vector.multi_reduction <maximumf>, %263, %cst_101 [1] : vector<64x64xf32> to vector<64xf32>
    %265 = vector.shape_cast %264 : vector<64xf32> to vector<64x1xf32>
    %266 = vector.broadcast %265 : vector<64x1xf32> to vector<64x64xf32>
    %267 = arith.subf %263, %266 : vector<64x64xf32>
    %268 = math.exp %267 : vector<64x64xf32>
    %cst_102 = arith.constant dense<0.000000e+00> : vector<64xf32>
    %269 = vector.multi_reduction <add>, %268, %cst_102 [1] : vector<64x64xf32> to vector<64xf32>
    %270 = vector.shape_cast %269 : vector<64xf32> to vector<64x1xf32>
    %271 = tpu.reciprocal %270 {approx = true} : vector<64x1xf32> -> vector<64x1xf32>
    %272 = vector.broadcast %271 : vector<64x1xf32> to vector<64x64xf32>
    %273 = arith.mulf %268, %272 : vector<64x64xf32>
    %274 = arith.truncf %273 : vector<64x64xf32> to vector<64x64xbf16>
    %275 = arith.truncf %262 : vector<64x8xf32> to vector<64x8xbf16>
    %cst_103 = arith.constant dense<0.000000e+00> : vector<64x8xf32>
    %276 = tpu.matmul %274, %275, %cst_103 {dimension_numbers = #tpu.dot_dimension_numbers<[1], [0], [0], [1], [0, 0, 1, 1], [], []>} : vector<64x64xbf16>, vector<64x8xbf16>, vector<64x8xf32> -> vector<64x8xf32>
    %c24 = arith.constant 24 : index
    %c0_104 = arith.constant 0 : index
    %277 = vector.load %arg10[%c24, %c0_104] : memref<32x32xf32, #tpu.memory_space<vmem>>, vector<8x32xf32>
    %278 = arith.truncf %277 : vector<8x32xf32> to vector<8x32xbf16>
    %279 = arith.truncf %276 : vector<64x8xf32> to vector<64x8xbf16>
    %cst_105 = arith.constant dense<0.000000e+00> : vector<64x32xf32>
    %280 = tpu.matmul %279, %278, %cst_105 {dimension_numbers = #tpu.dot_dimension_numbers<[1], [0], [0], [1], [0, 0, 1, 1], [], []>} : vector<64x8xbf16>, vector<8x32xbf16>, vector<64x32xf32> -> vector<64x32xf32>
    %281 = arith.addf %257, %280 : vector<64x32xf32>
    %c0_106 = arith.constant 0 : index
    %c0_107 = arith.constant 0 : index
    %282 = vector.load %arg11[%c0_106, %c0_107] : memref<1x32xf32, #tpu.memory_space<vmem>>, vector<1x32xf32>
    %283 = vector.broadcast %282 : vector<1x32xf32> to vector<64x32xf32>
    %284 = arith.addf %281, %283 : vector<64x32xf32>
    %c0_108 = arith.constant 0 : index
    %c0_109 = arith.constant 0 : index
    %285 = vector.load %arg12[%c0_108, %c0_109] : memref<1x32xf32, #tpu.memory_space<vmem>>, vector<1x32xf32>
    %c0_110 = arith.constant 0 : index
    %c0_111 = arith.constant 0 : index
    %286 = vector.load %arg13[%c0_110, %c0_111] : memref<1x32xf32, #tpu.memory_space<vmem>>, vector<1x32xf32>
    %c0_112 = arith.constant 0 : index
    %c0_113 = arith.constant 0 : index
    %287 = vector.load %arg14[%c0_112, %c0_113] : memref<32x8xf32, #tpu.memory_space<vmem>>, vector<32x8xf32>
    %cst_114 = arith.constant dense<0.000000e+00> : vector<32xf32>
    %288 = vector.multi_reduction <add>, %284, %cst_114 [0] : vector<64x32xf32> to vector<32xf32>
    %289 = vector.shape_cast %288 : vector<32xf32> to vector<1x32xf32>
    %cst_115 = arith.constant dense<0.000000e+00> : vector<1x8xf32>
    %290 = tpu.matmul %289, %287, %cst_115 {dimension_numbers = #tpu.dot_dimension_numbers<[1], [0], [0], [1], [0, 0, 1, 1], [], []>, precision = #tpu.contract_precision<fp32>} : vector<1x32xf32>, vector<32x8xf32>, vector<1x8xf32> -> vector<1x8xf32>
    %cst_116 = arith.constant 2.560000e+02 : f32
    %291 = vector.broadcast %cst_116 : f32 to vector<1x8xf32>
    %292 = arith.divf %290, %291 : vector<1x8xf32>
    %cst_117 = arith.constant dense<0.000000e+00> : vector<1x32xf32>
    %293 = tpu.matmul %292, %287, %cst_117 {dimension_numbers = #tpu.dot_dimension_numbers<[1], [1], [0], [0], [0, 0, 1, 0], [], []>, precision = #tpu.contract_precision<fp32>} : vector<1x8xf32>, vector<32x8xf32>, vector<1x32xf32> -> vector<1x32xf32>
    %294 = vector.broadcast %293 : vector<1x32xf32> to vector<64x32xf32>
    %295 = arith.subf %284, %294 : vector<64x32xf32>
    %296 = arith.mulf %295, %295 : vector<64x32xf32>
    %cst_118 = arith.constant dense<0.000000e+00> : vector<32xf32>
    %297 = vector.multi_reduction <add>, %296, %cst_118 [0] : vector<64x32xf32> to vector<32xf32>
    %298 = vector.shape_cast %297 : vector<32xf32> to vector<1x32xf32>
    %cst_119 = arith.constant dense<0.000000e+00> : vector<1x8xf32>
    %299 = tpu.matmul %298, %287, %cst_119 {dimension_numbers = #tpu.dot_dimension_numbers<[1], [0], [0], [1], [0, 0, 1, 1], [], []>, precision = #tpu.contract_precision<fp32>} : vector<1x32xf32>, vector<32x8xf32>, vector<1x8xf32> -> vector<1x8xf32>
    %cst_120 = arith.constant 2.560000e+02 : f32
    %300 = vector.broadcast %cst_120 : f32 to vector<1x8xf32>
    %301 = arith.divf %299, %300 : vector<1x8xf32>
    %cst_121 = arith.constant dense<0.000000e+00> : vector<1x32xf32>
    %302 = tpu.matmul %301, %287, %cst_121 {dimension_numbers = #tpu.dot_dimension_numbers<[1], [1], [0], [0], [0, 0, 1, 0], [], []>, precision = #tpu.contract_precision<fp32>} : vector<1x8xf32>, vector<32x8xf32>, vector<1x32xf32> -> vector<1x32xf32>
    %cst_122 = arith.constant 9.99999974E-6 : f32
    %303 = vector.broadcast %cst_122 : f32 to vector<1x32xf32>
    %304 = arith.addf %302, %303 : vector<1x32xf32>
    %305 = math.rsqrt %304 : vector<1x32xf32>
    %306 = vector.broadcast %305 : vector<1x32xf32> to vector<64x32xf32>
    %307 = arith.mulf %295, %306 : vector<64x32xf32>
    %308 = vector.broadcast %285 : vector<1x32xf32> to vector<64x32xf32>
    %309 = arith.mulf %307, %308 : vector<64x32xf32>
    %310 = vector.broadcast %286 : vector<1x32xf32> to vector<64x32xf32>
    %311 = arith.addf %309, %310 : vector<64x32xf32>
    %cst_123 = arith.constant 5.000000e-01 : f32
    %312 = vector.broadcast %cst_123 : f32 to vector<64x32xf32>
    %313 = arith.mulf %312, %311 : vector<64x32xf32>
    %cst_124 = arith.constant 4.471500e-02 : f32
    %314 = vector.broadcast %cst_124 : f32 to vector<64x32xf32>
    %315 = arith.mulf %314, %311 : vector<64x32xf32>
    %316 = arith.mulf %315, %311 : vector<64x32xf32>
    %317 = arith.mulf %316, %311 : vector<64x32xf32>
    %318 = arith.addf %311, %317 : vector<64x32xf32>
    %cst_125 = arith.constant 0.797884583 : f32
    %319 = vector.broadcast %cst_125 : f32 to vector<64x32xf32>
    %320 = arith.mulf %319, %318 : vector<64x32xf32>
    %321 = math.tanh %320 : vector<64x32xf32>
    %cst_126 = arith.constant 1.000000e+00 : f32
    %322 = vector.broadcast %cst_126 : f32 to vector<64x32xf32>
    %323 = arith.addf %322, %321 : vector<64x32xf32>
    %324 = arith.mulf %313, %323 : vector<64x32xf32>
    %cst_127 = arith.constant 0.000000e+00 : f32
    %325 = vector.broadcast %cst_127 : f32 to vector<64x32xf32>
    %c9_i32_128 = arith.constant 9 : i32
    %326 = tpu.dynamic_rotate %324 by %c9_i32_128 dim 0 : vector<64x32xf32>, i32 -> vector<64x32xf32>
    %c1_i32_129 = arith.constant 1 : i32
    %327 = vector.broadcast %c1_i32_129 : i32 to vector<64x1xi32>
    %328 = arith.cmpi sge, %8, %327 : vector<64x1xi32>
    %c1_i32_130 = arith.constant 1 : i32
    %329 = vector.broadcast %c1_i32_130 : i32 to vector<64x1xi32>
    %330 = arith.cmpi sge, %11, %329 : vector<64x1xi32>
    %331 = arith.andi %328, %330 : vector<64x1xi1>
    %332 = arith.extui %331 : vector<64x1xi1> to vector<64x1xi32>
    %333 = arith.sitofp %332 : vector<64x1xi32> to vector<64x1xf32>
    %334 = vector.broadcast %333 : vector<64x1xf32> to vector<64x32xf32>
    %335 = arith.mulf %326, %334 : vector<64x32xf32>
    %336 = arith.truncf %335 : vector<64x32xf32> to vector<64x32xbf16>
    %c0_131 = arith.constant 0 : index
    %c0_132 = arith.constant 0 : index
    %c0_133 = arith.constant 0 : index
    %337 = vector.load %arg15[%c0_131, %c0_132, %c0_133] : memref<9x32x32xbf16, #tpu.memory_space<vmem>>, vector<1x32x32xbf16>
    %338 = vector.shape_cast %337 : vector<1x32x32xbf16> to vector<32x32xbf16>
    %cst_134 = arith.constant dense<0.000000e+00> : vector<64x32xf32>
    %339 = tpu.matmul %336, %338, %cst_134 {dimension_numbers = #tpu.dot_dimension_numbers<[1], [0], [0], [1], [0, 0, 1, 1], [], []>} : vector<64x32xbf16>, vector<32x32xbf16>, vector<64x32xf32> -> vector<64x32xf32>
    %340 = arith.addf %325, %339 : vector<64x32xf32>
    %c8_i32_135 = arith.constant 8 : i32
    %341 = tpu.dynamic_rotate %324 by %c8_i32_135 dim 0 : vector<64x32xf32>, i32 -> vector<64x32xf32>
    %c1_i32_136 = arith.constant 1 : i32
    %342 = vector.broadcast %c1_i32_136 : i32 to vector<64x1xi32>
    %343 = arith.cmpi sge, %8, %342 : vector<64x1xi32>
    %344 = arith.extui %343 : vector<64x1xi1> to vector<64x1xi32>
    %345 = arith.sitofp %344 : vector<64x1xi32> to vector<64x1xf32>
    %346 = vector.broadcast %345 : vector<64x1xf32> to vector<64x32xf32>
    %347 = arith.mulf %341, %346 : vector<64x32xf32>
    %348 = arith.truncf %347 : vector<64x32xf32> to vector<64x32xbf16>
    %c1_137 = arith.constant 1 : index
    %c0_138 = arith.constant 0 : index
    %c0_139 = arith.constant 0 : index
    %349 = vector.load %arg15[%c1_137, %c0_138, %c0_139] : memref<9x32x32xbf16, #tpu.memory_space<vmem>>, vector<1x32x32xbf16>
    %350 = vector.shape_cast %349 : vector<1x32x32xbf16> to vector<32x32xbf16>
    %cst_140 = arith.constant dense<0.000000e+00> : vector<64x32xf32>
    %351 = tpu.matmul %348, %350, %cst_140 {dimension_numbers = #tpu.dot_dimension_numbers<[1], [0], [0], [1], [0, 0, 1, 1], [], []>} : vector<64x32xbf16>, vector<32x32xbf16>, vector<64x32xf32> -> vector<64x32xf32>
    %352 = arith.addf %340, %351 : vector<64x32xf32>
    %c7_i32_141 = arith.constant 7 : i32
    %353 = tpu.dynamic_rotate %324 by %c7_i32_141 dim 0 : vector<64x32xf32>, i32 -> vector<64x32xf32>
    %c1_i32_142 = arith.constant 1 : i32
    %354 = vector.broadcast %c1_i32_142 : i32 to vector<64x1xi32>
    %355 = arith.cmpi sge, %8, %354 : vector<64x1xi32>
    %c7_i32_143 = arith.constant 7 : i32
    %356 = vector.broadcast %c7_i32_143 : i32 to vector<64x1xi32>
    %357 = arith.cmpi slt, %11, %356 : vector<64x1xi32>
    %358 = arith.andi %355, %357 : vector<64x1xi1>
    %359 = arith.extui %358 : vector<64x1xi1> to vector<64x1xi32>
    %360 = arith.sitofp %359 : vector<64x1xi32> to vector<64x1xf32>
    %361 = vector.broadcast %360 : vector<64x1xf32> to vector<64x32xf32>
    %362 = arith.mulf %353, %361 : vector<64x32xf32>
    %363 = arith.truncf %362 : vector<64x32xf32> to vector<64x32xbf16>
    %c2_144 = arith.constant 2 : index
    %c0_145 = arith.constant 0 : index
    %c0_146 = arith.constant 0 : index
    %364 = vector.load %arg15[%c2_144, %c0_145, %c0_146] : memref<9x32x32xbf16, #tpu.memory_space<vmem>>, vector<1x32x32xbf16>
    %365 = vector.shape_cast %364 : vector<1x32x32xbf16> to vector<32x32xbf16>
    %cst_147 = arith.constant dense<0.000000e+00> : vector<64x32xf32>
    %366 = tpu.matmul %363, %365, %cst_147 {dimension_numbers = #tpu.dot_dimension_numbers<[1], [0], [0], [1], [0, 0, 1, 1], [], []>} : vector<64x32xbf16>, vector<32x32xbf16>, vector<64x32xf32> -> vector<64x32xf32>
    %367 = arith.addf %352, %366 : vector<64x32xf32>
    %c1_i32_148 = arith.constant 1 : i32
    %368 = tpu.dynamic_rotate %324 by %c1_i32_148 dim 0 : vector<64x32xf32>, i32 -> vector<64x32xf32>
    %c1_i32_149 = arith.constant 1 : i32
    %369 = vector.broadcast %c1_i32_149 : i32 to vector<64x1xi32>
    %370 = arith.cmpi sge, %11, %369 : vector<64x1xi32>
    %371 = arith.extui %370 : vector<64x1xi1> to vector<64x1xi32>
    %372 = arith.sitofp %371 : vector<64x1xi32> to vector<64x1xf32>
    %373 = vector.broadcast %372 : vector<64x1xf32> to vector<64x32xf32>
    %374 = arith.mulf %368, %373 : vector<64x32xf32>
    %375 = arith.truncf %374 : vector<64x32xf32> to vector<64x32xbf16>
    %c3_150 = arith.constant 3 : index
    %c0_151 = arith.constant 0 : index
    %c0_152 = arith.constant 0 : index
    %376 = vector.load %arg15[%c3_150, %c0_151, %c0_152] : memref<9x32x32xbf16, #tpu.memory_space<vmem>>, vector<1x32x32xbf16>
    %377 = vector.shape_cast %376 : vector<1x32x32xbf16> to vector<32x32xbf16>
    %cst_153 = arith.constant dense<0.000000e+00> : vector<64x32xf32>
    %378 = tpu.matmul %375, %377, %cst_153 {dimension_numbers = #tpu.dot_dimension_numbers<[1], [0], [0], [1], [0, 0, 1, 1], [], []>} : vector<64x32xbf16>, vector<32x32xbf16>, vector<64x32xf32> -> vector<64x32xf32>
    %379 = arith.addf %367, %378 : vector<64x32xf32>
    %380 = arith.truncf %324 : vector<64x32xf32> to vector<64x32xbf16>
    %c4_154 = arith.constant 4 : index
    %c0_155 = arith.constant 0 : index
    %c0_156 = arith.constant 0 : index
    %381 = vector.load %arg15[%c4_154, %c0_155, %c0_156] : memref<9x32x32xbf16, #tpu.memory_space<vmem>>, vector<1x32x32xbf16>
    %382 = vector.shape_cast %381 : vector<1x32x32xbf16> to vector<32x32xbf16>
    %cst_157 = arith.constant dense<0.000000e+00> : vector<64x32xf32>
    %383 = tpu.matmul %380, %382, %cst_157 {dimension_numbers = #tpu.dot_dimension_numbers<[1], [0], [0], [1], [0, 0, 1, 1], [], []>} : vector<64x32xbf16>, vector<32x32xbf16>, vector<64x32xf32> -> vector<64x32xf32>
    %384 = arith.addf %379, %383 : vector<64x32xf32>
    %c63_i32_158 = arith.constant 63 : i32
    %385 = tpu.dynamic_rotate %324 by %c63_i32_158 dim 0 : vector<64x32xf32>, i32 -> vector<64x32xf32>
    %c7_i32_159 = arith.constant 7 : i32
    %386 = vector.broadcast %c7_i32_159 : i32 to vector<64x1xi32>
    %387 = arith.cmpi slt, %11, %386 : vector<64x1xi32>
    %388 = arith.extui %387 : vector<64x1xi1> to vector<64x1xi32>
    %389 = arith.sitofp %388 : vector<64x1xi32> to vector<64x1xf32>
    %390 = vector.broadcast %389 : vector<64x1xf32> to vector<64x32xf32>
    %391 = arith.mulf %385, %390 : vector<64x32xf32>
    %392 = arith.truncf %391 : vector<64x32xf32> to vector<64x32xbf16>
    %c5_160 = arith.constant 5 : index
    %c0_161 = arith.constant 0 : index
    %c0_162 = arith.constant 0 : index
    %393 = vector.load %arg15[%c5_160, %c0_161, %c0_162] : memref<9x32x32xbf16, #tpu.memory_space<vmem>>, vector<1x32x32xbf16>
    %394 = vector.shape_cast %393 : vector<1x32x32xbf16> to vector<32x32xbf16>
    %cst_163 = arith.constant dense<0.000000e+00> : vector<64x32xf32>
    %395 = tpu.matmul %392, %394, %cst_163 {dimension_numbers = #tpu.dot_dimension_numbers<[1], [0], [0], [1], [0, 0, 1, 1], [], []>} : vector<64x32xbf16>, vector<32x32xbf16>, vector<64x32xf32> -> vector<64x32xf32>
    %396 = arith.addf %384, %395 : vector<64x32xf32>
    %c57_i32_164 = arith.constant 57 : i32
    %397 = tpu.dynamic_rotate %324 by %c57_i32_164 dim 0 : vector<64x32xf32>, i32 -> vector<64x32xf32>
    %c7_i32_165 = arith.constant 7 : i32
    %398 = vector.broadcast %c7_i32_165 : i32 to vector<64x1xi32>
    %399 = arith.cmpi slt, %8, %398 : vector<64x1xi32>
    %c1_i32_166 = arith.constant 1 : i32
    %400 = vector.broadcast %c1_i32_166 : i32 to vector<64x1xi32>
    %401 = arith.cmpi sge, %11, %400 : vector<64x1xi32>
    %402 = arith.andi %399, %401 : vector<64x1xi1>
    %403 = arith.extui %402 : vector<64x1xi1> to vector<64x1xi32>
    %404 = arith.sitofp %403 : vector<64x1xi32> to vector<64x1xf32>
    %405 = vector.broadcast %404 : vector<64x1xf32> to vector<64x32xf32>
    %406 = arith.mulf %397, %405 : vector<64x32xf32>
    %407 = arith.truncf %406 : vector<64x32xf32> to vector<64x32xbf16>
    %c6_167 = arith.constant 6 : index
    %c0_168 = arith.constant 0 : index
    %c0_169 = arith.constant 0 : index
    %408 = vector.load %arg15[%c6_167, %c0_168, %c0_169] : memref<9x32x32xbf16, #tpu.memory_space<vmem>>, vector<1x32x32xbf16>
    %409 = vector.shape_cast %408 : vector<1x32x32xbf16> to vector<32x32xbf16>
    %cst_170 = arith.constant dense<0.000000e+00> : vector<64x32xf32>
    %410 = tpu.matmul %407, %409, %cst_170 {dimension_numbers = #tpu.dot_dimension_numbers<[1], [0], [0], [1], [0, 0, 1, 1], [], []>} : vector<64x32xbf16>, vector<32x32xbf16>, vector<64x32xf32> -> vector<64x32xf32>
    %411 = arith.addf %396, %410 : vector<64x32xf32>
    %c56_i32_171 = arith.constant 56 : i32
    %412 = tpu.dynamic_rotate %324 by %c56_i32_171 dim 0 : vector<64x32xf32>, i32 -> vector<64x32xf32>
    %c7_i32_172 = arith.constant 7 : i32
    %413 = vector.broadcast %c7_i32_172 : i32 to vector<64x1xi32>
    %414 = arith.cmpi slt, %8, %413 : vector<64x1xi32>
    %415 = arith.extui %414 : vector<64x1xi1> to vector<64x1xi32>
    %416 = arith.sitofp %415 : vector<64x1xi32> to vector<64x1xf32>
    %417 = vector.broadcast %416 : vector<64x1xf32> to vector<64x32xf32>
    %418 = arith.mulf %412, %417 : vector<64x32xf32>
    %419 = arith.truncf %418 : vector<64x32xf32> to vector<64x32xbf16>
    %c7_173 = arith.constant 7 : index
    %c0_174 = arith.constant 0 : index
    %c0_175 = arith.constant 0 : index
    %420 = vector.load %arg15[%c7_173, %c0_174, %c0_175] : memref<9x32x32xbf16, #tpu.memory_space<vmem>>, vector<1x32x32xbf16>
    %421 = vector.shape_cast %420 : vector<1x32x32xbf16> to vector<32x32xbf16>
    %cst_176 = arith.constant dense<0.000000e+00> : vector<64x32xf32>
    %422 = tpu.matmul %419, %421, %cst_176 {dimension_numbers = #tpu.dot_dimension_numbers<[1], [0], [0], [1], [0, 0, 1, 1], [], []>} : vector<64x32xbf16>, vector<32x32xbf16>, vector<64x32xf32> -> vector<64x32xf32>
    %423 = arith.addf %411, %422 : vector<64x32xf32>
    %c55_i32_177 = arith.constant 55 : i32
    %424 = tpu.dynamic_rotate %324 by %c55_i32_177 dim 0 : vector<64x32xf32>, i32 -> vector<64x32xf32>
    %c7_i32_178 = arith.constant 7 : i32
    %425 = vector.broadcast %c7_i32_178 : i32 to vector<64x1xi32>
    %426 = arith.cmpi slt, %8, %425 : vector<64x1xi32>
    %c7_i32_179 = arith.constant 7 : i32
    %427 = vector.broadcast %c7_i32_179 : i32 to vector<64x1xi32>
    %428 = arith.cmpi slt, %11, %427 : vector<64x1xi32>
    %429 = arith.andi %426, %428 : vector<64x1xi1>
    %430 = arith.extui %429 : vector<64x1xi1> to vector<64x1xi32>
    %431 = arith.sitofp %430 : vector<64x1xi32> to vector<64x1xf32>
    %432 = vector.broadcast %431 : vector<64x1xf32> to vector<64x32xf32>
    %433 = arith.mulf %424, %432 : vector<64x32xf32>
    %434 = arith.truncf %433 : vector<64x32xf32> to vector<64x32xbf16>
    %c8_180 = arith.constant 8 : index
    %c0_181 = arith.constant 0 : index
    %c0_182 = arith.constant 0 : index
    %435 = vector.load %arg15[%c8_180, %c0_181, %c0_182] : memref<9x32x32xbf16, #tpu.memory_space<vmem>>, vector<1x32x32xbf16>
    %436 = vector.shape_cast %435 : vector<1x32x32xbf16> to vector<32x32xbf16>
    %cst_183 = arith.constant dense<0.000000e+00> : vector<64x32xf32>
    %437 = tpu.matmul %434, %436, %cst_183 {dimension_numbers = #tpu.dot_dimension_numbers<[1], [0], [0], [1], [0, 0, 1, 1], [], []>} : vector<64x32xbf16>, vector<32x32xbf16>, vector<64x32xf32> -> vector<64x32xf32>
    %438 = arith.addf %423, %437 : vector<64x32xf32>
    %c0_184 = arith.constant 0 : index
    %c0_185 = arith.constant 0 : index
    %439 = vector.load %arg16[%c0_184, %c0_185] : memref<1x32xf32, #tpu.memory_space<vmem>>, vector<1x32xf32>
    %440 = vector.broadcast %439 : vector<1x32xf32> to vector<64x32xf32>
    %441 = arith.addf %438, %440 : vector<64x32xf32>
    %442 = arith.addf %441, %1 : vector<64x32xf32>
    %c0_186 = arith.constant 0 : index
    %c0_187 = arith.constant 0 : index
    %c0_188 = arith.constant 0 : index
    %443 = vector.load %arg17[%c0_186, %c0_187, %c0_188] : memref<1x64x32xf32, #tpu.memory_space<vmem>>, vector<1x64x32xf32>
    %444 = vector.shape_cast %443 : vector<1x64x32xf32> to vector<64x32xf32>
    %445 = vector.shape_cast %442 : vector<64x32xf32> to vector<1x64x32xf32>
    tpu.vector_store %arg17[%c0_186, %c0_187, %c0_188], %445 {strides = array<i32>} : memref<1x64x32xf32, #tpu.memory_space<vmem>>, vector<1x64x32xf32>,
    return
  }
  func.func @transform_0(%arg0: i32) -> (i32, i32, i32) {
    %c0_i32 = arith.constant 0 : i32
    %c0_i32_0 = arith.constant 0 : i32
    %c0_i32_1 = arith.constant 0 : i32
    return %arg0, %c0_i32, %c0_i32_0 : i32, i32, i32
  }
  func.func @transform_1(%arg0: i32) -> (i32, i32, i32) {
    %c0_i32 = arith.constant 0 : i32
    %c0_i32_0 = arith.constant 0 : i32
    %c0_i32_1 = arith.constant 0 : i32
    return %arg0, %c0_i32, %c0_i32_0 : i32, i32, i32
  }
  func.func @transform_2(%arg0: i32) -> (i32, i32) {
    %c0_i32 = arith.constant 0 : i32
    %c0_i32_0 = arith.constant 0 : i32
    %c0_i32_1 = arith.constant 0 : i32
    return %c0_i32, %c0_i32_0 : i32, i32
  }
  func.func @transform_3(%arg0: i32) -> (i32, i32) {
    %c0_i32 = arith.constant 0 : i32
    %c0_i32_0 = arith.constant 0 : i32
    %c0_i32_1 = arith.constant 0 : i32
    return %c0_i32, %c0_i32_0 : i32, i32
  }
  func.func @transform_4(%arg0: i32) -> (i32, i32) {
    %c0_i32 = arith.constant 0 : i32
    %c0_i32_0 = arith.constant 0 : i32
    %c0_i32_1 = arith.constant 0 : i32
    return %c0_i32, %c0_i32_0 : i32, i32
  }
  func.func @transform_5(%arg0: i32) -> (i32, i32, i32) {
    %c0_i32 = arith.constant 0 : i32
    %c0_i32_0 = arith.constant 0 : i32
    %c0_i32_1 = arith.constant 0 : i32
    %c0_i32_2 = arith.constant 0 : i32
    return %c0_i32, %c0_i32_0, %c0_i32_1 : i32, i32, i32
  }
  func.func @transform_6(%arg0: i32) -> (i32, i32) {
    %c0_i32 = arith.constant 0 : i32
    %c0_i32_0 = arith.constant 0 : i32
    %c0_i32_1 = arith.constant 0 : i32
    return %c0_i32, %c0_i32_0 : i32, i32
  }
  func.func @transform_7(%arg0: i32) -> (i32, i32) {
    %c0_i32 = arith.constant 0 : i32
    %c0_i32_0 = arith.constant 0 : i32
    %c0_i32_1 = arith.constant 0 : i32
    return %c0_i32, %c0_i32_0 : i32, i32
  }
  func.func @transform_8(%arg0: i32) -> (i32, i32) {
    %c0_i32 = arith.constant 0 : i32
    %c0_i32_0 = arith.constant 0 : i32
    %c0_i32_1 = arith.constant 0 : i32
    return %c0_i32, %c0_i32_0 : i32, i32
  }
  func.func @transform_9(%arg0: i32) -> (i32, i32) {
    %c0_i32 = arith.constant 0 : i32
    %c0_i32_0 = arith.constant 0 : i32
    %c0_i32_1 = arith.constant 0 : i32
    return %c0_i32, %c0_i32_0 : i32, i32
  }
  func.func @transform_10(%arg0: i32) -> (i32, i32) {
    %c0_i32 = arith.constant 0 : i32
    %c0_i32_0 = arith.constant 0 : i32
    %c0_i32_1 = arith.constant 0 : i32
    return %c0_i32, %c0_i32_0 : i32, i32
  }
  func.func @transform_11(%arg0: i32) -> (i32, i32) {
    %c0_i32 = arith.constant 0 : i32
    %c0_i32_0 = arith.constant 0 : i32
    %c0_i32_1 = arith.constant 0 : i32
    return %c0_i32, %c0_i32_0 : i32, i32
  }
  func.func @transform_12(%arg0: i32) -> (i32, i32) {
    %c0_i32 = arith.constant 0 : i32
    %c0_i32_0 = arith.constant 0 : i32
    %c0_i32_1 = arith.constant 0 : i32
    return %c0_i32, %c0_i32_0 : i32, i32
  }
  func.func @transform_13(%arg0: i32) -> (i32, i32) {
    %c0_i32 = arith.constant 0 : i32
    %c0_i32_0 = arith.constant 0 : i32
    %c0_i32_1 = arith.constant 0 : i32
    return %c0_i32, %c0_i32_0 : i32, i32
  }
  func.func @transform_14(%arg0: i32) -> (i32, i32, i32) {
    %c0_i32 = arith.constant 0 : i32
    %c0_i32_0 = arith.constant 0 : i32
    %c0_i32_1 = arith.constant 0 : i32
    %c0_i32_2 = arith.constant 0 : i32
    return %c0_i32, %c0_i32_0, %c0_i32_1 : i32, i32, i32
  }
  func.func @transform_15(%arg0: i32) -> (i32, i32) {
    %c0_i32 = arith.constant 0 : i32
    %c0_i32_0 = arith.constant 0 : i32
    %c0_i32_1 = arith.constant 0 : i32
    return %c0_i32, %c0_i32_0 : i32, i32
  }
  func.func @transform_16(%arg0: i32) -> (i32, i32, i32) {
    %c0_i32 = arith.constant 0 : i32
    %c0_i32_0 = arith.constant 0 : i32
    %c0_i32_1 = arith.constant 0 : i32
    return %arg0, %c0_i32, %c0_i32_0 : i32, i32, i32
  }
}

</mosaic_0001>

<llo_original>
// kernel: attention_guidance_block.1
$region0: #{attention_guidance_block.1}
  #allocation0 [shape = 'u32[]', space=smem, size = 0x4, offset = 0x4, fixed_abs, tag = 'smem constant byte address 0x4 - core index']
  #allocation1 [shape = 'u32[72,128]{1,0:T(1,128)}', space=vmem, size = 0x9000, scoped, tag = 'internal scratch']
  %s0 = inlined_call_operand.vmem [shape: f32[2,64,32], index: 0, kind: input, shape index: {}]
  %s1 = inlined_call_operand.vmem [shape: f32[2,2,32], index: 1, kind: input, shape index: {}]
  %s2 = inlined_call_operand.vmem [shape: f32[1,32], index: 2, kind: input, shape index: {}]
  %s3 = inlined_call_operand.vmem [shape: f32[1,32], index: 3, kind: input, shape index: {}]
  %s4 = inlined_call_operand.vmem [shape: f32[32,8], index: 4, kind: input, shape index: {}, may-alias: {4,13}]
  %s5 = inlined_call_operand.vmem [shape: bf16[9,32,32], index: 5, kind: input, shape index: {}]
  %s6 = inlined_call_operand.vmem [shape: f32[1,32], index: 6, kind: input, shape index: {}]
  %s7 = inlined_call_operand.vmem [shape: bf16[32,96], index: 7, kind: input, shape index: {}]
  %s8 = inlined_call_operand.vmem [shape: f32[1,96], index: 8, kind: input, shape index: {}]
  %s9 = inlined_call_operand.vmem [shape: f32[32,32], index: 9, kind: input, shape index: {}]
  %s10 = inlined_call_operand.vmem [shape: f32[1,32], index: 10, kind: input, shape index: {}]
  %s11 = inlined_call_operand.vmem [shape: f32[1,32], index: 11, kind: input, shape index: {}]
  %s12 = inlined_call_operand.vmem [shape: f32[1,32], index: 12, kind: input, shape index: {}]
  %s13 = inlined_call_operand.vmem [shape: f32[32,8], index: 13, kind: input, shape index: {}, may-alias: {4,13}]
  %s14 = inlined_call_operand.vmem [shape: bf16[9,32,32], index: 14, kind: input, shape index: {}]
  %s15 = inlined_call_operand.vmem [shape: f32[1,32], index: 15, kind: input, shape index: {}]
  %s16 = inlined_call_operand.hbm [shape: f32[2,64,32], index: 16, kind: output, shape index: {}]
  %s17 = sld [smem:[#allocation0]]
  $region97: #{attention_guidance_block.1} parent=0
    _
  %s19 = ssub.s32 1, %s17
  %s20 = scalar_select 0, %s19, %s17
  $region1: #{attention_guidance_block.1} parent=0
    #allocation2 [shape = 'u8[65536]{0}', space=vmem, size = 0x10000, scoped, tag = 'output window, operand 0']
    #allocation3 [shape = 's32[2]{0}', space=sflag, size = 0x8, scoped, tag = 'scoped memory for attention_guidance_block.1']
    %21 = vsyncpa [#allocation3], 0
    %s22 = scalar_lea.sflag [#allocation3], 1
    %23 = vsyncpa %s22, 0
    loop: start=0, step=1, limit=4
    $region2: #{attention_guidance_block.1} parent=1 // loop_pre_header
      _
    $region3: #{attention_guidance_block.1} parent=1 // loop_header
      %s25 = sphi 0, %s29
      %p26 = scmp.ge.s32.totalorder %s25, 4
      %s35 = sphi 0, %s37
      %s38 = sphi 0, %s35
      %s39 = sphi 0, %s38
      %s55 = sphi 0, %s39
      %s61 = sphi 0, %s63
      %s64 = sphi 0, %s61
      %s65 = sphi 0, %s64
      %s81 = sphi 0, %s65
      %s85 = sphi 0, %s85
      %s87 = sphi 0, %s85
      %s88 = sphi 0, %s87
      %s102 = sphi 0, %s88
      %s106 = sphi 0, %s106
      %s108 = sphi 0, %s106
      %s109 = sphi 0, %s108
      %s123 = sphi 0, %s109
      %s127 = sphi 0, %s127
      %s129 = sphi 0, %s127
      %s130 = sphi 0, %s129
      %s144 = sphi 0, %s130
      %s148 = sphi 0, %s148
      %s150 = sphi 0, %s148
      %s151 = sphi 0, %s150
      %s165 = sphi 0, %s151
      %s169 = sphi 0, %s169
      %s171 = sphi 0, %s169
      %s172 = sphi 0, %s171
      %s186 = sphi 0, %s172
      %s190 = sphi 0, %s190
      %s192 = sphi 0, %s190
      %s193 = sphi 0, %s192
      %s207 = sphi 0, %s193
      %s211 = sphi 0, %s211
      %s213 = sphi 0, %s211
      %s214 = sphi 0, %s213
      %s228 = sphi 0, %s214
      %s232 = sphi 0, %s232
      %s234 = sphi 0, %s232
      %s235 = sphi 0, %s234
      %s249 = sphi 0, %s235
      %s253 = sphi 0, %s253
      %s255 = sphi 0, %s253
      %s256 = sphi 0, %s255
      %s270 = sphi 0, %s256
      %s274 = sphi 0, %s274
      %s276 = sphi 0, %s274
      %s277 = sphi 0, %s276
      %s291 = sphi 0, %s277
      %s295 = sphi 0, %s295
      %s297 = sphi 0, %s295
      %s298 = sphi 0, %s297
      %s312 = sphi 0, %s298
      %s316 = sphi 0, %s316
      %s318 = sphi 0, %s316
      %s319 = sphi 0, %s318
      %s333 = sphi 0, %s319
      %s337 = sphi 0, %s337
      %s339 = sphi 0, %s337
      %s340 = sphi 0, %s339
      %s354 = sphi 0, %s340
      %s358 = sphi 0, %s358
      %s360 = sphi 0, %s358
      %s361 = sphi 0, %s360
      %s375 = sphi 0, %s361
      %s381 = sphi 0, %s383
      %s384 = sphi 0, %s381
      %s385 = sphi 0, %s384
      %s401 = sphi 0, %s385
    $region4: #{attention_guidance_block.1} parent=1 // loop_header_branch
      %28 = sbr.rel (%p26) target = $region8
    $region5: #{attention_guidance_block.1} parent=1 // loop_body
      %s30 = ssub.s32 %s25, 1
      %s31 = ssub.s32 %s25, 2
      %s32 = sadd.s32 %s25, 1
      %s33 = ssub.s32 %s25, %s32
      %p34 = scmp.eq.s32.totalorder %s33, 0
      %s36 = sadd.s32 %s35, 1
      %s37 = scalar_select %p34, %s35, %s36
      %p40 = pneg %p34
      %p41 = scmp.eq.s32.totalorder %s25, 1
      %p42 = por %p40, %p41
      %p43 = scmp.ne.s32.totalorder %s35, %s38
      %p44 = scmp.eq.s32.totalorder %s25, 0
      %p45 = por %p43, %p44
      %p46 = scmp.ne.s32.totalorder %s35, %s38
      %p47 = scmp.eq.s32.totalorder %s30, 1
      %p48 = por %p46, %p47
      %p49 = scmp.ne.s32.totalorder %s38, %s39
      %p50 = scmp.eq.s32.totalorder %s30, 0
      %p51 = por %p49, %p50
      %p52 = scmp.ne.s32.totalorder %s38, %s39
      %p53 = scmp.eq.s32.totalorder %s31, 1
      %p54 = por %p52, %p53
      %p56 = scmp.ne.s32.totalorder %s39, %s55
      %p57 = scmp.eq.s32.totalorder %s31, 0
      %p58 = por %p56, %p57
      %s59 = ssub.s32 %s25, %s32
      %p60 = scmp.eq.s32.totalorder %s59, 0
      %s62 = sadd.s32 %s61, 1
      %s63 = scalar_select %p60, %s61, %s62
      %p66 = pneg %p60
      %p67 = scmp.eq.s32.totalorder %s25, 1
      %p68 = por %p66, %p67
      %p69 = scmp.ne.s32.totalorder %s61, %s64
      %p70 = scmp.eq.s32.totalorder %s25, 0
      %p71 = por %p69, %p70
      %p72 = scmp.ne.s32.totalorder %s61, %s64
      %p73 = scmp.eq.s32.totalorder %s30, 1
      %p74 = por %p72, %p73
      %p75 = scmp.ne.s32.totalorder %s64, %s65
      %p76 = scmp.eq.s32.totalorder %s30, 0
      %p77 = por %p75, %p76
      %p78 = scmp.ne.s32.totalorder %s64, %s65
      %p79 = scmp.eq.s32.totalorder %s31, 1
      %p80 = por %p78, %p79
      %p82 = scmp.ne.s32.totalorder %s65, %s81
      %p83 = scmp.eq.s32.totalorder %s31, 0
      %p84 = por %p82, %p83
      %s86 = sadd.s32 %s85, 1
      %p89 = scmp.eq.s32.totalorder %s25, 1
      %p90 = scmp.ne.s32.totalorder %s85, %s87
      %p91 = scmp.eq.s32.totalorder %s25, 0
      %p92 = por %p90, %p91
      %p93 = scmp.ne.s32.totalorder %s85, %s87
      %p94 = scmp.eq.s32.totalorder %s30, 1
      %p95 = por %p93, %p94
      %p96 = scmp.ne.s32.totalorder %s87, %s88
      %p97 = scmp.eq.s32.totalorder %s30, 0
      %p98 = por %p96, %p97
      %p99 = scmp.ne.s32.totalorder %s87, %s88
      %p100 = scmp.eq.s32.totalorder %s31, 1
      %p101 = por %p99, %p100
      %p103 = scmp.ne.s32.totalorder %s88, %s102
      %p104 = scmp.eq.s32.totalorder %s31, 0
      %p105 = por %p103, %p104
      %s107 = sadd.s32 %s106, 1
      %p110 = scmp.eq.s32.totalorder %s25, 1
      %p111 = scmp.ne.s32.totalorder %s106, %s108
      %p112 = scmp.eq.s32.totalorder %s25, 0
      %p113 = por %p111, %p112
      %p114 = scmp.ne.s32.totalorder %s106, %s108
      %p115 = scmp.eq.s32.totalorder %s30, 1
      %p116 = por %p114, %p115
      %p117 = scmp.ne.s32.totalorder %s108, %s109
      %p118 = scmp.eq.s32.totalorder %s30, 0
      %p119 = por %p117, %p118
      %p120 = scmp.ne.s32.totalorder %s108, %s109
      %p121 = scmp.eq.s32.totalorder %s31, 1
      %p122 = por %p120, %p121
      %p124 = scmp.ne.s32.totalorder %s109, %s123
      %p125 = scmp.eq.s32.totalorder %s31, 0
      %p126 = por %p124, %p125
      %s128 = sadd.s32 %s127, 1
      %p131 = scmp.eq.s32.totalorder %s25, 1
      %p132 = scmp.ne.s32.totalorder %s127, %s129
      %p133 = scmp.eq.s32.totalorder %s25, 0
      %p134 = por %p132, %p133
      %p135 = scmp.ne.s32.totalorder %s127, %s129
      %p136 = scmp.eq.s32.totalorder %s30, 1
      %p137 = por %p135, %p136
      %p138 = scmp.ne.s32.totalorder %s129, %s130
      %p139 = scmp.eq.s32.totalorder %s30, 0
      %p140 = por %p138, %p139
      %p141 = scmp.ne.s32.totalorder %s129, %s130
      %p142 = scmp.eq.s32.totalorder %s31, 1
      %p143 = por %p141, %p142
      %p145 = scmp.ne.s32.totalorder %s130, %s144
      %p146 = scmp.eq.s32.totalorder %s31, 0
      %p147 = por %p145, %p146
      %s149 = sadd.s32 %s148, 1
      %p152 = scmp.eq.s32.totalorder %s25, 1
      %p153 = scmp.ne.s32.totalorder %s148, %s150
      %p154 = scmp.eq.s32.totalorder %s25, 0
      %p155 = por %p153, %p154
      %p156 = scmp.ne.s32.totalorder %s148, %s150
      %p157 = scmp.eq.s32.totalorder %s30, 1
      %p158 = por %p156, %p157
      %p159 = scmp.ne.s32.totalorder %s150, %s151
      %p160 = scmp.eq.s32.totalorder %s30, 0
      %p161 = por %p159, %p160
      %p162 = scmp.ne.s32.totalorder %s150, %s151
      %p163 = scmp.eq.s32.totalorder %s31, 1
      %p164 = por %p162, %p163
      %p166 = scmp.ne.s32.totalorder %s151, %s165
      %p167 = scmp.eq.s32.totalorder %s31, 0
      %p168 = por %p166, %p167
      %s170 = sadd.s32 %s169, 1
      %p173 = scmp.eq.s32.totalorder %s25, 1
      %p174 = scmp.ne.s32.totalorder %s169, %s171
      %p175 = scmp.eq.s32.totalorder %s25, 0
      %p176 = por %p174, %p175
      %p177 = scmp.ne.s32.totalorder %s169, %s171
      %p178 = scmp.eq.s32.totalorder %s30, 1
      %p179 = por %p177, %p178
      %p180 = scmp.ne.s32.totalorder %s171, %s172
      %p181 = scmp.eq.s32.totalorder %s30, 0
      %p182 = por %p180, %p181
      %p183 = scmp.ne.s32.totalorder %s171, %s172
      %p184 = scmp.eq.s32.totalorder %s31, 1
      %p185 = por %p183, %p184
      %p187 = scmp.ne.s32.totalorder %s172, %s186
      %p188 = scmp.eq.s32.totalorder %s31, 0
      %p189 = por %p187, %p188
      %s191 = sadd.s32 %s190, 1
      %p194 = scmp.eq.s32.totalorder %s25, 1
      %p195 = scmp.ne.s32.totalorder %s190, %s192
      %p196 = scmp.eq.s32.totalorder %s25, 0
      %p197 = por %p195, %p196
      %p198 = scmp.ne.s32.totalorder %s190, %s192
      %p199 = scmp.eq.s32.totalorder %s30, 1
      %p200 = por %p198, %p199
      %p201 = scmp.ne.s32.totalorder %s192, %s193
      %p202 = scmp.eq.s32.totalorder %s30, 0
      %p203 = por %p201, %p202
      %p204 = scmp.ne.s32.totalorder %s192, %s193
      %p205 = scmp.eq.s32.totalorder %s31, 1
      %p206 = por %p204, %p205
      %p208 = scmp.ne.s32.totalorder %s193, %s207
      %p209 = scmp.eq.s32.totalorder %s31, 0
      %p210 = por %p208, %p209
      %s212 = sadd.s32 %s211, 1
      %p215 = scmp.eq.s32.totalorder %s25, 1
      %p216 = scmp.ne.s32.totalorder %s211, %s213
      %p217 = scmp.eq.s32.totalorder %s25, 0
      %p218 = por %p216, %p217
      %p219 = scmp.ne.s32.totalorder %s211, %s213
      %p220 = scmp.eq.s32.totalorder %s30, 1
      %p221 = por %p219, %p220
      %p222 = scmp.ne.s32.totalorder %s213, %s214
      %p223 = scmp.eq.s32.totalorder %s30, 0
      %p224 = por %p222, %p223
      %p225 = scmp.ne.s32.totalorder %s213, %s214
      %p226 = scmp.eq.s32.totalorder %s31, 1
      %p227 = por %p225, %p226
      %p229 = scmp.ne.s32.totalorder %s214, %s228
      %p230 = scmp.eq.s32.totalorder %s31, 0
      %p231 = por %p229, %p230
      %s233 = sadd.s32 %s232, 1
      %p236 = scmp.eq.s32.totalorder %s25, 1
      %p237 = scmp.ne.s32.totalorder %s232, %s234
      %p238 = scmp.eq.s32.totalorder %s25, 0
      %p239 = por %p237, %p238
      %p240 = scmp.ne.s32.totalorder %s232, %s234
      %p241 = scmp.eq.s32.totalorder %s30, 1
      %p242 = por %p240, %p241
      %p243 = scmp.ne.s32.totalorder %s234, %s235
      %p244 = scmp.eq.s32.totalorder %s30, 0
      %p245 = por %p243, %p244
      %p246 = scmp.ne.s32.totalorder %s234, %s235
      %p247 = scmp.eq.s32.totalorder %s31, 1
      %p248 = por %p246, %p247
      %p250 = scmp.ne.s32.totalorder %s235, %s249
      %p251 = scmp.eq.s32.totalorder %s31, 0
      %p252 = por %p250, %p251
      %s254 = sadd.s32 %s253, 1
      %p257 = scmp.eq.s32.totalorder %s25, 1
      %p258 = scmp.ne.s32.totalorder %s253, %s255
      %p259 = scmp.eq.s32.totalorder %s25, 0
      %p260 = por %p258, %p259
      %p261 = scmp.ne.s32.totalorder %s253, %s255
      %p262 = scmp.eq.s32.totalorder %s30, 1
      %p263 = por %p261, %p262
      %p264 = scmp.ne.s32.totalorder %s255, %s256
      %p265 = scmp.eq.s32.totalorder %s30, 0
      %p266 = por %p264, %p265
      %p267 = scmp.ne.s32.totalorder %s255, %s256
      %p268 = scmp.eq.s32.totalorder %s31, 1
      %p269 = por %p267, %p268
      %p271 = scmp.ne.s32.totalorder %s256, %s270
      %p272 = scmp.eq.s32.totalorder %s31, 0
      %p273 = por %p271, %p272
      %s275 = sadd.s32 %s274, 1
      %p278 = scmp.eq.s32.totalorder %s25, 1
      %p279 = scmp.ne.s32.totalorder %s274, %s276
      %p280 = scmp.eq.s32.totalorder %s25, 0
      %p281 = por %p279, %p280
      %p282 = scmp.ne.s32.totalorder %s274, %s276
      %p283 = scmp.eq.s32.totalorder %s30, 1
      %p284 = por %p282, %p283
      %p285 = scmp.ne.s32.totalorder %s276, %s277
      %p286 = scmp.eq.s32.totalorder %s30, 0
      %p287 = por %p285, %p286
      %p288 = scmp.ne.s32.totalorder %s276, %s277
      %p289 = scmp.eq.s32.totalorder %s31, 1
      %p290 = por %p288, %p289
      %p292 = scmp.ne.s32.totalorder %s277, %s291
      %p293 = scmp.eq.s32.totalorder %s31, 0
      %p294 = por %p292, %p293
      %s296 = sadd.s32 %s295, 1
      %p299 = scmp.eq.s32.totalorder %s25, 1
      %p300 = scmp.ne.s32.totalorder %s295, %s297
      %p301 = scmp.eq.s32.totalorder %s25, 0
      %p302 = por %p300, %p301
      %p303 = scmp.ne.s32.totalorder %s295, %s297
      %p304 = scmp.eq.s32.totalorder %s30, 1
      %p305 = por %p303, %p304
      %p306 = scmp.ne.s32.totalorder %s297, %s298
      %p307 = scmp.eq.s32.totalorder %s30, 0
      %p308 = por %p306, %p307
      %p309 = scmp.ne.s32.totalorder %s297, %s298
      %p310 = scmp.eq.s32.totalorder %s31, 1
      %p311 = por %p309, %p310
      %p313 = scmp.ne.s32.totalorder %s298, %s312
      %p314 = scmp.eq.s32.totalorder %s31, 0
      %p315 = por %p313, %p314
      %s317 = sadd.s32 %s316, 1
      %p320 = scmp.eq.s32.totalorder %s25, 1
      %p321 = scmp.ne.s32.totalorder %s316, %s318
      %p322 = scmp.eq.s32.totalorder %s25, 0
      %p323 = por %p321, %p322
      %p324 = scmp.ne.s32.totalorder %s316, %s318
      %p325 = scmp.eq.s32.totalorder %s30, 1
      %p326 = por %p324, %p325
      %p327 = scmp.ne.s32.totalorder %s318, %s319
      %p328 = scmp.eq.s32.totalorder %s30, 0
      %p329 = por %p327, %p328
      %p330 = scmp.ne.s32.totalorder %s318, %s319
      %p331 = scmp.eq.s32.totalorder %s31, 1
      %p332 = por %p330, %p331
      %p334 = scmp.ne.s32.totalorder %s319, %s333
      %p335 = scmp.eq.s32.totalorder %s31, 0
      %p336 = por %p334, %p335
      %s338 = sadd.s32 %s337, 1
      %p341 = scmp.eq.s32.totalorder %s25, 1
      %p342 = scmp.ne.s32.totalorder %s337, %s339
      %p343 = scmp.eq.s32.totalorder %s25, 0
      %p344 = por %p342, %p343
      %p345 = scmp.ne.s32.totalorder %s337, %s339
      %p346 = scmp.eq.s32.totalorder %s30, 1
      %p347 = por %p345, %p346
      %p348 = scmp.ne.s32.totalorder %s339, %s340
      %p349 = scmp.eq.s32.totalorder %s30, 0
      %p350 = por %p348, %p349
      %p351 = scmp.ne.s32.totalorder %s339, %s340
      %p352 = scmp.eq.s32.totalorder %s31, 1
      %p353 = por %p351, %p352
      %p355 = scmp.ne.s32.totalorder %s340, %s354
      %p356 = scmp.eq.s32.totalorder %s31, 0
      %p357 = por %p355, %p356
      %s359 = sadd.s32 %s358, 1
      %p362 = scmp.eq.s32.totalorder %s25, 1
      %p363 = scmp.ne.s32.totalorder %s358, %s360
      %p364 = scmp.eq.s32.totalorder %s25, 0
      %p365 = por %p363, %p364
      %p366 = scmp.ne.s32.totalorder %s358, %s360
      %p367 = scmp.eq.s32.totalorder %s30, 1
      %p368 = por %p366, %p367
      %p369 = scmp.ne.s32.totalorder %s360, %s361
      %p370 = scmp.eq.s32.totalorder %s30, 0
      %p371 = por %p369, %p370
      %p372 = scmp.ne.s32.totalorder %s360, %s361
      %p373 = scmp.eq.s32.totalorder %s31, 1
      %p374 = por %p372, %p373
      %p376 = scmp.ne.s32.totalorder %s361, %s375
      %p377 = scmp.eq.s32.totalorder %s31, 0
      %p378 = por %p376, %p377
      %s379 = ssub.s32 %s25, %s32
      %p380 = scmp.eq.s32.totalorder %s379, 0
      %s382 = sadd.s32 %s381, 1
      %s383 = scalar_select %p380, %s381, %s382
      %p386 = pneg %p380
      %p387 = scmp.eq.s32.totalorder %s25, 1
      %p388 = por %p386, %p387
      %p389 = scmp.ne.s32.totalorder %s381, %s384
      %p390 = scmp.eq.s32.totalorder %s25, 0
      %p391 = por %p389, %p390
      %p392 = scmp.ne.s32.totalorder %s381, %s384
      %p393 = scmp.eq.s32.totalorder %s30, 1
      %p394 = por %p392, %p393
      %p395 = scmp.ne.s32.totalorder %s384, %s385
      %p396 = scmp.eq.s32.totalorder %s30, 0
      %p397 = por %p395, %p396
      %p398 = scmp.ne.s32.totalorder %s384, %s385
      %p399 = scmp.eq.s32.totalorder %s31, 1
      %p400 = por %p398, %p399
      %p402 = scmp.ne.s32.totalorder %s385, %s401
      %p403 = scmp.eq.s32.totalorder %s31, 0
      %p404 = por %p402, %p403
      %p405 = scmp.le.s32.totalorder 1, %s25
      %p406 = scmp.lt.s32.totalorder %s25, 3
      %p407 = pnand %p405, %p406
      %p408 = pneg %p407
      // Predicated region
      $region9: #{attention_guidance_block.1} parent=5 // pred_check
        _
      $region10: #{attention_guidance_block.1} parent=5 // pred_check_branch
        %410 = sbr.rel (%p407) target = $region12
      $region11: #{attention_guidance_block.1} parent=5 // pred_region
        %s411 = ssub.s32 %s25, 1
        // Predicated region
        $region13: #{attention_guidance_block.1} parent=11 // pred_check
          %p412 = pneg %p98
        $region14: #{attention_guidance_block.1} parent=11 // pred_check_branch
          %414 = sbr.rel (%p412) target = $region16
        $region15: #{attention_guidance_block.1} parent=11 // pred_region
          _
        $region16: #{attention_guidance_block.1} parent=11 // pred_fallthru
          _
        // Predicated region
        $region17: #{attention_guidance_block.1} parent=11 // pred_check
          %p415 = pneg %p119
        $region18: #{attention_guidance_block.1} parent=11 // pred_check_branch
          %417 = sbr.rel (%p415) target = $region20
        $region19: #{attention_guidance_block.1} parent=11 // pred_region
          _
        $region20: #{attention_guidance_block.1} parent=11 // pred_fallthru
          _
        // Predicated region
        $region21: #{attention_guidance_block.1} parent=11 // pred_check
          %p418 = pneg %p140
        $region22: #{attention_guidance_block.1} parent=11 // pred_check_branch
          %420 = sbr.rel (%p418) target = $region24
        $region23: #{attention_guidance_block.1} parent=11 // pred_region
          _
        $region24: #{attention_guidance_block.1} parent=11 // pred_fallthru
          _
        // Predicated region
        $region25: #{attention_guidance_block.1} parent=11 // pred_check
          %p421 = pneg %p161
        $region26: #{attention_guidance_block.1} parent=11 // pred_check_branch
          %423 = sbr.rel (%p421) target = $region28
        $region27: #{attention_guidance_block.1} parent=11 // pred_region
          _
        $region28: #{attention_guidance_block.1} parent=11 // pred_fallthru
          _
        // Predicated region
        $region29: #{attention_guidance_block.1} parent=11 // pred_check
          %p424 = pneg %p182
        $region30: #{attention_guidance_block.1} parent=11 // pred_check_branch
          %426 = sbr.rel (%p424) target = $region32
        $region31: #{attention_guidance_block.1} parent=11 // pred_region
          _
        $region32: #{attention_guidance_block.1} parent=11 // pred_fallthru
          _
        // Predicated region
        $region33: #{attention_guidance_block.1} parent=11 // pred_check
          %p427 = pneg %p203
        $region34: #{attention_guidance_block.1} parent=11 // pred_check_branch
          %429 = sbr.rel (%p427) target = $region36
        $region35: #{attention_guidance_block.1} parent=11 // pred_region
          _
        $region36: #{attention_guidance_block.1} parent=11 // pred_fallthru
          _
        // Predicated region
        $region37: #{attention_guidance_block.1} parent=11 // pred_check
          %p430 = pneg %p224
        $region38: #{attention_guidance_block.1} parent=11 // pred_check_branch
          %432 = sbr.rel (%p430) target = $region40
        $region39: #{attention_guidance_block.1} parent=11 // pred_region
          _
        $region40: #{attention_guidance_block.1} parent=11 // pred_fallthru
          _
        // Predicated region
        $region41: #{attention_guidance_block.1} parent=11 // pred_check
          %p433 = pneg %p245
        $region42: #{attention_guidance_block.1} parent=11 // pred_check_branch
          %435 = sbr.rel (%p433) target = $region44
        $region43: #{attention_guidance_block.1} parent=11 // pred_region
          _
        $region44: #{attention_guidance_block.1} parent=11 // pred_fallthru
          _
        // Predicated region
        $region45: #{attention_guidance_block.1} parent=11 // pred_check
          %p436 = pneg %p266
        $region46: #{attention_guidance_block.1} parent=11 // pred_check_branch
          %438 = sbr.rel (%p436) target = $region48
        $region47: #{attention_guidance_block.1} parent=11 // pred_region
          _
        $region48: #{attention_guidance_block.1} parent=11 // pred_fallthru
          _
        // Predicated region
        $region49: #{attention_guidance_block.1} parent=11 // pred_check
          %p439 = pneg %p287
        $region50: #{attention_guidance_block.1} parent=11 // pred_check_branch
          %441 = sbr.rel (%p439) target = $region52
        $region51: #{attention_guidance_block.1} parent=11 // pred_region
          _
        $region52: #{attention_guidance_block.1} parent=11 // pred_fallthru
          _
        // Predicated region
        $region53: #{attention_guidance_block.1} parent=11 // pred_check
          %p442 = pneg %p308
        $region54: #{attention_guidance_block.1} parent=11 // pred_check_branch
          %444 = sbr.rel (%p442) target = $region56
        $region55: #{attention_guidance_block.1} parent=11 // pred_region
          _
        $region56: #{attention_guidance_block.1} parent=11 // pred_fallthru
          _
        // Predicated region
        $region57: #{attention_guidance_block.1} parent=11 // pred_check
          %p445 = pneg %p329
        $region58: #{attention_guidance_block.1} parent=11 // pred_check_branch
          %447 = sbr.rel (%p445) target = $region60
        $region59: #{attention_guidance_block.1} parent=11 // pred_region
          _
        $region60: #{attention_guidance_block.1} parent=11 // pred_fallthru
          _
        // Predicated region
        $region61: #{attention_guidance_block.1} parent=11 // pred_check
          %p448 = pneg %p350
        $region62: #{attention_guidance_block.1} parent=11 // pred_check_branch
          %450 = sbr.rel (%p448) target = $region64
        $region63: #{attention_guidance_block.1} parent=11 // pred_region
          _
        $region64: #{attention_guidance_block.1} parent=11 // pred_fallthru
          _
        // Predicated region
        $region65: #{attention_guidance_block.1} parent=11 // pred_check
          %p451 = pneg %p371
        $region66: #{attention_guidance_block.1} parent=11 // pred_check_branch
          %453 = sbr.rel (%p451) target = $region68
        $region67: #{attention_guidance_block.1} parent=11 // pred_region
          _
        $region68: #{attention_guidance_block.1} parent=11 // pred_fallthru
          _
      $region12: #{attention_guidance_block.1} parent=5 // pred_fallthru
        _
      %p454 = scmp.lt.s32.totalorder %s25, 2
      // Predicated region
      $region69: #{attention_guidance_block.1} parent=5 // pred_check
        %p455 = pneg %p454
      $region70: #{attention_guidance_block.1} parent=5 // pred_check_branch
        %457 = sbr.rel (%p455) target = $region72
      $region71: #{attention_guidance_block.1} parent=5 // pred_region
        // Predicated region
        $region73: #{attention_guidance_block.1} parent=71 // pred_check
          %p458 = pneg %p45
        $region74: #{attention_guidance_block.1} parent=71 // pred_check_branch
          %460 = sbr.rel (%p458) target = $region76
        $region75: #{attention_guidance_block.1} parent=71 // pred_region
          %p461 = scmp.lt.s32.totalorder %s25, 1
          %s462 = scalar_select %p461, %s25, 1
          %s463 = smul.addr %s462, 8
          %s464 = smul.addr %s463, 8
          %s465 = scalar_lea.vmem %s0, %s464
        $region76: #{attention_guidance_block.1} parent=71 // pred_fallthru
          _
        // Predicated region
        $region77: #{attention_guidance_block.1} parent=71 // pred_check
          %p466 = pneg %p71
        $region78: #{attention_guidance_block.1} parent=71 // pred_check_branch
          %468 = sbr.rel (%p466) target = $region80
        $region79: #{attention_guidance_block.1} parent=71 // pred_region
          %p469 = scmp.lt.s32.totalorder %s25, 1
          %s470 = scalar_select %p469, %s25, 1
          %s471 = smul.addr %s470, 2
          %s472 = scalar_lea.vmem %s1, %s471
        $region80: #{attention_guidance_block.1} parent=71 // pred_fallthru
          _
      $region72: #{attention_guidance_block.1} parent=5 // pred_fallthru
        _
      %p473 = scmp.le.s32.totalorder 1, %s25
      %p474 = scmp.lt.s32.totalorder %s25, 3
      %p475 = pnand %p473, %p474
      %p476 = pneg %p475
      // Predicated region
      $region81: #{attention_guidance_block.1} parent=5 // pred_check
        _
      $region82: #{attention_guidance_block.1} parent=5 // pred_check_branch
        %478 = sbr.rel (%p475) target = $region84
      $region83: #{attention_guidance_block.1} parent=5 // pred_region
        %s479 = ssub.s32 %s25, 1
        %p480 = scmp.lt.s32.totalorder %s30, 1
        %s481 = scalar_select %p480, %s30, 1
        %s482 = smul.addr %s481, 8
        %s483 = smul.addr %s482, 8
        %s484 = scalar_lea.vmem %s0, %s483
        %p485 = pneg %p51
        %p486 = pneg %p48
        %p487 = scmp.lt.s32.totalorder %s30, 1
        %s488 = scalar_select %p487, %s30, 1
        %s489 = smul.addr %s488, 2
        %s490 = scalar_lea.vmem %s1, %s489
        %p491 = pneg %p77
        %p492 = pneg %p74
        %p493 = pneg %p98
        %p494 = pneg %p95
        %p495 = pneg %p119
        %p496 = pneg %p116
        %p497 = pneg %p140
        %p498 = pneg %p137
        %p499 = pneg %p161
        %p500 = pneg %p158
        %p501 = pneg %p182
        %p502 = pneg %p179
        %p503 = pneg %p203
        %p504 = pneg %p200
        %p505 = pneg %p224
        %p506 = pneg %p221
        %p507 = pneg %p245
        %p508 = pneg %p242
        %p509 = pneg %p266
        %p510 = pneg %p263
        %p511 = pneg %p287
        %p512 = pneg %p284
        %p513 = pneg %p308
        %p514 = pneg %p305
        %p515 = pneg %p329
        %p516 = pneg %p326
        %p517 = pneg %p350
        %p518 = pneg %p347
        %p519 = pneg %p371
        %p520 = pneg %p368
        %p521 = pneg %p397
        %p522 = pneg %p394
        %s523 = sand.u32 %s384, 1
        %s524 = scalar_lea.sflag [#allocation3], %s523
        %s525 = sand.u32 %s384, 1
        %s526 = smul.addr %s525, 64
        %s527 = scalar_lea.vmem [#allocation2], %s526
        %p528 = scmp.lt.s32.totalorder %s30, 1
        %s529 = scalar_select %p528, %s30, 1
        %s530 = smul.addr %s529, 8
        %s531 = smul.addr %s530, 8
        %s532 = scalar_lea.vmem %s0, %s531
        %p533 = scmp.lt.s32.totalorder %s30, 1
        %s534 = scalar_select %p533, %s30, 1
        %s535 = smul.addr %s534, 2
        %s536 = scalar_lea.vmem %s1, %s535
        %v538 = vld [vmem:[%s532] sm:$0xff]
        %v539 = vld [vmem:[%s532 + $0x8] sm:$0xff]
        %v540 = vld [vmem:[%s532 + $0x10] sm:$0xff]
        %v541 = vld [vmem:[%s532 + $0x18] sm:$0xff]
        %v542 = vld [vmem:[%s532 + $0x20] sm:$0xff]
        %v543 = vld [vmem:[%s532 + $0x28] sm:$0xff]
        %v544 = vld [vmem:[%s532 + $0x30] sm:$0xff]
        %v545 = vld [vmem:[%s532 + $0x38] sm:$0xff]
        %v546 = vlaneseq
        %v547 = vshrl.u32 %v546, 7
        %v548 = vadd.s32 %v547, 8
        %v549 = vadd.s32 %v547, 16
        %v550 = vadd.s32 %v547, 24
        %v551 = vadd.s32 %v547, 32
        %v552 = vadd.s32 %v547, 40
        %v553 = vadd.s32 %v547, 48
        %v554 = vadd.s32 %v547, 56
        %v555 = vcvt.s32.f32 %v547
        %v556 = vcvt.s32.f32 %v548
        %v557 = vcvt.s32.f32 %v549
        %v558 = vcvt.s32.f32 %v550
        %v559 = vcvt.s32.f32 %v551
        %v560 = vcvt.s32.f32 %v552
        %v561 = vcvt.s32.f32 %v553
        %v562 = vcvt.s32.f32 %v554
        %v563 = vadd.f32 %v555, 0.5
        %v564 = vadd.f32 %v556, 0.5
        %v565 = vadd.f32 %v557, 0.5
        %v566 = vadd.f32 %v558, 0.5
        %v567 = vadd.f32 %v559, 0.5
        %v568 = vadd.f32 %v560, 0.5
        %v569 = vadd.f32 %v561, 0.5
        %v570 = vadd.f32 %v562, 0.5
        %v571 = vrcp.pop 8.0
        %v572 = vmul.f32 8.0, %v571
        %v573 = vsub.f32 1.0, %v572
        %v574 = vmul.f32 %v571, %v573
        %v575 = vadd.f32 %v571, %v574
        %vm576 = vweird.f32 %v571
        %v577 = vsel %vm576, %v571, %v575
        %v578 = vmul.f32 %v563, %v577
        %v579 = vmul.f32 %v564, %v577
        %v580 = vmul.f32 %v565, %v577
        %v581 = vmul.f32 %v566, %v577
        %v582 = vmul.f32 %v567, %v577
        %v583 = vmul.f32 %v568, %v577
        %v584 = vmul.f32 %v569, %v577
        %v585 = vmul.f32 %v570, %v577
        %v586 = vcvt.f32.s32.to.zero.pseudo %v578
        %v587 = vcvt.f32.s32.to.zero.pseudo %v579
        %v588 = vcvt.f32.s32.to.zero.pseudo %v580
        %v589 = vcvt.f32.s32.to.zero.pseudo %v581
        %v590 = vcvt.f32.s32.to.zero.pseudo %v582
        %v591 = vcvt.f32.s32.to.zero.pseudo %v583
        %v592 = vcvt.f32.s32.to.zero.pseudo %v584
        %v593 = vcvt.f32.s32.to.zero.pseudo %v585
        %v594 = vmul.u32 %v586, 8
        %v595 = vmul.u32 %v587, 8
        %v596 = vmul.u32 %v588, 8
        %v597 = vmul.u32 %v589, 8
        %v598 = vmul.u32 %v590, 8
        %v599 = vmul.u32 %v591, 8
        %v600 = vmul.u32 %v592, 8
        %v601 = vmul.u32 %v593, 8
        %v602 = vsub.s32 %v547, %v594
        %v603 = vsub.s32 %v548, %v595
        %v604 = vsub.s32 %v549, %v596
        %v605 = vsub.s32 %v550, %v597
        %v606 = vsub.s32 %v551, %v598
        %v607 = vsub.s32 %v552, %v599
        %v608 = vsub.s32 %v553, %v600
        %v609 = vsub.s32 %v554, %v601
        %v610 = vld [vmem:[%s2] sm:$0x1]
        %v611 = vld [vmem:[%s3] sm:$0x1]
        %v612 = vld [vmem:[%s4] sm:$0xff]
        %v613 = vld [vmem:[%s4 + $0x8] sm:$0xff]
        %v614 = vld [vmem:[%s4 + $0x10] sm:$0xff]
        %v615 = vld [vmem:[%s4 + $0x18] sm:$0xff]
        %vm616 = vcmask 261120
        %v617 = vsel %vm616, %v538, 0.0
        %v618 = vsel %vm616, %v539, 0.0
        %v619 = vadd.f32 %v617, %v618
        %v620 = vsel %vm616, %v540, 0.0
        %v621 = vadd.f32 %v619, %v620
        %v622 = vsel %vm616, %v541, 0.0
        %v623 = vadd.f32 %v621, %v622
        %v624 = vsel %vm616, %v542, 0.0
        %v625 = vadd.f32 %v623, %v624
        %v626 = vsel %vm616, %v543, 0.0
        %v627 = vadd.f32 %v625, %v626
        %v628 = vsel %vm616, %v544, 0.0
        %v629 = vadd.f32 %v627, %v628
        %v630 = vsel %vm616, %v545, 0.0
        %v631 = vadd.f32 %v629, %v630
        %v632 = vrot.slane %v631, 4
        %v633 = vadd.f32 %v631, %v632
        %v634 = vrot.slane %v633, 2
        %v635 = vadd.f32 %v633, %v634
        %v636 = vrot.slane %v635, 1
        %v637 = vadd.f32 %v635, %v636
        %v639 = vsel %vm616, %v637, 0
        %641 = vmatpush.msra.mxu0 0.0
        %642 = vmatpush.msra.mxu0 0.0
        %643 = vmatpush.msra.mxu0 0.0
        %644 = vmatpush.msra.mxu0 0.0
        %645 = vmatpush.msra.mxu0 0.0
        %646 = vmatpush.msra.mxu0 0.0
        %647 = vmatpush.msra.mxu0 0.0
        %648 = vmatpush.msra.mxu0 0.0
        %649 = vmatpush.msra.mxu0 0.0
        %650 = vmatpush.msra.mxu0 0.0
        %651 = vmatpush.msra.mxu0 0.0
        %652 = vmatpush.msra.mxu0 0.0
        %v653 = vand.u32 %v615, 4294901760
        %654 = vmatpush.msra.mxu0 %v653
        %v655 = vand.u32 %v614, 4294901760
        %656 = vmatpush.msra.mxu0 %v655
        %v657 = vand.u32 %v613, 4294901760
        %658 = vmatpush.msra.mxu0 %v657
        %v659 = vand.u32 %v612, 4294901760
        %660 = vmatpush.msra.mxu0 %v659
        %v661 = vand.u32 %v639, 4294901760
        %v662 = vsub.f32 %v639, %v661
        %v663 = vand.u32 %v662, 4294901760
        %v664 = vsub.f32 %v662, %v663
        %v665 = vand.u32 %v664, 4294901760
        %666 = vmatmul.f32.gmra.mxu0 %v665
        %v667 = vpop.f32.mrf.mxu0
        %v668 = vadd.f32 0.0, %v667
        %669 = vdwg.mxu0
        %670 = vmatpush.msra.mxu0 0.0
        %671 = vmatpush.msra.mxu0 0.0
        %672 = vmatpush.msra.mxu0 0.0
        %673 = vmatpush.msra.mxu0 0.0
        %674 = vmatpush.msra.mxu0 0.0
        %675 = vmatpush.msra.mxu0 0.0
        %676 = vmatpush.msra.mxu0 0.0
        %677 = vmatpush.msra.mxu0 0.0
        %678 = vmatpush.msra.mxu0 0.0
        %679 = vmatpush.msra.mxu0 0.0
        %680 = vmatpush.msra.mxu0 0.0
        %681 = vmatpush.msra.mxu0 0.0
        %v682 = vand.u32 %v615, 4294901760
        %v683 = vsub.f32 %v615, %v682
        %v684 = vand.u32 %v683, 4294901760
        %v685 = vsub.f32 %v683, %v684
        %v686 = vand.u32 %v685, 4294901760
        %687 = vmatpush.msra.mxu0 %v686
        %v688 = vand.u32 %v614, 4294901760
        %v689 = vsub.f32 %v614, %v688
        %v690 = vand.u32 %v689, 4294901760
        %v691 = vsub.f32 %v689, %v690
        %v692 = vand.u32 %v691, 4294901760
        %693 = vmatpush.msra.mxu0 %v692
        %v694 = vand.u32 %v613, 4294901760
        %v695 = vsub.f32 %v613, %v694
        %v696 = vand.u32 %v695, 4294901760
        %v697 = vsub.f32 %v695, %v696
        %v698 = vand.u32 %v697, 4294901760
        %699 = vmatpush.msra.mxu0 %v698
        %v700 = vand.u32 %v612, 4294901760
        %v701 = vsub.f32 %v612, %v700
        %v702 = vand.u32 %v701, 4294901760
        %v703 = vsub.f32 %v701, %v702
        %v704 = vand.u32 %v703, 4294901760
        %705 = vmatpush.msra.mxu0 %v704
        %v706 = vand.u32 %v639, 4294901760
        %707 = vmatmul.f32.gmra.mxu0 %v706
        %v708 = vpop.f32.mrf.mxu0
        %v709 = vadd.f32 %v668, %v708
        %710 = vdwg.mxu0
        %711 = vmatpush.msra.mxu0 0.0
        %712 = vmatpush.msra.mxu0 0.0
        %713 = vmatpush.msra.mxu0 0.0
        %714 = vmatpush.msra.mxu0 0.0
        %715 = vmatpush.msra.mxu0 0.0
        %716 = vmatpush.msra.mxu0 0.0
        %717 = vmatpush.msra.mxu0 0.0
        %718 = vmatpush.msra.mxu0 0.0
        %719 = vmatpush.msra.mxu0 0.0
        %720 = vmatpush.msra.mxu0 0.0
        %721 = vmatpush.msra.mxu0 0.0
        %722 = vmatpush.msra.mxu0 0.0
        %v723 = vand.u32 %v615, 4294901760
        %v724 = vsub.f32 %v615, %v723
        %725 = vmatpush.msra.mxu0 %v724
        %v726 = vand.u32 %v614, 4294901760
        %v727 = vsub.f32 %v614, %v726
        %728 = vmatpush.msra.mxu0 %v727
        %v729 = vand.u32 %v613, 4294901760
        %v730 = vsub.f32 %v613, %v729
        %731 = vmatpush.msra.mxu0 %v730
        %v732 = vand.u32 %v612, 4294901760
        %v733 = vsub.f32 %v612, %v732
        %734 = vmatpush.msra.mxu0 %v733
        %v735 = vand.u32 %v639, 4294901760
        %v736 = vsub.f32 %v639, %v735
        %737 = vmatmul.f32.gmra.mxu0 %v736
        %v738 = vpop.f32.mrf.mxu0
        %v739 = vadd.f32 %v709, %v738
        %740 = vdwg.mxu0
        %741 = vmatpush.msra.mxu0 0.0
        %742 = vmatpush.msra.mxu0 0.0
        %743 = vmatpush.msra.mxu0 0.0
        %744 = vmatpush.msra.mxu0 0.0
        %745 = vmatpush.msra.mxu0 0.0
        %746 = vmatpush.msra.mxu0 0.0
        %747 = vmatpush.msra.mxu0 0.0
        %748 = vmatpush.msra.mxu0 0.0
        %749 = vmatpush.msra.mxu0 0.0
        %750 = vmatpush.msra.mxu0 0.0
        %751 = vmatpush.msra.mxu0 0.0
        %752 = vmatpush.msra.mxu0 0.0
        %v753 = vand.u32 %v615, 4294901760
        %754 = vmatpush.msra.mxu0 %v753
        %v755 = vand.u32 %v614, 4294901760
        %756 = vmatpush.msra.mxu0 %v755
        %v757 = vand.u32 %v613, 4294901760
        %758 = vmatpush.msra.mxu0 %v757
        %v759 = vand.u32 %v612, 4294901760
        %760 = vmatpush.msra.mxu0 %v759
        %v761 = vand.u32 %v639, 4294901760
        %v762 = vsub.f32 %v639, %v761
        %v763 = vand.u32 %v762, 4294901760
        %764 = vmatmul.f32.gmra.mxu0 %v763
        %v765 = vpop.f32.mrf.mxu0
        %v766 = vadd.f32 %v739, %v765
        %767 = vdwg.mxu0
        %768 = vmatpush.msra.mxu0 0.0
        %769 = vmatpush.msra.mxu0 0.0
        %770 = vmatpush.msra.mxu0 0.0
        %771 = vmatpush.msra.mxu0 0.0
        %772 = vmatpush.msra.mxu0 0.0
        %773 = vmatpush.msra.mxu0 0.0
        %774 = vmatpush.msra.mxu0 0.0
        %775 = vmatpush.msra.mxu0 0.0
        %776 = vmatpush.msra.mxu0 0.0
        %777 = vmatpush.msra.mxu0 0.0
        %778 = vmatpush.msra.mxu0 0.0
        %779 = vmatpush.msra.mxu0 0.0
        %v780 = vand.u32 %v615, 4294901760
        %v781 = vsub.f32 %v615, %v780
        %v782 = vand.u32 %v781, 4294901760
        %783 = vmatpush.msra.mxu0 %v782
        %v784 = vand.u32 %v614, 4294901760
        %v785 = vsub.f32 %v614, %v784
        %v786 = vand.u32 %v785, 4294901760
        %787 = vmatpush.msra.mxu0 %v786
        %v788 = vand.u32 %v613, 4294901760
        %v789 = vsub.f32 %v613, %v788
        %v790 = vand.u32 %v789, 4294901760
        %791 = vmatpush.msra.mxu0 %v790
        %v792 = vand.u32 %v612, 4294901760
        %v793 = vsub.f32 %v612, %v792
        %v794 = vand.u32 %v793, 4294901760
        %795 = vmatpush.msra.mxu0 %v794
        %v796 = vand.u32 %v639, 4294901760
        %797 = vmatmul.f32.gmra.mxu0 %v796
        %v798 = vpop.f32.mrf.mxu0
        %v799 = vadd.f32 %v766, %v798
        %800 = vdwg.mxu0
        %801 = vmatpush.msra.mxu0 0.0
        %802 = vmatpush.msra.mxu0 0.0
        %803 = vmatpush.msra.mxu0 0.0
        %804 = vmatpush.msra.mxu0 0.0
        %805 = vmatpush.msra.mxu0 0.0
        %806 = vmatpush.msra.mxu0 0.0
        %807 = vmatpush.msra.mxu0 0.0
        %808 = vmatpush.msra.mxu0 0.0
        %809 = vmatpush.msra.mxu0 0.0
        %810 = vmatpush.msra.mxu0 0.0
        %811 = vmatpush.msra.mxu0 0.0
        %812 = vmatpush.msra.mxu0 0.0
        %v813 = vand.u32 %v615, 4294901760
        %814 = vmatpush.msra.mxu0 %v813
        %v815 = vand.u32 %v614, 4294901760
        %816 = vmatpush.msra.mxu0 %v815
        %v817 = vand.u32 %v613, 4294901760
        %818 = vmatpush.msra.mxu0 %v817
        %v819 = vand.u32 %v612, 4294901760
        %820 = vmatpush.msra.mxu0 %v819
        %v821 = vand.u32 %v639, 4294901760
        %822 = vmatmul.f32.gmra.mxu0 %v821
        %v823 = vpop.f32.mrf.mxu0
        %v824 = vadd.f32 %v799, %v823
        %825 = vdwg.mxu0
        %v826 = vrcp.pop 256.0
        %v827 = vmul.f32 256.0, %v826
        %v828 = vsub.f32 1.0, %v827
        %v829 = vmul.f32 %v826, %v828
        %v830 = vadd.f32 %v826, %v829
        %vm831 = vweird.f32 %v826
        %v832 = vsel %vm831, %v826, %v830
        %v833 = vmul.f32 %v824, %v832
        %vm834 = vcmask 64512
        %v836 = vsel %vm834, %v833, 0
        %v839 = vsel %vm834, %v612, 0
        %v842 = vsel %vm834, %v613, 0
        %v845 = vsel %vm834, %v614, 0
        %v848 = vsel %vm834, %v615, 0
        %850 = vmatpush.xpose.msra.mxu0 0.0
        %851 = vmatpush.xpose.msra.mxu0 0.0
        %852 = vmatpush.xpose.msra.mxu0 0.0
        %853 = vmatpush.xpose.msra.mxu0 0.0
        %854 = vmatpush.xpose.msra.mxu0 0.0
        %855 = vmatpush.xpose.msra.mxu0 0.0
        %856 = vmatpush.xpose.msra.mxu0 0.0
        %857 = vmatpush.xpose.msra.mxu0 0.0
        %858 = vmatpush.xpose.msra.mxu0 0.0
        %859 = vmatpush.xpose.msra.mxu0 0.0
        %860 = vmatpush.xpose.msra.mxu0 0.0
        %861 = vmatpush.xpose.msra.mxu0 0.0
        %v862 = vand.u32 %v848, 4294901760
        %863 = vmatpush.xpose.msra.mxu0 %v862
        %v864 = vand.u32 %v845, 4294901760
        %865 = vmatpush.xpose.msra.mxu0 %v864
        %v866 = vand.u32 %v842, 4294901760
        %867 = vmatpush.xpose.msra.mxu0 %v866
        %v868 = vand.u32 %v839, 4294901760
        %869 = vmatpush.xpose.msra.mxu0 %v868
        %v870 = vand.u32 %v836, 4294901760
        %v871 = vsub.f32 %v836, %v870
        %v872 = vand.u32 %v871, 4294901760
        %v873 = vsub.f32 %v871, %v872
        %v874 = vand.u32 %v873, 4294901760
        %875 = vmatmul.f32.gmra.mxu0 %v874
        %v876 = vpop.f32.mrf.mxu0
        %v877 = vadd.f32 0.0, %v876
        %878 = vdwg.mxu0
        %879 = vmatpush.xpose.msra.mxu0 0.0
        %880 = vmatpush.xpose.msra.mxu0 0.0
        %881 = vmatpush.xpose.msra.mxu0 0.0
        %882 = vmatpush.xpose.msra.mxu0 0.0
        %883 = vmatpush.xpose.msra.mxu0 0.0
        %884 = vmatpush.xpose.msra.mxu0 0.0
        %885 = vmatpush.xpose.msra.mxu0 0.0
        %886 = vmatpush.xpose.msra.mxu0 0.0
        %887 = vmatpush.xpose.msra.mxu0 0.0
        %888 = vmatpush.xpose.msra.mxu0 0.0
        %889 = vmatpush.xpose.msra.mxu0 0.0
        %890 = vmatpush.xpose.msra.mxu0 0.0
        %v891 = vand.u32 %v848, 4294901760
        %v892 = vsub.f32 %v848, %v891
        %v893 = vand.u32 %v892, 4294901760
        %v894 = vsub.f32 %v892, %v893
        %v895 = vand.u32 %v894, 4294901760
        %896 = vmatpush.xpose.msra.mxu0 %v895
        %v897 = vand.u32 %v845, 4294901760
        %v898 = vsub.f32 %v845, %v897
        %v899 = vand.u32 %v898, 4294901760
        %v900 = vsub.f32 %v898, %v899
        %v901 = vand.u32 %v900, 4294901760
        %902 = vmatpush.xpose.msra.mxu0 %v901
        %v903 = vand.u32 %v842, 4294901760
        %v904 = vsub.f32 %v842, %v903
        %v905 = vand.u32 %v904, 4294901760
        %v906 = vsub.f32 %v904, %v905
        %v907 = vand.u32 %v906, 4294901760
        %908 = vmatpush.xpose.msra.mxu0 %v907
        %v909 = vand.u32 %v839, 4294901760
        %v910 = vsub.f32 %v839, %v909
        %v911 = vand.u32 %v910, 4294901760
        %v912 = vsub.f32 %v910, %v911
        %v913 = vand.u32 %v912, 4294901760
        %914 = vmatpush.xpose.msra.mxu0 %v913
        %v915 = vand.u32 %v836, 4294901760
        %916 = vmatmul.f32.gmra.mxu0 %v915
        %v917 = vpop.f32.mrf.mxu0
        %v918 = vadd.f32 %v877, %v917
        %919 = vdwg.mxu0
        %920 = vmatpush.xpose.msra.mxu0 0.0
        %921 = vmatpush.xpose.msra.mxu0 0.0
        %922 = vmatpush.xpose.msra.mxu0 0.0
        %923 = vmatpush.xpose.msra.mxu0 0.0
        %924 = vmatpush.xpose.msra.mxu0 0.0
        %925 = vmatpush.xpose.msra.mxu0 0.0
        %926 = vmatpush.xpose.msra.mxu0 0.0
        %927 = vmatpush.xpose.msra.mxu0 0.0
        %928 = vmatpush.xpose.msra.mxu0 0.0
        %929 = vmatpush.xpose.msra.mxu0 0.0
        %930 = vmatpush.xpose.msra.mxu0 0.0
        %931 = vmatpush.xpose.msra.mxu0 0.0
        %v932 = vand.u32 %v848, 4294901760
        %v933 = vsub.f32 %v848, %v932
        %934 = vmatpush.xpose.msra.mxu0 %v933
        %v935 = vand.u32 %v845, 4294901760
        %v936 = vsub.f32 %v845, %v935
        %937 = vmatpush.xpose.msra.mxu0 %v936
        %v938 = vand.u32 %v842, 4294901760
        %v939 = vsub.f32 %v842, %v938
        %940 = vmatpush.xpose.msra.mxu0 %v939
        %v941 = vand.u32 %v839, 4294901760
        %v942 = vsub.f32 %v839, %v941
        %943 = vmatpush.xpose.msra.mxu0 %v942
        %v944 = vand.u32 %v836, 4294901760
        %v945 = vsub.f32 %v836, %v944
        %946 = vmatmul.f32.gmra.mxu0 %v945
        %v947 = vpop.f32.mrf.mxu0
        %v948 = vadd.f32 %v918, %v947
        %949 = vdwg.mxu0
        %950 = vmatpush.xpose.msra.mxu0 0.0
        %951 = vmatpush.xpose.msra.mxu0 0.0
        %952 = vmatpush.xpose.msra.mxu0 0.0
        %953 = vmatpush.xpose.msra.mxu0 0.0
        %954 = vmatpush.xpose.msra.mxu0 0.0
        %955 = vmatpush.xpose.msra.mxu0 0.0
        %956 = vmatpush.xpose.msra.mxu0 0.0
        %957 = vmatpush.xpose.msra.mxu0 0.0
        %958 = vmatpush.xpose.msra.mxu0 0.0
        %959 = vmatpush.xpose.msra.mxu0 0.0
        %960 = vmatpush.xpose.msra.mxu0 0.0
        %961 = vmatpush.xpose.msra.mxu0 0.0
        %v962 = vand.u32 %v848, 4294901760
        %963 = vmatpush.xpose.msra.mxu0 %v962
        %v964 = vand.u32 %v845, 4294901760
        %965 = vmatpush.xpose.msra.mxu0 %v964
        %v966 = vand.u32 %v842, 4294901760
        %967 = vmatpush.xpose.msra.mxu0 %v966
        %v968 = vand.u32 %v839, 4294901760
        %969 = vmatpush.xpose.msra.mxu0 %v968
        %v970 = vand.u32 %v836, 4294901760
        %v971 = vsub.f32 %v836, %v970
        %v972 = vand.u32 %v971, 4294901760
        %973 = vmatmul.f32.gmra.mxu0 %v972
        %v974 = vpop.f32.mrf.mxu0
        %v975 = vadd.f32 %v948, %v974
        %976 = vdwg.mxu0
        %977 = vmatpush.xpose.msra.mxu0 0.0
        %978 = vmatpush.xpose.msra.mxu0 0.0
        %979 = vmatpush.xpose.msra.mxu0 0.0
        %980 = vmatpush.xpose.msra.mxu0 0.0
        %981 = vmatpush.xpose.msra.mxu0 0.0
        %982 = vmatpush.xpose.msra.mxu0 0.0
        %983 = vmatpush.xpose.msra.mxu0 0.0
        %984 = vmatpush.xpose.msra.mxu0 0.0
        %985 = vmatpush.xpose.msra.mxu0 0.0
        %986 = vmatpush.xpose.msra.mxu0 0.0
        %987 = vmatpush.xpose.msra.mxu0 0.0
        %988 = vmatpush.xpose.msra.mxu0 0.0
        %v989 = vand.u32 %v848, 4294901760
        %v990 = vsub.f32 %v848, %v989
        %v991 = vand.u32 %v990, 4294901760
        %992 = vmatpush.xpose.msra.mxu0 %v991
        %v993 = vand.u32 %v845, 4294901760
        %v994 = vsub.f32 %v845, %v993
        %v995 = vand.u32 %v994, 4294901760
        %996 = vmatpush.xpose.msra.mxu0 %v995
        %v997 = vand.u32 %v842, 4294901760
        %v998 = vsub.f32 %v842, %v997
        %v999 = vand.u32 %v998, 4294901760
        %1000 = vmatpush.xpose.msra.mxu0 %v999
        %v1001 = vand.u32 %v839, 4294901760
        %v1002 = vsub.f32 %v839, %v1001
        %v1003 = vand.u32 %v1002, 4294901760
        %1004 = vmatpush.xpose.msra.mxu0 %v1003
        %v1005 = vand.u32 %v836, 4294901760
        %1006 = vmatmul.f32.gmra.mxu0 %v1005
        %v1007 = vpop.f32.mrf.mxu0
        %v1008 = vadd.f32 %v975, %v1007
        %1009 = vdwg.mxu0
        %1010 = vmatpush.xpose.msra.mxu0 0.0
        %1011 = vmatpush.xpose.msra.mxu0 0.0
        %1012 = vmatpush.xpose.msra.mxu0 0.0
        %1013 = vmatpush.xpose.msra.mxu0 0.0
        %1014 = vmatpush.xpose.msra.mxu0 0.0
        %1015 = vmatpush.xpose.msra.mxu0 0.0
        %1016 = vmatpush.xpose.msra.mxu0 0.0
        %1017 = vmatpush.xpose.msra.mxu0 0.0
        %1018 = vmatpush.xpose.msra.mxu0 0.0
        %1019 = vmatpush.xpose.msra.mxu0 0.0
        %1020 = vmatpush.xpose.msra.mxu0 0.0
        %1021 = vmatpush.xpose.msra.mxu0 0.0
        %v1022 = vand.u32 %v848, 4294901760
        %1023 = vmatpush.xpose.msra.mxu0 %v1022
        %v1024 = vand.u32 %v845, 4294901760
        %1025 = vmatpush.xpose.msra.mxu0 %v1024
        %v1026 = vand.u32 %v842, 4294901760
        %1027 = vmatpush.xpose.msra.mxu0 %v1026
        %v1028 = vand.u32 %v839, 4294901760
        %1029 = vmatpush.xpose.msra.mxu0 %v1028
        %v1030 = vand.u32 %v836, 4294901760
        %1031 = vmatmul.f32.gmra.mxu0 %v1030
        %v1032 = vpop.f32.mrf.mxu0
        %v1033 = vadd.f32 %v1008, %v1032
        %1034 = vdwg.mxu0
        %v1035 = vperm.slane %v1033, 0
        %v1036 = vsub.f32 %v538, %v1035
        %v1037 = vsub.f32 %v539, %v1035
        %v1038 = vsub.f32 %v540, %v1035
        %v1039 = vsub.f32 %v541, %v1035
        %v1040 = vsub.f32 %v542, %v1035
        %v1041 = vsub.f32 %v543, %v1035
        %v1042 = vsub.f32 %v544, %v1035
        %v1043 = vsub.f32 %v545, %v1035
        %v1044 = vmul.f32 %v1036, %v1036
        %v1045 = vmul.f32 %v1037, %v1037
        %v1046 = vmul.f32 %v1038, %v1038
        %v1047 = vmul.f32 %v1039, %v1039
        %v1048 = vmul.f32 %v1040, %v1040
        %v1049 = vmul.f32 %v1041, %v1041
        %v1050 = vmul.f32 %v1042, %v1042
        %v1051 = vmul.f32 %v1043, %v1043
        %v1052 = vsel %vm616, %v1044, 0.0
        %v1053 = vsel %vm616, %v1045, 0.0
        %v1054 = vadd.f32 %v1052, %v1053
        %v1055 = vsel %vm616, %v1046, 0.0
        %v1056 = vadd.f32 %v1054, %v1055
        %v1057 = vsel %vm616, %v1047, 0.0
        %v1058 = vadd.f32 %v1056, %v1057
        %v1059 = vsel %vm616, %v1048, 0.0
        %v1060 = vadd.f32 %v1058, %v1059
        %v1061 = vsel %vm616, %v1049, 0.0
        %v1062 = vadd.f32 %v1060, %v1061
        %v1063 = vsel %vm616, %v1050, 0.0
        %v1064 = vadd.f32 %v1062, %v1063
        %v1065 = vsel %vm616, %v1051, 0.0
        %v1066 = vadd.f32 %v1064, %v1065
        %v1067 = vrot.slane %v1066, 4
        %v1068 = vadd.f32 %v1066, %v1067
        %v1069 = vrot.slane %v1068, 2
        %v1070 = vadd.f32 %v1068, %v1069
        %v1071 = vrot.slane %v1070, 1
        %v1072 = vadd.f32 %v1070, %v1071
        %v1074 = vsel %vm616, %v1072, 0
        %1076 = vmatpush.msra.mxu0 0.0
        %1077 = vmatpush.msra.mxu0 0.0
        %1078 = vmatpush.msra.mxu0 0.0
        %1079 = vmatpush.msra.mxu0 0.0
        %1080 = vmatpush.msra.mxu0 0.0
        %1081 = vmatpush.msra.mxu0 0.0
        %1082 = vmatpush.msra.mxu0 0.0
        %1083 = vmatpush.msra.mxu0 0.0
        %1084 = vmatpush.msra.mxu0 0.0
        %1085 = vmatpush.msra.mxu0 0.0
        %1086 = vmatpush.msra.mxu0 0.0
        %1087 = vmatpush.msra.mxu0 0.0
        %v1088 = vand.u32 %v615, 4294901760
        %1089 = vmatpush.msra.mxu0 %v1088
        %v1090 = vand.u32 %v614, 4294901760
        %1091 = vmatpush.msra.mxu0 %v1090
        %v1092 = vand.u32 %v613, 4294901760
        %1093 = vmatpush.msra.mxu0 %v1092
        %v1094 = vand.u32 %v612, 4294901760
        %1095 = vmatpush.msra.mxu0 %v1094
        %v1096 = vand.u32 %v1074, 4294901760
        %v1097 = vsub.f32 %v1074, %v1096
        %v1098 = vand.u32 %v1097, 4294901760
        %v1099 = vsub.f32 %v1097, %v1098
        %v1100 = vand.u32 %v1099, 4294901760
        %1101 = vmatmul.f32.gmra.mxu0 %v1100
        %v1102 = vpop.f32.mrf.mxu0
        %v1103 = vadd.f32 0.0, %v1102
        %1104 = vdwg.mxu0
        %1105 = vmatpush.msra.mxu0 0.0
        %1106 = vmatpush.msra.mxu0 0.0
        %1107 = vmatpush.msra.mxu0 0.0
        %1108 = vmatpush.msra.mxu0 0.0
        %1109 = vmatpush.msra.mxu0 0.0
        %1110 = vmatpush.msra.mxu0 0.0
        %1111 = vmatpush.msra.mxu0 0.0
        %1112 = vmatpush.msra.mxu0 0.0
        %1113 = vmatpush.msra.mxu0 0.0
        %1114 = vmatpush.msra.mxu0 0.0
        %1115 = vmatpush.msra.mxu0 0.0
        %1116 = vmatpush.msra.mxu0 0.0
        %v1117 = vand.u32 %v615, 4294901760
        %v1118 = vsub.f32 %v615, %v1117
        %v1119 = vand.u32 %v1118, 4294901760
        %v1120 = vsub.f32 %v1118, %v1119
        %v1121 = vand.u32 %v1120, 4294901760
        %1122 = vmatpush.msra.mxu0 %v1121
        %v1123 = vand.u32 %v614, 4294901760
        %v1124 = vsub.f32 %v614, %v1123
        %v1125 = vand.u32 %v1124, 4294901760
        %v1126 = vsub.f32 %v1124, %v1125
        %v1127 = vand.u32 %v1126, 4294901760
        %1128 = vmatpush.msra.mxu0 %v1127
        %v1129 = vand.u32 %v613, 4294901760
        %v1130 = vsub.f32 %v613, %v1129
        %v1131 = vand.u32 %v1130, 4294901760
        %v1132 = vsub.f32 %v1130, %v1131
        %v1133 = vand.u32 %v1132, 4294901760
        %1134 = vmatpush.msra.mxu0 %v1133
        %v1135 = vand.u32 %v612, 4294901760
        %v1136 = vsub.f32 %v612, %v1135
        %v1137 = vand.u32 %v1136, 4294901760
        %v1138 = vsub.f32 %v1136, %v1137
        %v1139 = vand.u32 %v1138, 4294901760
        %1140 = vmatpush.msra.mxu0 %v1139
        %v1141 = vand.u32 %v1074, 4294901760
        %1142 = vmatmul.f32.gmra.mxu0 %v1141
        %v1143 = vpop.f32.mrf.mxu0
        %v1144 = vadd.f32 %v1103, %v1143
        %1145 = vdwg.mxu0
        %1146 = vmatpush.msra.mxu0 0.0
        %1147 = vmatpush.msra.mxu0 0.0
        %1148 = vmatpush.msra.mxu0 0.0
        %1149 = vmatpush.msra.mxu0 0.0
        %1150 = vmatpush.msra.mxu0 0.0
        %1151 = vmatpush.msra.mxu0 0.0
        %1152 = vmatpush.msra.mxu0 0.0
        %1153 = vmatpush.msra.mxu0 0.0
        %1154 = vmatpush.msra.mxu0 0.0
        %1155 = vmatpush.msra.mxu0 0.0
        %1156 = vmatpush.msra.mxu0 0.0
        %1157 = vmatpush.msra.mxu0 0.0
        %v1158 = vand.u32 %v615, 4294901760
        %v1159 = vsub.f32 %v615, %v1158
        %1160 = vmatpush.msra.mxu0 %v1159
        %v1161 = vand.u32 %v614, 4294901760
        %v1162 = vsub.f32 %v614, %v1161
        %1163 = vmatpush.msra.mxu0 %v1162
        %v1164 = vand.u32 %v613, 4294901760
        %v1165 = vsub.f32 %v613, %v1164
        %1166 = vmatpush.msra.mxu0 %v1165
        %v1167 = vand.u32 %v612, 4294901760
        %v1168 = vsub.f32 %v612, %v1167
        %1169 = vmatpush.msra.mxu0 %v1168
        %v1170 = vand.u32 %v1074, 4294901760
        %v1171 = vsub.f32 %v1074, %v1170
        %1172 = vmatmul.f32.gmra.mxu0 %v1171
        %v1173 = vpop.f32.mrf.mxu0
        %v1174 = vadd.f32 %v1144, %v1173
        %1175 = vdwg.mxu0
        %1176 = vmatpush.msra.mxu0 0.0
        %1177 = vmatpush.msra.mxu0 0.0
        %1178 = vmatpush.msra.mxu0 0.0
        %1179 = vmatpush.msra.mxu0 0.0
        %1180 = vmatpush.msra.mxu0 0.0
        %1181 = vmatpush.msra.mxu0 0.0
        %1182 = vmatpush.msra.mxu0 0.0
        %1183 = vmatpush.msra.mxu0 0.0
        %1184 = vmatpush.msra.mxu0 0.0
        %1185 = vmatpush.msra.mxu0 0.0
        %1186 = vmatpush.msra.mxu0 0.0
        %1187 = vmatpush.msra.mxu0 0.0
        %v1188 = vand.u32 %v615, 4294901760
        %1189 = vmatpush.msra.mxu0 %v1188
        %v1190 = vand.u32 %v614, 4294901760
        %1191 = vmatpush.msra.mxu0 %v1190
        %v1192 = vand.u32 %v613, 4294901760
        %1193 = vmatpush.msra.mxu0 %v1192
        %v1194 = vand.u32 %v612, 4294901760
        %1195 = vmatpush.msra.mxu0 %v1194
        %v1196 = vand.u32 %v1074, 4294901760
        %v1197 = vsub.f32 %v1074, %v1196
        %v1198 = vand.u32 %v1197, 4294901760
        %1199 = vmatmul.f32.gmra.mxu0 %v1198
        %v1200 = vpop.f32.mrf.mxu0
        %v1201 = vadd.f32 %v1174, %v1200
        %1202 = vdwg.mxu0
        %1203 = vmatpush.msra.mxu0 0.0
        %1204 = vmatpush.msra.mxu0 0.0
        %1205 = vmatpush.msra.mxu0 0.0
        %1206 = vmatpush.msra.mxu0 0.0
        %1207 = vmatpush.msra.mxu0 0.0
        %1208 = vmatpush.msra.mxu0 0.0
        %1209 = vmatpush.msra.mxu0 0.0
        %1210 = vmatpush.msra.mxu0 0.0
        %1211 = vmatpush.msra.mxu0 0.0
        %1212 = vmatpush.msra.mxu0 0.0
        %1213 = vmatpush.msra.mxu0 0.0
        %1214 = vmatpush.msra.mxu0 0.0
        %v1215 = vand.u32 %v615, 4294901760
        %v1216 = vsub.f32 %v615, %v1215
        %v1217 = vand.u32 %v1216, 4294901760
        %1218 = vmatpush.msra.mxu0 %v1217
        %v1219 = vand.u32 %v614, 4294901760
        %v1220 = vsub.f32 %v614, %v1219
        %v1221 = vand.u32 %v1220, 4294901760
        %1222 = vmatpush.msra.mxu0 %v1221
        %v1223 = vand.u32 %v613, 4294901760
        %v1224 = vsub.f32 %v613, %v1223
        %v1225 = vand.u32 %v1224, 4294901760
        %1226 = vmatpush.msra.mxu0 %v1225
        %v1227 = vand.u32 %v612, 4294901760
        %v1228 = vsub.f32 %v612, %v1227
        %v1229 = vand.u32 %v1228, 4294901760
        %1230 = vmatpush.msra.mxu0 %v1229
        %v1231 = vand.u32 %v1074, 4294901760
        %1232 = vmatmul.f32.gmra.mxu0 %v1231
        %v1233 = vpop.f32.mrf.mxu0
        %v1234 = vadd.f32 %v1201, %v1233
        %1235 = vdwg.mxu0
        %1236 = vmatpush.msra.mxu0 0.0
        %1237 = vmatpush.msra.mxu0 0.0
        %1238 = vmatpush.msra.mxu0 0.0
        %1239 = vmatpush.msra.mxu0 0.0
        %1240 = vmatpush.msra.mxu0 0.0
        %1241 = vmatpush.msra.mxu0 0.0
        %1242 = vmatpush.msra.mxu0 0.0
        %1243 = vmatpush.msra.mxu0 0.0
        %1244 = vmatpush.msra.mxu0 0.0
        %1245 = vmatpush.msra.mxu0 0.0
        %1246 = vmatpush.msra.mxu0 0.0
        %1247 = vmatpush.msra.mxu0 0.0
        %v1248 = vand.u32 %v615, 4294901760
        %1249 = vmatpush.msra.mxu0 %v1248
        %v1250 = vand.u32 %v614, 4294901760
        %1251 = vmatpush.msra.mxu0 %v1250
        %v1252 = vand.u32 %v613, 4294901760
        %1253 = vmatpush.msra.mxu0 %v1252
        %v1254 = vand.u32 %v612, 4294901760
        %1255 = vmatpush.msra.mxu0 %v1254
        %v1256 = vand.u32 %v1074, 4294901760
        %1257 = vmatmul.f32.gmra.mxu0 %v1256
        %v1258 = vpop.f32.mrf.mxu0
        %v1259 = vadd.f32 %v1234, %v1258
        %1260 = vdwg.mxu0
        %v1261 = vmul.f32 %v1259, %v832
        %v1263 = vsel %vm834, %v1261, 0
        %1265 = vmatpush.xpose.msra.mxu0 0.0
        %1266 = vmatpush.xpose.msra.mxu0 0.0
        %1267 = vmatpush.xpose.msra.mxu0 0.0
        %1268 = vmatpush.xpose.msra.mxu0 0.0
        %1269 = vmatpush.xpose.msra.mxu0 0.0
        %1270 = vmatpush.xpose.msra.mxu0 0.0
        %1271 = vmatpush.xpose.msra.mxu0 0.0
        %1272 = vmatpush.xpose.msra.mxu0 0.0
        %1273 = vmatpush.xpose.msra.mxu0 0.0
        %1274 = vmatpush.xpose.msra.mxu0 0.0
        %1275 = vmatpush.xpose.msra.mxu0 0.0
        %1276 = vmatpush.xpose.msra.mxu0 0.0
        %v1277 = vand.u32 %v848, 4294901760
        %1278 = vmatpush.xpose.msra.mxu0 %v1277
        %v1279 = vand.u32 %v845, 4294901760
        %1280 = vmatpush.xpose.msra.mxu0 %v1279
        %v1281 = vand.u32 %v842, 4294901760
        %1282 = vmatpush.xpose.msra.mxu0 %v1281
        %v1283 = vand.u32 %v839, 4294901760
        %1284 = vmatpush.xpose.msra.mxu0 %v1283
        %v1285 = vand.u32 %v1263, 4294901760
        %v1286 = vsub.f32 %v1263, %v1285
        %v1287 = vand.u32 %v1286, 4294901760
        %v1288 = vsub.f32 %v1286, %v1287
        %v1289 = vand.u32 %v1288, 4294901760
        %1290 = vmatmul.f32.gmra.mxu0 %v1289
        %v1291 = vpop.f32.mrf.mxu0
        %v1292 = vadd.f32 1e-05, %v1291
        %1293 = vdwg.mxu0
        %1294 = vmatpush.xpose.msra.mxu0 0.0
        %1295 = vmatpush.xpose.msra.mxu0 0.0
        %1296 = vmatpush.xpose.msra.mxu0 0.0
        %1297 = vmatpush.xpose.msra.mxu0 0.0
        %1298 = vmatpush.xpose.msra.mxu0 0.0
        %1299 = vmatpush.xpose.msra.mxu0 0.0
        %1300 = vmatpush.xpose.msra.mxu0 0.0
        %1301 = vmatpush.xpose.msra.mxu0 0.0
        %1302 = vmatpush.xpose.msra.mxu0 0.0
        %1303 = vmatpush.xpose.msra.mxu0 0.0
        %1304 = vmatpush.xpose.msra.mxu0 0.0
        %1305 = vmatpush.xpose.msra.mxu0 0.0
        %v1306 = vand.u32 %v848, 4294901760
        %v1307 = vsub.f32 %v848, %v1306
        %v1308 = vand.u32 %v1307, 4294901760
        %v1309 = vsub.f32 %v1307, %v1308
        %v1310 = vand.u32 %v1309, 4294901760
        %1311 = vmatpush.xpose.msra.mxu0 %v1310
        %v1312 = vand.u32 %v845, 4294901760
        %v1313 = vsub.f32 %v845, %v1312
        %v1314 = vand.u32 %v1313, 4294901760
        %v1315 = vsub.f32 %v1313, %v1314
        %v1316 = vand.u32 %v1315, 4294901760
        %1317 = vmatpush.xpose.msra.mxu0 %v1316
        %v1318 = vand.u32 %v842, 4294901760
        %v1319 = vsub.f32 %v842, %v1318
        %v1320 = vand.u32 %v1319, 4294901760
        %v1321 = vsub.f32 %v1319, %v1320
        %v1322 = vand.u32 %v1321, 4294901760
        %1323 = vmatpush.xpose.msra.mxu0 %v1322
        %v1324 = vand.u32 %v839, 4294901760
        %v1325 = vsub.f32 %v839, %v1324
        %v1326 = vand.u32 %v1325, 4294901760
        %v1327 = vsub.f32 %v1325, %v1326
        %v1328 = vand.u32 %v1327, 4294901760
        %1329 = vmatpush.xpose.msra.mxu0 %v1328
        %v1330 = vand.u32 %v1263, 4294901760
        %1331 = vmatmul.f32.gmra.mxu0 %v1330
        %v1332 = vpop.f32.mrf.mxu0
        %v1333 = vadd.f32 %v1292, %v1332
        %1334 = vdwg.mxu0
        %1335 = vmatpush.xpose.msra.mxu0 0.0
        %1336 = vmatpush.xpose.msra.mxu0 0.0
        %1337 = vmatpush.xpose.msra.mxu0 0.0
        %1338 = vmatpush.xpose.msra.mxu0 0.0
        %1339 = vmatpush.xpose.msra.mxu0 0.0
        %1340 = vmatpush.xpose.msra.mxu0 0.0
        %1341 = vmatpush.xpose.msra.mxu0 0.0
        %1342 = vmatpush.xpose.msra.mxu0 0.0
        %1343 = vmatpush.xpose.msra.mxu0 0.0
        %1344 = vmatpush.xpose.msra.mxu0 0.0
        %1345 = vmatpush.xpose.msra.mxu0 0.0
        %1346 = vmatpush.xpose.msra.mxu0 0.0
        %v1347 = vand.u32 %v848, 4294901760
        %v1348 = vsub.f32 %v848, %v1347
        %1349 = vmatpush.xpose.msra.mxu0 %v1348
        %v1350 = vand.u32 %v845, 4294901760
        %v1351 = vsub.f32 %v845, %v1350
        %1352 = vmatpush.xpose.msra.mxu0 %v1351
        %v1353 = vand.u32 %v842, 4294901760
        %v1354 = vsub.f32 %v842, %v1353
        %1355 = vmatpush.xpose.msra.mxu0 %v1354
        %v1356 = vand.u32 %v839, 4294901760
        %v1357 = vsub.f32 %v839, %v1356
        %1358 = vmatpush.xpose.msra.mxu0 %v1357
        %v1359 = vand.u32 %v1263, 4294901760
        %v1360 = vsub.f32 %v1263, %v1359
        %1361 = vmatmul.f32.gmra.mxu0 %v1360
        %v1362 = vpop.f32.mrf.mxu0
        %v1363 = vadd.f32 %v1333, %v1362
        %1364 = vdwg.mxu0
        %1365 = vmatpush.xpose.msra.mxu0 0.0
        %1366 = vmatpush.xpose.msra.mxu0 0.0
        %1367 = vmatpush.xpose.msra.mxu0 0.0
        %1368 = vmatpush.xpose.msra.mxu0 0.0
        %1369 = vmatpush.xpose.msra.mxu0 0.0
        %1370 = vmatpush.xpose.msra.mxu0 0.0
        %1371 = vmatpush.xpose.msra.mxu0 0.0
        %1372 = vmatpush.xpose.msra.mxu0 0.0
        %1373 = vmatpush.xpose.msra.mxu0 0.0
        %1374 = vmatpush.xpose.msra.mxu0 0.0
        %1375 = vmatpush.xpose.msra.mxu0 0.0
        %1376 = vmatpush.xpose.msra.mxu0 0.0
        %v1377 = vand.u32 %v848, 4294901760
        %1378 = vmatpush.xpose.msra.mxu0 %v1377
        %v1379 = vand.u32 %v845, 4294901760
        %1380 = vmatpush.xpose.msra.mxu0 %v1379
        %v1381 = vand.u32 %v842, 4294901760
        %1382 = vmatpush.xpose.msra.mxu0 %v1381
        %v1383 = vand.u32 %v839, 4294901760
        %1384 = vmatpush.xpose.msra.mxu0 %v1383
        %v1385 = vand.u32 %v1263, 4294901760
        %v1386 = vsub.f32 %v1263, %v1385
        %v1387 = vand.u32 %v1386, 4294901760
        %1388 = vmatmul.f32.gmra.mxu0 %v1387
        %v1389 = vpop.f32.mrf.mxu0
        %v1390 = vadd.f32 %v1363, %v1389
        %1391 = vdwg.mxu0
        %1392 = vmatpush.xpose.msra.mxu0 0.0
        %1393 = vmatpush.xpose.msra.mxu0 0.0
        %1394 = vmatpush.xpose.msra.mxu0 0.0
        %1395 = vmatpush.xpose.msra.mxu0 0.0
        %1396 = vmatpush.xpose.msra.mxu0 0.0
        %1397 = vmatpush.xpose.msra.mxu0 0.0
        %1398 = vmatpush.xpose.msra.mxu0 0.0
        %1399 = vmatpush.xpose.msra.mxu0 0.0
        %1400 = vmatpush.xpose.msra.mxu0 0.0
        %1401 = vmatpush.xpose.msra.mxu0 0.0
        %1402 = vmatpush.xpose.msra.mxu0 0.0
        %1403 = vmatpush.xpose.msra.mxu0 0.0
        %v1404 = vand.u32 %v848, 4294901760
        %v1405 = vsub.f32 %v848, %v1404
        %v1406 = vand.u32 %v1405, 4294901760
        %1407 = vmatpush.xpose.msra.mxu0 %v1406
        %v1408 = vand.u32 %v845, 4294901760
        %v1409 = vsub.f32 %v845, %v1408
        %v1410 = vand.u32 %v1409, 4294901760
        %1411 = vmatpush.xpose.msra.mxu0 %v1410
        %v1412 = vand.u32 %v842, 4294901760
        %v1413 = vsub.f32 %v842, %v1412
        %v1414 = vand.u32 %v1413, 4294901760
        %1415 = vmatpush.xpose.msra.mxu0 %v1414
        %v1416 = vand.u32 %v839, 4294901760
        %v1417 = vsub.f32 %v839, %v1416
        %v1418 = vand.u32 %v1417, 4294901760
        %1419 = vmatpush.xpose.msra.mxu0 %v1418
        %v1420 = vand.u32 %v1263, 4294901760
        %1421 = vmatmul.f32.gmra.mxu0 %v1420
        %v1422 = vpop.f32.mrf.mxu0
        %v1423 = vadd.f32 %v1390, %v1422
        %1424 = vdwg.mxu0
        %1425 = vmatpush.xpose.msra.mxu0 0.0
        %1426 = vmatpush.xpose.msra.mxu0 0.0
        %1427 = vmatpush.xpose.msra.mxu0 0.0
        %1428 = vmatpush.xpose.msra.mxu0 0.0
        %1429 = vmatpush.xpose.msra.mxu0 0.0
        %1430 = vmatpush.xpose.msra.mxu0 0.0
        %1431 = vmatpush.xpose.msra.mxu0 0.0
        %1432 = vmatpush.xpose.msra.mxu0 0.0
        %1433 = vmatpush.xpose.msra.mxu0 0.0
        %1434 = vmatpush.xpose.msra.mxu0 0.0
        %1435 = vmatpush.xpose.msra.mxu0 0.0
        %1436 = vmatpush.xpose.msra.mxu0 0.0
        %v1437 = vand.u32 %v848, 4294901760
        %1438 = vmatpush.xpose.msra.mxu0 %v1437
        %v1439 = vand.u32 %v845, 4294901760
        %1440 = vmatpush.xpose.msra.mxu0 %v1439
        %v1441 = vand.u32 %v842, 4294901760
        %1442 = vmatpush.xpose.msra.mxu0 %v1441
        %v1443 = vand.u32 %v839, 4294901760
        %1444 = vmatpush.xpose.msra.mxu0 %v1443
        %v1445 = vand.u32 %v1263, 4294901760
        %1446 = vmatmul.f32.gmra.mxu0 %v1445
        %v1447 = vpop.f32.mrf.mxu0
        %v1448 = vadd.f32 %v1423, %v1447
        %1449 = vdwg.mxu0
        %v1450 = vrsqrt.pop %v1448
        %v1451 = vmul.f32 %v1450, %v1448
        %v1452 = vmul.f32 %v1451, %v1450
        %v1453 = vmul.f32 0.5, %v1452
        %v1454 = vsub.f32 1.5, %v1453
        %v1455 = vmul.f32 %v1450, %v1454
        %vm1456 = vweird.f32 %v1448
        %vm1457 = vweird.f32 %v1450
        %vm1458 = vmor %vm1456, %vm1457
        %v1459 = vsel %vm1458, %v1450, %v1455
        %v1460 = vperm.slane %v1459, 0
        %v1461 = vmul.f32 %v1036, %v1460
        %v1462 = vmul.f32 %v1037, %v1460
        %v1463 = vmul.f32 %v1038, %v1460
        %v1464 = vmul.f32 %v1039, %v1460
        %v1465 = vmul.f32 %v1040, %v1460
        %v1466 = vmul.f32 %v1041, %v1460
        %v1467 = vmul.f32 %v1042, %v1460
        %v1468 = vmul.f32 %v1043, %v1460
        %v1470 = vperm.slane %v610, 0
        %v1472 = vmul.f32 %v1461, %v1470
        %v1473 = vmul.f32 %v1462, %v1470
        %v1474 = vmul.f32 %v1463, %v1470
        %v1475 = vmul.f32 %v1464, %v1470
        %v1476 = vmul.f32 %v1465, %v1470
        %v1477 = vmul.f32 %v1466, %v1470
        %v1478 = vmul.f32 %v1467, %v1470
        %v1479 = vmul.f32 %v1468, %v1470
        %v1481 = vperm.slane %v611, 0
        %v1483 = vadd.f32 %v1472, %v1481
        %v1484 = vadd.f32 %v1473, %v1481
        %v1485 = vadd.f32 %v1474, %v1481
        %v1486 = vadd.f32 %v1475, %v1481
        %v1487 = vadd.f32 %v1476, %v1481
        %v1488 = vadd.f32 %v1477, %v1481
        %v1489 = vadd.f32 %v1478, %v1481
        %v1490 = vadd.f32 %v1479, %v1481
        %v1491 = vmul.f32 %v1483, 0.5
        %v1492 = vmul.f32 %v1484, 0.5
        %v1493 = vmul.f32 %v1485, 0.5
        %v1494 = vmul.f32 %v1486, 0.5
        %v1495 = vmul.f32 %v1487, 0.5
        %v1496 = vmul.f32 %v1488, 0.5
        %v1497 = vmul.f32 %v1489, 0.5
        %v1498 = vmul.f32 %v1490, 0.5
        %v1499 = vmul.f32 %v1483, 0.044715
        %v1500 = vmul.f32 %v1484, 0.044715
        %v1501 = vmul.f32 %v1485, 0.044715
        %v1502 = vmul.f32 %v1486, 0.044715
        %v1503 = vmul.f32 %v1487, 0.044715
        %v1504 = vmul.f32 %v1488, 0.044715
        %v1505 = vmul.f32 %v1489, 0.044715
        %v1506 = vmul.f32 %v1490, 0.044715
        %v1507 = vmul.f32 %v1499, %v1483
        %v1508 = vmul.f32 %v1500, %v1484
        %v1509 = vmul.f32 %v1501, %v1485
        %v1510 = vmul.f32 %v1502, %v1486
        %v1511 = vmul.f32 %v1503, %v1487
        %v1512 = vmul.f32 %v1504, %v1488
        %v1513 = vmul.f32 %v1505, %v1489
        %v1514 = vmul.f32 %v1506, %v1490
        %v1515 = vmul.f32 %v1507, %v1483
        %v1516 = vmul.f32 %v1508, %v1484
        %v1517 = vmul.f32 %v1509, %v1485
        %v1518 = vmul.f32 %v1510, %v1486
        %v1519 = vmul.f32 %v1511, %v1487
        %v1520 = vmul.f32 %v1512, %v1488
        %v1521 = vmul.f32 %v1513, %v1489
        %v1522 = vmul.f32 %v1514, %v1490
        %v1523 = vadd.f32 %v1483, %v1515
        %v1524 = vadd.f32 %v1484, %v1516
        %v1525 = vadd.f32 %v1485, %v1517
        %v1526 = vadd.f32 %v1486, %v1518
        %v1527 = vadd.f32 %v1487, %v1519
        %v1528 = vadd.f32 %v1488, %v1520
        %v1529 = vadd.f32 %v1489, %v1521
        %v1530 = vadd.f32 %v1490, %v1522
        %v1531 = vmul.f32 %v1523, 0.7978846
        %v1532 = vmul.f32 %v1524, 0.7978846
        %v1533 = vmul.f32 %v1525, 0.7978846
        %v1534 = vmul.f32 %v1526, 0.7978846
        %v1535 = vmul.f32 %v1527, 0.7978846
        %v1536 = vmul.f32 %v1528, 0.7978846
        %v1537 = vmul.f32 %v1529, 0.7978846
        %v1538 = vmul.f32 %v1530, 0.7978846
        %v1539 = vtanh.pop %v1531
        %v1540 = vtanh.pop %v1532
        %v1541 = vtanh.pop %v1533
        %v1542 = vtanh.pop %v1534
        %v1543 = vtanh.pop %v1535
        %v1544 = vtanh.pop %v1536
        %v1545 = vtanh.pop %v1537
        %v1546 = vtanh.pop %v1538
        %v1547 = vadd.f32 %v1539, 1.0
        %v1548 = vadd.f32 %v1540, 1.0
        %v1549 = vadd.f32 %v1541, 1.0
        %v1550 = vadd.f32 %v1542, 1.0
        %v1551 = vadd.f32 %v1543, 1.0
        %v1552 = vadd.f32 %v1544, 1.0
        %v1553 = vadd.f32 %v1545, 1.0
        %v1554 = vadd.f32 %v1546, 1.0
        %v1555 = vmul.f32 %v1491, %v1547
        %v1556 = vmul.f32 %v1492, %v1548
        %v1557 = vmul.f32 %v1493, %v1549
        %v1558 = vmul.f32 %v1494, %v1550
        %v1559 = vmul.f32 %v1495, %v1551
        %v1560 = vmul.f32 %v1496, %v1552
        %v1561 = vmul.f32 %v1497, %v1553
        %v1562 = vmul.f32 %v1498, %v1554
        %v1563 = vrot.slane %v1555, 7
        %v1564 = vrot.slane %v1556, 7
        %v1565 = vrot.slane %v1557, 7
        %v1566 = vrot.slane %v1558, 7
        %v1567 = vrot.slane %v1559, 7
        %v1568 = vrot.slane %v1560, 7
        %v1569 = vrot.slane %v1561, 7
        %v1570 = vrot.slane %v1562, 7
        %vm1571 = vcmp.lt.s32.totalorder %v547, 1
        %v1572 = vsel %vm1571, %v1569, %v1570
        %v1573 = vsel %vm1571, %v1568, %v1569
        %v1574 = vsel %vm1571, %v1567, %v1568
        %v1575 = vsel %vm1571, %v1566, %v1567
        %v1576 = vsel %vm1571, %v1565, %v1566
        %v1577 = vsel %vm1571, %v1564, %v1565
        %v1578 = vsel %vm1571, %v1563, %v1564
        %v1579 = vsel %vm1571, %v1570, %v1563
        %vm1580 = vcmp.ge.s32.totalorder %v586, 1
        %vm1581 = vcmp.ge.s32.totalorder %v587, 1
        %vm1582 = vcmp.ge.s32.totalorder %v588, 1
        %vm1583 = vcmp.ge.s32.totalorder %v589, 1
        %vm1584 = vcmp.ge.s32.totalorder %v590, 1
        %vm1585 = vcmp.ge.s32.totalorder %v591, 1
        %vm1586 = vcmp.ge.s32.totalorder %v592, 1
        %vm1587 = vcmp.ge.s32.totalorder %v593, 1
        %vm1588 = vcmp.ge.s32.totalorder %v602, 1
        %vm1589 = vcmp.ge.s32.totalorder %v603, 1
        %vm1590 = vcmp.ge.s32.totalorder %v604, 1
        %vm1591 = vcmp.ge.s32.totalorder %v605, 1
        %vm1592 = vcmp.ge.s32.totalorder %v606, 1
        %vm1593 = vcmp.ge.s32.totalorder %v607, 1
        %vm1594 = vcmp.ge.s32.totalorder %v608, 1
        %vm1595 = vcmp.ge.s32.totalorder %v609, 1
        %vm1596 = vmand %vm1580, %vm1588
        %vm1597 = vmand %vm1581, %vm1589
        %vm1598 = vmand %vm1582, %vm1590
        %vm1599 = vmand %vm1583, %vm1591
        %vm1600 = vmand %vm1584, %vm1592
        %vm1601 = vmand %vm1585, %vm1593
        %vm1602 = vmand %vm1586, %vm1594
        %vm1603 = vmand %vm1587, %vm1595
        %v1604 = vsel %vm1596, 1, 0
        %v1605 = vsel %vm1597, 1, 0
        %v1606 = vsel %vm1598, 1, 0
        %v1607 = vsel %vm1599, 1, 0
        %v1608 = vsel %vm1600, 1, 0
        %v1609 = vsel %vm1601, 1, 0
        %v1610 = vsel %vm1602, 1, 0
        %v1611 = vsel %vm1603, 1, 0
        %v1612 = vcvt.s32.f32 %v1604
        %v1613 = vcvt.s32.f32 %v1605
        %v1614 = vcvt.s32.f32 %v1606
        %v1615 = vcvt.s32.f32 %v1607
        %v1616 = vcvt.s32.f32 %v1608
        %v1617 = vcvt.s32.f32 %v1609
        %v1618 = vcvt.s32.f32 %v1610
        %v1619 = vcvt.s32.f32 %v1611
        %v1620 = vmul.f32 %v1572, %v1612
        %v1621 = vmul.f32 %v1579, %v1613
        %v1622 = vmul.f32 %v1578, %v1614
        %v1623 = vmul.f32 %v1577, %v1615
        %v1624 = vmul.f32 %v1576, %v1616
        %v1625 = vmul.f32 %v1575, %v1617
        %v1626 = vmul.f32 %v1574, %v1618
        %v1627 = vmul.f32 %v1573, %v1619
        %v1628 = vpack.c.bf16 %v1621, %v1620
        %v1629 = vpack.c.bf16 %v1623, %v1622
        %v1630 = vpack.c.bf16 %v1625, %v1624
        %v1631 = vpack.c.bf16 %v1627, %v1626
        %v1632 = vld [vmem:[%s5] sm:$0xf]
        %v1633 = vld [vmem:[%s5 + $0x4] sm:$0xf]
        %v1634 = vld [vmem:[%s5 + $0x8] sm:$0xf]
        %v1635 = vld [vmem:[%s5 + $0xc] sm:$0xf]
        %v1636 = vsel %vm1580, 1, 0
        %v1637 = vsel %vm1581, 1, 0
        %v1638 = vsel %vm1582, 1, 0
        %v1639 = vsel %vm1583, 1, 0
        %v1640 = vsel %vm1584, 1, 0
        %v1641 = vsel %vm1585, 1, 0
        %v1642 = vsel %vm1586, 1, 0
        %v1643 = vsel %vm1587, 1, 0
        %v1644 = vcvt.s32.f32 %v1636
        %v1645 = vcvt.s32.f32 %v1637
        %v1646 = vcvt.s32.f32 %v1638
        %v1647 = vcvt.s32.f32 %v1639
        %v1648 = vcvt.s32.f32 %v1640
        %v1649 = vcvt.s32.f32 %v1641
        %v1650 = vcvt.s32.f32 %v1642
        %v1651 = vcvt.s32.f32 %v1643
        %v1652 = vmul.f32 %v1562, %v1644
        %v1653 = vmul.f32 %v1555, %v1645
        %v1654 = vmul.f32 %v1556, %v1646
        %v1655 = vmul.f32 %v1557, %v1647
        %v1656 = vmul.f32 %v1558, %v1648
        %v1657 = vmul.f32 %v1559, %v1649
        %v1658 = vmul.f32 %v1560, %v1650
        %v1659 = vmul.f32 %v1561, %v1651
        %v1660 = vpack.c.bf16 %v1653, %v1652
        %v1661 = vpack.c.bf16 %v1655, %v1654
        %v1662 = vpack.c.bf16 %v1657, %v1656
        %v1663 = vpack.c.bf16 %v1659, %v1658
        %s1664 = scalar_lea.vmem %s5, 16
        %v1665 = vld [vmem:[%s1664] sm:$0xf]
        %v1666 = vld [vmem:[%s1664 + $0x4] sm:$0xf]
        %v1667 = vld [vmem:[%s1664 + $0x8] sm:$0xf]
        %v1668 = vld [vmem:[%s1664 + $0xc] sm:$0xf]
        %v1673 = vunpack.c.l.b16 %v1665
        %v1674 = vunpack.c.l.b16 %v1666
        %v1675 = vunpack.c.l.b16 %v1667
        %v1676 = vunpack.c.l.b16 %v1668
        %v1677 = vpack.c.b16 %v1674, %v1673
        %v1678 = vpack.c.b16 %v1676, %v1675
        %v1682 = vsel %vm616, %v1660, 0
        %v1685 = vsel %vm616, %v1661, 0
        %v1688 = vsel %vm616, %v1662, 0
        %v1691 = vsel %vm616, %v1663, 0
        %1693 = vmatpush.bf16.msra.mxu0 0
        %1694 = vmatpush.bf16.msra.mxu0 0
        %1695 = vmatpush.bf16.msra.mxu0 0
        %1696 = vmatpush.bf16.msra.mxu0 0
        %1697 = vmatpush.bf16.msra.mxu0 0
        %1698 = vmatpush.bf16.msra.mxu0 0
        %1699 = vmatpush.bf16.msra.mxu0 %v1678
        %1700 = vmatpush.bf16.msra.mxu0 %v1677
        %1701 = vmatmul.bf16.gmra.mxu0 %v1682
        %v1702 = vpop.f32.mrf.mxu0
        %v1703 = vadd.f32 0.0, %v1702
        %v1704 = vpop.f32.mrf.mxu0
        %v1705 = vadd.f32 0.0, %v1704
        %1706 = vmatmul.bf16.gmra.mxu0 %v1685
        %v1707 = vpop.f32.mrf.mxu0
        %v1708 = vadd.f32 0.0, %v1707
        %v1709 = vpop.f32.mrf.mxu0
        %v1710 = vadd.f32 0.0, %v1709
        %1711 = vmatmul.bf16.gmra.mxu0 %v1688
        %v1712 = vpop.f32.mrf.mxu0
        %v1713 = vadd.f32 0.0, %v1712
        %v1714 = vpop.f32.mrf.mxu0
        %v1715 = vadd.f32 0.0, %v1714
        %1716 = vmatmul.bf16.gmra.mxu0 %v1691
        %v1717 = vpop.f32.mrf.mxu0
        %v1718 = vadd.f32 0.0, %v1717
        %v1719 = vpop.f32.mrf.mxu0
        %v1720 = vadd.f32 0.0, %v1719
        %1721 = vdwg.mxu0
        %v1726 = vunpack.c.l.b16 %v1632
        %v1727 = vunpack.c.l.b16 %v1633
        %v1728 = vunpack.c.l.b16 %v1634
        %v1729 = vunpack.c.l.b16 %v1635
        %v1730 = vpack.c.b16 %v1727, %v1726
        %v1731 = vpack.c.b16 %v1729, %v1728
        %v1735 = vsel %vm616, %v1628, 0
        %v1738 = vsel %vm616, %v1629, 0
        %v1741 = vsel %vm616, %v1630, 0
        %v1744 = vsel %vm616, %v1631, 0
        %1746 = vmatpush.bf16.msra.mxu0 0
        %1747 = vmatpush.bf16.msra.mxu0 0
        %1748 = vmatpush.bf16.msra.mxu0 0
        %1749 = vmatpush.bf16.msra.mxu0 0
        %1750 = vmatpush.bf16.msra.mxu0 0
        %1751 = vmatpush.bf16.msra.mxu0 0
        %1752 = vmatpush.bf16.msra.mxu0 %v1731
        %1753 = vmatpush.bf16.msra.mxu0 %v1730
        %1754 = vmatmul.bf16.gmra.mxu0 %v1735
        %v1755 = vpop.f32.mrf.mxu0
        %v1756 = vadd.f32 %v1703, %v1755
        %v1757 = vpop.f32.mrf.mxu0
        %v1758 = vadd.f32 %v1705, %v1757
        %1759 = vmatmul.bf16.gmra.mxu0 %v1738
        %v1760 = vpop.f32.mrf.mxu0
        %v1761 = vadd.f32 %v1708, %v1760
        %v1762 = vpop.f32.mrf.mxu0
        %v1763 = vadd.f32 %v1710, %v1762
        %1764 = vmatmul.bf16.gmra.mxu0 %v1741
        %v1765 = vpop.f32.mrf.mxu0
        %v1766 = vadd.f32 %v1713, %v1765
        %v1767 = vpop.f32.mrf.mxu0
        %v1768 = vadd.f32 %v1715, %v1767
        %1769 = vmatmul.bf16.gmra.mxu0 %v1744
        %v1770 = vpop.f32.mrf.mxu0
        %v1771 = vadd.f32 %v1718, %v1770
        %v1772 = vpop.f32.mrf.mxu0
        %v1773 = vadd.f32 %v1720, %v1772
        %1774 = vdwg.mxu0
        %v1775 = vrot.slane %v1555, 1
        %v1776 = vrot.slane %v1556, 1
        %v1777 = vrot.slane %v1557, 1
        %v1778 = vrot.slane %v1558, 1
        %v1779 = vrot.slane %v1559, 1
        %v1780 = vrot.slane %v1560, 1
        %v1781 = vrot.slane %v1561, 1
        %v1782 = vrot.slane %v1562, 1
        %vm1783 = vcmp.lt.s32.totalorder %v547, 7
        %v1784 = vsel %vm1783, %v1781, %v1782
        %v1785 = vsel %vm1783, %v1780, %v1781
        %v1786 = vsel %vm1783, %v1779, %v1780
        %v1787 = vsel %vm1783, %v1778, %v1779
        %v1788 = vsel %vm1783, %v1777, %v1778
        %v1789 = vsel %vm1783, %v1776, %v1777
        %v1790 = vsel %vm1783, %v1775, %v1776
        %v1791 = vsel %vm1783, %v1782, %v1775
        %vm1792 = vcmp.lt.s32.totalorder %v602, 7
        %vm1793 = vcmp.lt.s32.totalorder %v603, 7
        %vm1794 = vcmp.lt.s32.totalorder %v604, 7
        %vm1795 = vcmp.lt.s32.totalorder %v605, 7
        %vm1796 = vcmp.lt.s32.totalorder %v606, 7
        %vm1797 = vcmp.lt.s32.totalorder %v607, 7
        %vm1798 = vcmp.lt.s32.totalorder %v608, 7
        %vm1799 = vcmp.lt.s32.totalorder %v609, 7
        %vm1800 = vmand %vm1580, %vm1792
        %vm1801 = vmand %vm1581, %vm1793
        %vm1802 = vmand %vm1582, %vm1794
        %vm1803 = vmand %vm1583, %vm1795
        %vm1804 = vmand %vm1584, %vm1796
        %vm1805 = vmand %vm1585, %vm1797
        %vm1806 = vmand %vm1586, %vm1798
        %vm1807 = vmand %vm1587, %vm1799
        %v1808 = vsel %vm1800, 1, 0
        %v1809 = vsel %vm1801, 1, 0
        %v1810 = vsel %vm1802, 1, 0
        %v1811 = vsel %vm1803, 1, 0
        %v1812 = vsel %vm1804, 1, 0
        %v1813 = vsel %vm1805, 1, 0
        %v1814 = vsel %vm1806, 1, 0
        %v1815 = vsel %vm1807, 1, 0
        %v1816 = vcvt.s32.f32 %v1808
        %v1817 = vcvt.s32.f32 %v1809
        %v1818 = vcvt.s32.f32 %v1810
        %v1819 = vcvt.s32.f32 %v1811
        %v1820 = vcvt.s32.f32 %v1812
        %v1821 = vcvt.s32.f32 %v1813
        %v1822 = vcvt.s32.f32 %v1814
        %v1823 = vcvt.s32.f32 %v1815
        %v1824 = vmul.f32 %v1791, %v1816
        %v1825 = vmul.f32 %v1790, %v1817
        %v1826 = vmul.f32 %v1789, %v1818
        %v1827 = vmul.f32 %v1788, %v1819
        %v1828 = vmul.f32 %v1787, %v1820
        %v1829 = vmul.f32 %v1786, %v1821
        %v1830 = vmul.f32 %v1785, %v1822
        %v1831 = vmul.f32 %v1784, %v1823
        %v1832 = vpack.c.bf16 %v1825, %v1824
        %v1833 = vpack.c.bf16 %v1827, %v1826
        %v1834 = vpack.c.bf16 %v1829, %v1828
        %v1835 = vpack.c.bf16 %v1831, %v1830
        %s1836 = scalar_lea.vmem %s5, 32
        %v1837 = vld [vmem:[%s1836] sm:$0xf]
        %v1838 = vld [vmem:[%s1836 + $0x4] sm:$0xf]
        %v1839 = vld [vmem:[%s1836 + $0x8] sm:$0xf]
        %v1840 = vld [vmem:[%s1836 + $0xc] sm:$0xf]
        %v1845 = vunpack.c.l.b16 %v1837
        %v1846 = vunpack.c.l.b16 %v1838
        %v1847 = vunpack.c.l.b16 %v1839
        %v1848 = vunpack.c.l.b16 %v1840
        %v1849 = vpack.c.b16 %v1846, %v1845
        %v1850 = vpack.c.b16 %v1848, %v1847
        %v1854 = vsel %vm616, %v1832, 0
        %v1857 = vsel %vm616, %v1833, 0
        %v1860 = vsel %vm616, %v1834, 0
        %v1863 = vsel %vm616, %v1835, 0
        %1865 = vmatpush.bf16.msra.mxu0 0
        %1866 = vmatpush.bf16.msra.mxu0 0
        %1867 = vmatpush.bf16.msra.mxu0 0
        %1868 = vmatpush.bf16.msra.mxu0 0
        %1869 = vmatpush.bf16.msra.mxu0 0
        %1870 = vmatpush.bf16.msra.mxu0 0
        %1871 = vmatpush.bf16.msra.mxu0 %v1850
        %1872 = vmatpush.bf16.msra.mxu0 %v1849
        %1873 = vmatmul.bf16.gmra.mxu0 %v1854
        %v1874 = vpop.f32.mrf.mxu0
        %v1875 = vadd.f32 0.0, %v1874
        %v1876 = vpop.f32.mrf.mxu0
        %v1877 = vadd.f32 0.0, %v1876
        %1878 = vmatmul.bf16.gmra.mxu0 %v1857
        %v1879 = vpop.f32.mrf.mxu0
        %v1880 = vadd.f32 0.0, %v1879
        %v1881 = vpop.f32.mrf.mxu0
        %v1882 = vadd.f32 0.0, %v1881
        %1883 = vmatmul.bf16.gmra.mxu0 %v1860
        %v1884 = vpop.f32.mrf.mxu0
        %v1885 = vadd.f32 0.0, %v1884
        %v1886 = vpop.f32.mrf.mxu0
        %v1887 = vadd.f32 0.0, %v1886
        %1888 = vmatmul.bf16.gmra.mxu0 %v1863
        %v1889 = vpop.f32.mrf.mxu0
        %v1890 = vadd.f32 0.0, %v1889
        %v1891 = vpop.f32.mrf.mxu0
        %v1892 = vadd.f32 0.0, %v1891
        %1893 = vdwg.mxu0
        %v1894 = vadd.f32 %v1756, %v1875
        %v1895 = vadd.f32 %v1758, %v1877
        %v1896 = vadd.f32 %v1761, %v1880
        %v1897 = vadd.f32 %v1763, %v1882
        %v1898 = vadd.f32 %v1766, %v1885
        %v1899 = vadd.f32 %v1768, %v1887
        %v1900 = vadd.f32 %v1771, %v1890
        %v1901 = vadd.f32 %v1773, %v1892
        %v1902 = vsel %vm1588, 1, 0
        %v1903 = vsel %vm1589, 1, 0
        %v1904 = vsel %vm1590, 1, 0
        %v1905 = vsel %vm1591, 1, 0
        %v1906 = vsel %vm1592, 1, 0
        %v1907 = vsel %vm1593, 1, 0
        %v1908 = vsel %vm1594, 1, 0
        %v1909 = vsel %vm1595, 1, 0
        %v1910 = vcvt.s32.f32 %v1902
        %v1911 = vcvt.s32.f32 %v1903
        %v1912 = vcvt.s32.f32 %v1904
        %v1913 = vcvt.s32.f32 %v1905
        %v1914 = vcvt.s32.f32 %v1906
        %v1915 = vcvt.s32.f32 %v1907
        %v1916 = vcvt.s32.f32 %v1908
        %v1917 = vcvt.s32.f32 %v1909
        %v1918 = vmul.f32 %v1579, %v1910
        %v1919 = vmul.f32 %v1578, %v1911
        %v1920 = vmul.f32 %v1577, %v1912
        %v1921 = vmul.f32 %v1576, %v1913
        %v1922 = vmul.f32 %v1575, %v1914
        %v1923 = vmul.f32 %v1574, %v1915
        %v1924 = vmul.f32 %v1573, %v1916
        %v1925 = vmul.f32 %v1572, %v1917
        %v1926 = vpack.c.bf16 %v1919, %v1918
        %v1927 = vpack.c.bf16 %v1921, %v1920
        %v1928 = vpack.c.bf16 %v1923, %v1922
        %v1929 = vpack.c.bf16 %v1925, %v1924
        %s1930 = scalar_lea.vmem %s5, 48
        %v1931 = vld [vmem:[%s1930] sm:$0xf]
        %v1932 = vld [vmem:[%s1930 + $0x4] sm:$0xf]
        %v1933 = vld [vmem:[%s1930 + $0x8] sm:$0xf]
        %v1934 = vld [vmem:[%s1930 + $0xc] sm:$0xf]
        %v1939 = vunpack.c.l.b16 %v1931
        %v1940 = vunpack.c.l.b16 %v1932
        %v1941 = vunpack.c.l.b16 %v1933
        %v1942 = vunpack.c.l.b16 %v1934
        %v1943 = vpack.c.b16 %v1940, %v1939
        %v1944 = vpack.c.b16 %v1942, %v1941
        %v1948 = vsel %vm616, %v1926, 0
        %v1951 = vsel %vm616, %v1927, 0
        %v1954 = vsel %vm616, %v1928, 0
        %v1957 = vsel %vm616, %v1929, 0
        %1959 = vmatpush.bf16.msra.mxu0 0
        %1960 = vmatpush.bf16.msra.mxu0 0
        %1961 = vmatpush.bf16.msra.mxu0 0
        %1962 = vmatpush.bf16.msra.mxu0 0
        %1963 = vmatpush.bf16.msra.mxu0 0
        %1964 = vmatpush.bf16.msra.mxu0 0
        %1965 = vmatpush.bf16.msra.mxu0 %v1944
        %1966 = vmatpush.bf16.msra.mxu0 %v1943
        %1967 = vmatmul.bf16.gmra.mxu0 %v1948
        %v1968 = vpop.f32.mrf.mxu0
        %v1969 = vadd.f32 0.0, %v1968
        %v1970 = vpop.f32.mrf.mxu0
        %v1971 = vadd.f32 0.0, %v1970
        %1972 = vmatmul.bf16.gmra.mxu0 %v1951
        %v1973 = vpop.f32.mrf.mxu0
        %v1974 = vadd.f32 0.0, %v1973
        %v1975 = vpop.f32.mrf.mxu0
        %v1976 = vadd.f32 0.0, %v1975
        %1977 = vmatmul.bf16.gmra.mxu0 %v1954
        %v1978 = vpop.f32.mrf.mxu0
        %v1979 = vadd.f32 0.0, %v1978
        %v1980 = vpop.f32.mrf.mxu0
        %v1981 = vadd.f32 0.0, %v1980
        %1982 = vmatmul.bf16.gmra.mxu0 %v1957
        %v1983 = vpop.f32.mrf.mxu0
        %v1984 = vadd.f32 0.0, %v1983
        %v1985 = vpop.f32.mrf.mxu0
        %v1986 = vadd.f32 0.0, %v1985
        %1987 = vdwg.mxu0
        %v1988 = vadd.f32 %v1894, %v1969
        %v1989 = vadd.f32 %v1895, %v1971
        %v1990 = vadd.f32 %v1896, %v1974
        %v1991 = vadd.f32 %v1897, %v1976
        %v1992 = vadd.f32 %v1898, %v1979
        %v1993 = vadd.f32 %v1899, %v1981
        %v1994 = vadd.f32 %v1900, %v1984
        %v1995 = vadd.f32 %v1901, %v1986
        %v1996 = vpack.c.bf16 %v1556, %v1555
        %v1997 = vpack.c.bf16 %v1558, %v1557
        %v1998 = vpack.c.bf16 %v1560, %v1559
        %v1999 = vpack.c.bf16 %v1562, %v1561
        %s2000 = scalar_lea.vmem %s5, 64
        %v2001 = vld [vmem:[%s2000] sm:$0xf]
        %v2002 = vld [vmem:[%s2000 + $0x4] sm:$0xf]
        %v2003 = vld [vmem:[%s2000 + $0x8] sm:$0xf]
        %v2004 = vld [vmem:[%s2000 + $0xc] sm:$0xf]
        %v2009 = vunpack.c.l.b16 %v2001
        %v2010 = vunpack.c.l.b16 %v2002
        %v2011 = vunpack.c.l.b16 %v2003
        %v2012 = vunpack.c.l.b16 %v2004
        %v2013 = vpack.c.b16 %v2010, %v2009
        %v2014 = vpack.c.b16 %v2012, %v2011
        %v2018 = vsel %vm616, %v1996, 0
        %v2021 = vsel %vm616, %v1997, 0
        %v2024 = vsel %vm616, %v1998, 0
        %v2027 = vsel %vm616, %v1999, 0
        %2029 = vmatpush.bf16.msra.mxu0 0
        %2030 = vmatpush.bf16.msra.mxu0 0
        %2031 = vmatpush.bf16.msra.mxu0 0
        %2032 = vmatpush.bf16.msra.mxu0 0
        %2033 = vmatpush.bf16.msra.mxu0 0
        %2034 = vmatpush.bf16.msra.mxu0 0
        %2035 = vmatpush.bf16.msra.mxu0 %v2014
        %2036 = vmatpush.bf16.msra.mxu0 %v2013
        %2037 = vmatmul.bf16.gmra.mxu0 %v2018
        %v2038 = vpop.f32.mrf.mxu0
        %v2039 = vadd.f32 0.0, %v2038
        %v2040 = vpop.f32.mrf.mxu0
        %v2041 = vadd.f32 0.0, %v2040
        %2042 = vmatmul.bf16.gmra.mxu0 %v2021
        %v2043 = vpop.f32.mrf.mxu0
        %v2044 = vadd.f32 0.0, %v2043
        %v2045 = vpop.f32.mrf.mxu0
        %v2046 = vadd.f32 0.0, %v2045
        %2047 = vmatmul.bf16.gmra.mxu0 %v2024
        %v2048 = vpop.f32.mrf.mxu0
        %v2049 = vadd.f32 0.0, %v2048
        %v2050 = vpop.f32.mrf.mxu0
        %v2051 = vadd.f32 0.0, %v2050
        %2052 = vmatmul.bf16.gmra.mxu0 %v2027
        %v2053 = vpop.f32.mrf.mxu0
        %v2054 = vadd.f32 0.0, %v2053
        %v2055 = vpop.f32.mrf.mxu0
        %v2056 = vadd.f32 0.0, %v2055
        %2057 = vdwg.mxu0
        %v2058 = vadd.f32 %v1988, %v2039
        %v2059 = vadd.f32 %v1989, %v2041
        %v2060 = vadd.f32 %v1990, %v2044
        %v2061 = vadd.f32 %v1991, %v2046
        %v2062 = vadd.f32 %v1992, %v2049
        %v2063 = vadd.f32 %v1993, %v2051
        %v2064 = vadd.f32 %v1994, %v2054
        %v2065 = vadd.f32 %v1995, %v2056
        %v2066 = vsel %vm1792, 1, 0
        %v2067 = vsel %vm1793, 1, 0
        %v2068 = vsel %vm1794, 1, 0
        %v2069 = vsel %vm1795, 1, 0
        %v2070 = vsel %vm1796, 1, 0
        %v2071 = vsel %vm1797, 1, 0
        %v2072 = vsel %vm1798, 1, 0
        %v2073 = vsel %vm1799, 1, 0
        %v2074 = vcvt.s32.f32 %v2066
        %v2075 = vcvt.s32.f32 %v2067
        %v2076 = vcvt.s32.f32 %v2068
        %v2077 = vcvt.s32.f32 %v2069
        %v2078 = vcvt.s32.f32 %v2070
        %v2079 = vcvt.s32.f32 %v2071
        %v2080 = vcvt.s32.f32 %v2072
        %v2081 = vcvt.s32.f32 %v2073
        %v2082 = vmul.f32 %v1790, %v2074
        %v2083 = vmul.f32 %v1789, %v2075
        %v2084 = vmul.f32 %v1788, %v2076
        %v2085 = vmul.f32 %v1787, %v2077
        %v2086 = vmul.f32 %v1786, %v2078
        %v2087 = vmul.f32 %v1785, %v2079
        %v2088 = vmul.f32 %v1784, %v2080
        %v2089 = vmul.f32 %v1791, %v2081
        %v2090 = vpack.c.bf16 %v2083, %v2082
        %v2091 = vpack.c.bf16 %v2085, %v2084
        %v2092 = vpack.c.bf16 %v2087, %v2086
        %v2093 = vpack.c.bf16 %v2089, %v2088
        %s2094 = scalar_lea.vmem %s5, 80
        %v2095 = vld [vmem:[%s2094] sm:$0xf]
        %v2096 = vld [vmem:[%s2094 + $0x4] sm:$0xf]
        %v2097 = vld [vmem:[%s2094 + $0x8] sm:$0xf]
        %v2098 = vld [vmem:[%s2094 + $0xc] sm:$0xf]
        %v2103 = vunpack.c.l.b16 %v2095
        %v2104 = vunpack.c.l.b16 %v2096
        %v2105 = vunpack.c.l.b16 %v2097
        %v2106 = vunpack.c.l.b16 %v2098
        %v2107 = vpack.c.b16 %v2104, %v2103
        %v2108 = vpack.c.b16 %v2106, %v2105
        %v2112 = vsel %vm616, %v2090, 0
        %v2115 = vsel %vm616, %v2091, 0
        %v2118 = vsel %vm616, %v2092, 0
        %v2121 = vsel %vm616, %v2093, 0
        %2123 = vmatpush.bf16.msra.mxu0 0
        %2124 = vmatpush.bf16.msra.mxu0 0
        %2125 = vmatpush.bf16.msra.mxu0 0
        %2126 = vmatpush.bf16.msra.mxu0 0
        %2127 = vmatpush.bf16.msra.mxu0 0
        %2128 = vmatpush.bf16.msra.mxu0 0
        %2129 = vmatpush.bf16.msra.mxu0 %v2108
        %2130 = vmatpush.bf16.msra.mxu0 %v2107
        %2131 = vmatmul.bf16.gmra.mxu0 %v2112
        %v2132 = vpop.f32.mrf.mxu0
        %v2133 = vadd.f32 0.0, %v2132
        %v2134 = vpop.f32.mrf.mxu0
        %v2135 = vadd.f32 0.0, %v2134
        %2136 = vmatmul.bf16.gmra.mxu0 %v2115
        %v2137 = vpop.f32.mrf.mxu0
        %v2138 = vadd.f32 0.0, %v2137
        %v2139 = vpop.f32.mrf.mxu0
        %v2140 = vadd.f32 0.0, %v2139
        %2141 = vmatmul.bf16.gmra.mxu0 %v2118
        %v2142 = vpop.f32.mrf.mxu0
        %v2143 = vadd.f32 0.0, %v2142
        %v2144 = vpop.f32.mrf.mxu0
        %v2145 = vadd.f32 0.0, %v2144
        %2146 = vmatmul.bf16.gmra.mxu0 %v2121
        %v2147 = vpop.f32.mrf.mxu0
        %v2148 = vadd.f32 0.0, %v2147
        %v2149 = vpop.f32.mrf.mxu0
        %v2150 = vadd.f32 0.0, %v2149
        %2151 = vdwg.mxu0
        %v2152 = vadd.f32 %v2058, %v2133
        %v2153 = vadd.f32 %v2059, %v2135
        %v2154 = vadd.f32 %v2060, %v2138
        %v2155 = vadd.f32 %v2061, %v2140
        %v2156 = vadd.f32 %v2062, %v2143
        %v2157 = vadd.f32 %v2063, %v2145
        %v2158 = vadd.f32 %v2064, %v2148
        %v2159 = vadd.f32 %v2065, %v2150
        %vm2160 = vcmp.lt.s32.totalorder %v586, 7
        %vm2161 = vcmp.lt.s32.totalorder %v587, 7
        %vm2162 = vcmp.lt.s32.totalorder %v588, 7
        %vm2163 = vcmp.lt.s32.totalorder %v589, 7
        %vm2164 = vcmp.lt.s32.totalorder %v590, 7
        %vm2165 = vcmp.lt.s32.totalorder %v591, 7
        %vm2166 = vcmp.lt.s32.totalorder %v592, 7
        %vm2167 = vcmp.lt.s32.totalorder %v593, 7
        %vm2168 = vmand %vm2160, %vm1588
        %vm2169 = vmand %vm2161, %vm1589
        %vm2170 = vmand %vm2162, %vm1590
        %vm2171 = vmand %vm2163, %vm1591
        %vm2172 = vmand %vm2164, %vm1592
        %vm2173 = vmand %vm2165, %vm1593
        %vm2174 = vmand %vm2166, %vm1594
        %vm2175 = vmand %vm2167, %vm1595
        %v2176 = vsel %vm2168, 1, 0
        %v2177 = vsel %vm2169, 1, 0
        %v2178 = vsel %vm2170, 1, 0
        %v2179 = vsel %vm2171, 1, 0
        %v2180 = vsel %vm2172, 1, 0
        %v2181 = vsel %vm2173, 1, 0
        %v2182 = vsel %vm2174, 1, 0
        %v2183 = vsel %vm2175, 1, 0
        %v2184 = vcvt.s32.f32 %v2176
        %v2185 = vcvt.s32.f32 %v2177
        %v2186 = vcvt.s32.f32 %v2178
        %v2187 = vcvt.s32.f32 %v2179
        %v2188 = vcvt.s32.f32 %v2180
        %v2189 = vcvt.s32.f32 %v2181
        %v2190 = vcvt.s32.f32 %v2182
        %v2191 = vcvt.s32.f32 %v2183
        %v2192 = vmul.f32 %v1578, %v2184
        %v2193 = vmul.f32 %v1577, %v2185
        %v2194 = vmul.f32 %v1576, %v2186
        %v2195 = vmul.f32 %v1575, %v2187
        %v2196 = vmul.f32 %v1574, %v2188
        %v2197 = vmul.f32 %v1573, %v2189
        %v2198 = vmul.f32 %v1572, %v2190
        %v2199 = vmul.f32 %v1579, %v2191
        %v2200 = vpack.c.bf16 %v2193, %v2192
        %v2201 = vpack.c.bf16 %v2195, %v2194
        %v2202 = vpack.c.bf16 %v2197, %v2196
        %v2203 = vpack.c.bf16 %v2199, %v2198
        %s2204 = scalar_lea.vmem %s5, 96
        %v2205 = vld [vmem:[%s2204] sm:$0xf]
        %v2206 = vld [vmem:[%s2204 + $0x4] sm:$0xf]
        %v2207 = vld [vmem:[%s2204 + $0x8] sm:$0xf]
        %v2208 = vld [vmem:[%s2204 + $0xc] sm:$0xf]
        %v2213 = vunpack.c.l.b16 %v2205
        %v2214 = vunpack.c.l.b16 %v2206
        %v2215 = vunpack.c.l.b16 %v2207
        %v2216 = vunpack.c.l.b16 %v2208
        %v2217 = vpack.c.b16 %v2214, %v2213
        %v2218 = vpack.c.b16 %v2216, %v2215
        %v2222 = vsel %vm616, %v2200, 0
        %v2225 = vsel %vm616, %v2201, 0
        %v2228 = vsel %vm616, %v2202, 0
        %v2231 = vsel %vm616, %v2203, 0
        %2233 = vmatpush.bf16.msra.mxu0 0
        %2234 = vmatpush.bf16.msra.mxu0 0
        %2235 = vmatpush.bf16.msra.mxu0 0
        %2236 = vmatpush.bf16.msra.mxu0 0
        %2237 = vmatpush.bf16.msra.mxu0 0
        %2238 = vmatpush.bf16.msra.mxu0 0
        %2239 = vmatpush.bf16.msra.mxu0 %v2218
        %2240 = vmatpush.bf16.msra.mxu0 %v2217
        %2241 = vmatmul.bf16.gmra.mxu0 %v2222
        %v2242 = vpop.f32.mrf.mxu0
        %v2243 = vadd.f32 0.0, %v2242
        %v2244 = vpop.f32.mrf.mxu0
        %v2245 = vadd.f32 0.0, %v2244
        %2246 = vmatmul.bf16.gmra.mxu0 %v2225
        %v2247 = vpop.f32.mrf.mxu0
        %v2248 = vadd.f32 0.0, %v2247
        %v2249 = vpop.f32.mrf.mxu0
        %v2250 = vadd.f32 0.0, %v2249
        %2251 = vmatmul.bf16.gmra.mxu0 %v2228
        %v2252 = vpop.f32.mrf.mxu0
        %v2253 = vadd.f32 0.0, %v2252
        %v2254 = vpop.f32.mrf.mxu0
        %v2255 = vadd.f32 0.0, %v2254
        %2256 = vmatmul.bf16.gmra.mxu0 %v2231
        %v2257 = vpop.f32.mrf.mxu0
        %v2258 = vadd.f32 0.0, %v2257
        %v2259 = vpop.f32.mrf.mxu0
        %v2260 = vadd.f32 0.0, %v2259
        %2261 = vdwg.mxu0
        %v2262 = vadd.f32 %v2152, %v2243
        %v2263 = vadd.f32 %v2153, %v2245
        %v2264 = vadd.f32 %v2154, %v2248
        %v2265 = vadd.f32 %v2155, %v2250
        %v2266 = vadd.f32 %v2156, %v2253
        %v2267 = vadd.f32 %v2157, %v2255
        %v2268 = vadd.f32 %v2158, %v2258
        %v2269 = vadd.f32 %v2159, %v2260
        %v2270 = vsel %vm2160, 1, 0
        %v2271 = vsel %vm2161, 1, 0
        %v2272 = vsel %vm2162, 1, 0
        %v2273 = vsel %vm2163, 1, 0
        %v2274 = vsel %vm2164, 1, 0
        %v2275 = vsel %vm2165, 1, 0
        %v2276 = vsel %vm2166, 1, 0
        %v2277 = vsel %vm2167, 1, 0
        %v2278 = vcvt.s32.f32 %v2270
        %v2279 = vcvt.s32.f32 %v2271
        %v2280 = vcvt.s32.f32 %v2272
        %v2281 = vcvt.s32.f32 %v2273
        %v2282 = vcvt.s32.f32 %v2274
        %v2283 = vcvt.s32.f32 %v2275
        %v2284 = vcvt.s32.f32 %v2276
        %v2285 = vcvt.s32.f32 %v2277
        %v2286 = vmul.f32 %v1556, %v2278
        %v2287 = vmul.f32 %v1557, %v2279
        %v2288 = vmul.f32 %v1558, %v2280
        %v2289 = vmul.f32 %v1559, %v2281
        %v2290 = vmul.f32 %v1560, %v2282
        %v2291 = vmul.f32 %v1561, %v2283
        %v2292 = vmul.f32 %v1562, %v2284
        %v2293 = vmul.f32 %v1555, %v2285
        %v2294 = vpack.c.bf16 %v2287, %v2286
        %v2295 = vpack.c.bf16 %v2289, %v2288
        %v2296 = vpack.c.bf16 %v2291, %v2290
        %v2297 = vpack.c.bf16 %v2293, %v2292
        %s2298 = scalar_lea.vmem %s5, 112
        %v2299 = vld [vmem:[%s2298] sm:$0xf]
        %v2300 = vld [vmem:[%s2298 + $0x4] sm:$0xf]
        %v2301 = vld [vmem:[%s2298 + $0x8] sm:$0xf]
        %v2302 = vld [vmem:[%s2298 + $0xc] sm:$0xf]
        %v2307 = vunpack.c.l.b16 %v2299
        %v2308 = vunpack.c.l.b16 %v2300
        %v2309 = vunpack.c.l.b16 %v2301
        %v2310 = vunpack.c.l.b16 %v2302
        %v2311 = vpack.c.b16 %v2308, %v2307
        %v2312 = vpack.c.b16 %v2310, %v2309
        %v2316 = vsel %vm616, %v2294, 0
        %v2319 = vsel %vm616, %v2295, 0
        %v2322 = vsel %vm616, %v2296, 0
        %v2325 = vsel %vm616, %v2297, 0
        %2327 = vmatpush.bf16.msra.mxu0 0
        %2328 = vmatpush.bf16.msra.mxu0 0
        %2329 = vmatpush.bf16.msra.mxu0 0
        %2330 = vmatpush.bf16.msra.mxu0 0
        %2331 = vmatpush.bf16.msra.mxu0 0
        %2332 = vmatpush.bf16.msra.mxu0 0
        %2333 = vmatpush.bf16.msra.mxu0 %v2312
        %2334 = vmatpush.bf16.msra.mxu0 %v2311
        %2335 = vmatmul.bf16.gmra.mxu0 %v2316
        %v2336 = vpop.f32.mrf.mxu0
        %v2337 = vadd.f32 0.0, %v2336
        %v2338 = vpop.f32.mrf.mxu0
        %v2339 = vadd.f32 0.0, %v2338
        %2340 = vmatmul.bf16.gmra.mxu0 %v2319
        %v2341 = vpop.f32.mrf.mxu0
        %v2342 = vadd.f32 0.0, %v2341
        %v2343 = vpop.f32.mrf.mxu0
        %v2344 = vadd.f32 0.0, %v2343
        %2345 = vmatmul.bf16.gmra.mxu0 %v2322
        %v2346 = vpop.f32.mrf.mxu0
        %v2347 = vadd.f32 0.0, %v2346
        %v2348 = vpop.f32.mrf.mxu0
        %v2349 = vadd.f32 0.0, %v2348
        %2350 = vmatmul.bf16.gmra.mxu0 %v2325
        %v2351 = vpop.f32.mrf.mxu0
        %v2352 = vadd.f32 0.0, %v2351
        %v2353 = vpop.f32.mrf.mxu0
        %v2354 = vadd.f32 0.0, %v2353
        %2355 = vdwg.mxu0
        %v2356 = vadd.f32 %v2262, %v2337
        %v2357 = vadd.f32 %v2263, %v2339
        %v2358 = vadd.f32 %v2264, %v2342
        %v2359 = vadd.f32 %v2265, %v2344
        %v2360 = vadd.f32 %v2266, %v2347
        %v2361 = vadd.f32 %v2267, %v2349
        %v2362 = vadd.f32 %v2268, %v2352
        %v2363 = vadd.f32 %v2269, %v2354
        %vm2364 = vmand %vm2160, %vm1792
        %vm2365 = vmand %vm2161, %vm1793
        %vm2366 = vmand %vm2162, %vm1794
        %vm2367 = vmand %vm2163, %vm1795
        %vm2368 = vmand %vm2164, %vm1796
        %vm2369 = vmand %vm2165, %vm1797
        %vm2370 = vmand %vm2166, %vm1798
        %vm2371 = vmand %vm2167, %vm1799
        %v2372 = vsel %vm2364, 1, 0
        %v2373 = vsel %vm2365, 1, 0
        %v2374 = vsel %vm2366, 1, 0
        %v2375 = vsel %vm2367, 1, 0
        %v2376 = vsel %vm2368, 1, 0
        %v2377 = vsel %vm2369, 1, 0
        %v2378 = vsel %vm2370, 1, 0
        %v2379 = vsel %vm2371, 1, 0
        %v2380 = vcvt.s32.f32 %v2372
        %v2381 = vcvt.s32.f32 %v2373
        %v2382 = vcvt.s32.f32 %v2374
        %v2383 = vcvt.s32.f32 %v2375
        %v2384 = vcvt.s32.f32 %v2376
        %v2385 = vcvt.s32.f32 %v2377
        %v2386 = vcvt.s32.f32 %v2378
        %v2387 = vcvt.s32.f32 %v2379
        %v2388 = vmul.f32 %v1789, %v2380
        %v2389 = vmul.f32 %v1788, %v2381
        %v2390 = vmul.f32 %v1787, %v2382
        %v2391 = vmul.f32 %v1786, %v2383
        %v2392 = vmul.f32 %v1785, %v2384
        %v2393 = vmul.f32 %v1784, %v2385
        %v2394 = vmul.f32 %v1791, %v2386
        %v2395 = vmul.f32 %v1790, %v2387
        %v2396 = vpack.c.bf16 %v2389, %v2388
        %v2397 = vpack.c.bf16 %v2391, %v2390
        %v2398 = vpack.c.bf16 %v2393, %v2392
        %v2399 = vpack.c.bf16 %v2395, %v2394
        %s2400 = scalar_lea.vmem %s5, 128
        %v2401 = vld [vmem:[%s2400] sm:$0xf]
        %v2402 = vld [vmem:[%s2400 + $0x4] sm:$0xf]
        %v2403 = vld [vmem:[%s2400 + $0x8] sm:$0xf]
        %v2404 = vld [vmem:[%s2400 + $0xc] sm:$0xf]
        %v2409 = vunpack.c.l.b16 %v2401
        %v2410 = vunpack.c.l.b16 %v2402
        %v2411 = vunpack.c.l.b16 %v2403
        %v2412 = vunpack.c.l.b16 %v2404
        %v2413 = vpack.c.b16 %v2410, %v2409
        %v2414 = vpack.c.b16 %v2412, %v2411
        %v2418 = vsel %vm616, %v2396, 0
        %v2421 = vsel %vm616, %v2397, 0
        %v2424 = vsel %vm616, %v2398, 0
        %v2427 = vsel %vm616, %v2399, 0
        %2429 = vmatpush.bf16.msra.mxu0 0
        %2430 = vmatpush.bf16.msra.mxu0 0
        %2431 = vmatpush.bf16.msra.mxu0 0
        %2432 = vmatpush.bf16.msra.mxu0 0
        %2433 = vmatpush.bf16.msra.mxu0 0
        %2434 = vmatpush.bf16.msra.mxu0 0
        %2435 = vmatpush.bf16.msra.mxu0 %v2414
        %2436 = vmatpush.bf16.msra.mxu0 %v2413
        %2437 = vmatmul.bf16.gmra.mxu0 %v2418
        %v2438 = vpop.f32.mrf.mxu0
        %v2439 = vadd.f32 0.0, %v2438
        %v2440 = vpop.f32.mrf.mxu0
        %v2441 = vadd.f32 0.0, %v2440
        %2442 = vmatmul.bf16.gmra.mxu0 %v2421
        %v2443 = vpop.f32.mrf.mxu0
        %v2444 = vadd.f32 0.0, %v2443
        %v2445 = vpop.f32.mrf.mxu0
        %v2446 = vadd.f32 0.0, %v2445
        %2447 = vmatmul.bf16.gmra.mxu0 %v2424
        %v2448 = vpop.f32.mrf.mxu0
        %v2449 = vadd.f32 0.0, %v2448
        %v2450 = vpop.f32.mrf.mxu0
        %v2451 = vadd.f32 0.0, %v2450
        %2452 = vmatmul.bf16.gmra.mxu0 %v2427
        %v2453 = vpop.f32.mrf.mxu0
        %v2454 = vadd.f32 0.0, %v2453
        %v2455 = vpop.f32.mrf.mxu0
        %v2456 = vadd.f32 0.0, %v2455
        %2457 = vdwg.mxu0
        %v2458 = vadd.f32 %v2356, %v2439
        %v2459 = vadd.f32 %v2357, %v2441
        %v2460 = vadd.f32 %v2358, %v2444
        %v2461 = vadd.f32 %v2359, %v2446
        %v2462 = vadd.f32 %v2360, %v2449
        %v2463 = vadd.f32 %v2361, %v2451
        %v2464 = vadd.f32 %v2362, %v2454
        %v2465 = vadd.f32 %v2363, %v2456
        %v2466 = vld [vmem:[%s6] sm:$0x1]
        %v2468 = vperm.slane %v2466, 0
        %v2470 = vadd.f32 %v2458, %v2468
        %v2471 = vadd.f32 %v2459, %v2468
        %v2472 = vadd.f32 %v2460, %v2468
        %v2473 = vadd.f32 %v2461, %v2468
        %v2474 = vadd.f32 %v2462, %v2468
        %v2475 = vadd.f32 %v2463, %v2468
        %v2476 = vadd.f32 %v2464, %v2468
        %v2477 = vadd.f32 %v2465, %v2468
        %v2478 = vld [vmem:[%s536] sm:$0x3]
        %v2479 = vadd.f32 %v2478, 1.0
        %v2480 = vperm.slane %v2479, 0
        %v2481 = vmul.f32 %v2470, %v2480
        %v2482 = vmul.f32 %v2471, %v2480
        %v2483 = vmul.f32 %v2472, %v2480
        %v2484 = vmul.f32 %v2473, %v2480
        %v2485 = vmul.f32 %v2474, %v2480
        %v2486 = vmul.f32 %v2475, %v2480
        %v2487 = vmul.f32 %v2476, %v2480
        %v2488 = vmul.f32 %v2477, %v2480
        %v2489 = vperm.slane %v2478, 1
        %v2490 = vadd.f32 %v2481, %v2489
        %v2491 = vadd.f32 %v2482, %v2489
        %v2492 = vadd.f32 %v2483, %v2489
        %v2493 = vadd.f32 %v2484, %v2489
        %v2494 = vadd.f32 %v2485, %v2489
        %v2495 = vadd.f32 %v2486, %v2489
        %v2496 = vadd.f32 %v2487, %v2489
        %v2497 = vadd.f32 %v2488, %v2489
        %v2498 = vpack.c.bf16 %v2491, %v2490
        %v2499 = vpack.c.bf16 %v2493, %v2492
        %v2500 = vpack.c.bf16 %v2495, %v2494
        %v2501 = vpack.c.bf16 %v2497, %v2496
        %v2502 = vld [vmem:[%s7] sm:$0xf]
        %v2503 = vld [vmem:[%s7 + $0x4] sm:$0xf]
        %v2504 = vld [vmem:[%s7 + $0x8] sm:$0xf]
        %v2505 = vld [vmem:[%s7 + $0xc] sm:$0xf]
        %v2506 = vld [vmem:[%s8] sm:$0x1]
        %v2508 = vperm.slane %v2506, 0
        %v2514 = vunpack.c.l.b16 %v2502
        %v2515 = vunpack.c.l.b16 %v2503
        %v2516 = vunpack.c.l.b16 %v2504
        %v2517 = vunpack.c.l.b16 %v2505
        %v2518 = vpack.c.b16 %v2515, %v2514
        %v2519 = vpack.c.b16 %v2517, %v2516
        %v2523 = vsel %vm616, %v2498, 0
        %v2526 = vsel %vm616, %v2499, 0
        %v2529 = vsel %vm616, %v2500, 0
        %v2532 = vsel %vm616, %v2501, 0
        %2534 = vmatpush.bf16.msra.mxu0 0
        %2535 = vmatpush.bf16.msra.mxu0 0
        %2536 = vmatpush.bf16.msra.mxu0 0
        %2537 = vmatpush.bf16.msra.mxu0 0
        %2538 = vmatpush.bf16.msra.mxu0 0
        %2539 = vmatpush.bf16.msra.mxu0 0
        %2540 = vmatpush.bf16.msra.mxu0 %v2519
        %2541 = vmatpush.bf16.msra.mxu0 %v2518
        %2542 = vmatmul.bf16.gmra.mxu0 %v2523
        %v2543 = vpop.f32.mrf.mxu0
        %v2544 = vadd.f32 %v2508, %v2543
        %v2545 = vpop.f32.mrf.mxu0
        %v2546 = vadd.f32 %v2508, %v2545
        %2547 = vmatmul.bf16.gmra.mxu0 %v2526
        %v2548 = vpop.f32.mrf.mxu0
        %v2549 = vadd.f32 %v2508, %v2548
        %v2550 = vpop.f32.mrf.mxu0
        %v2551 = vadd.f32 %v2508, %v2550
        %2552 = vmatmul.bf16.gmra.mxu0 %v2529
        %v2553 = vpop.f32.mrf.mxu0
        %v2554 = vadd.f32 %v2508, %v2553
        %v2555 = vpop.f32.mrf.mxu0
        %v2556 = vadd.f32 %v2508, %v2555
        %2557 = vmatmul.bf16.gmra.mxu0 %v2532
        %v2558 = vpop.f32.mrf.mxu0
        %v2559 = vadd.f32 %v2508, %v2558
        %v2560 = vpop.f32.mrf.mxu0
        %v2561 = vadd.f32 %v2508, %v2560
        %2562 = vdwg.mxu0
        %v2563 = vmul.f32 %v2544, 0.35355338
        %v2564 = vmul.f32 %v2546, 0.35355338
        %v2565 = vmul.f32 %v2549, 0.35355338
        %v2566 = vmul.f32 %v2551, 0.35355338
        %v2567 = vmul.f32 %v2554, 0.35355338
        %v2568 = vmul.f32 %v2556, 0.35355338
        %v2569 = vmul.f32 %v2559, 0.35355338
        %v2570 = vmul.f32 %v2561, 0.35355338
        %2579 = vrot.lane.b32.xlu0 %v2544, 96
        %v2580 = vpop.permute.xlu0 %2579
        %2581 = vrot.lane.b32.xlu0 %v2546, 96
        %v2582 = vpop.permute.xlu0 %2581
        %2583 = vrot.lane.b32.xlu0 %v2549, 96
        %v2584 = vpop.permute.xlu0 %2583
        %2585 = vrot.lane.b32.xlu0 %v2551, 96
        %v2586 = vpop.permute.xlu0 %2585
        %2587 = vrot.lane.b32.xlu0 %v2554, 96
        %v2588 = vpop.permute.xlu0 %2587
        %2589 = vrot.lane.b32.xlu0 %v2556, 96
        %v2590 = vpop.permute.xlu0 %2589
        %2591 = vrot.lane.b32.xlu0 %v2559, 96
        %v2592 = vpop.permute.xlu0 %2591
        %2593 = vrot.lane.b32.xlu0 %v2561, 96
        %v2594 = vpop.permute.xlu0 %2593
        %v2596 = vsel %vm834, %v2563, 0
        %v2599 = vsel %vm834, %v2564, 0
        %v2602 = vsel %vm834, %v2565, 0
        %v2605 = vsel %vm834, %v2566, 0
        %v2608 = vsel %vm834, %v2567, 0
        %v2611 = vsel %vm834, %v2568, 0
        %v2614 = vsel %vm834, %v2569, 0
        %v2617 = vsel %vm834, %v2570, 0
        %v2619 = vsel %vm834, %v2580, 0
        %v2621 = vsel %vm834, %v2582, 0
        %v2623 = vsel %vm834, %v2584, 0
        %v2625 = vsel %vm834, %v2586, 0
        %v2627 = vsel %vm834, %v2588, 0
        %v2629 = vsel %vm834, %v2590, 0
        %v2631 = vsel %vm834, %v2592, 0
        %v2633 = vsel %vm834, %v2594, 0
        %2635 = vmatpush.xpose.msra.mxu0 0.0
        %2636 = vmatpush.xpose.msra.mxu0 0.0
        %2637 = vmatpush.xpose.msra.mxu0 0.0
        %2638 = vmatpush.xpose.msra.mxu0 0.0
        %2639 = vmatpush.xpose.msra.mxu0 0.0
        %2640 = vmatpush.xpose.msra.mxu0 0.0
        %2641 = vmatpush.xpose.msra.mxu0 0.0
        %2642 = vmatpush.xpose.msra.mxu0 0.0
        %2643 = vmatpush.xpose.msra.mxu0 %v2633
        %2644 = vmatpush.xpose.msra.mxu0 %v2631
        %2645 = vmatpush.xpose.msra.mxu0 %v2629
        %2646 = vmatpush.xpose.msra.mxu0 %v2627
        %2647 = vmatpush.xpose.msra.mxu0 %v2625
        %2648 = vmatpush.xpose.msra.mxu0 %v2623
        %2649 = vmatpush.xpose.msra.mxu0 %v2621
        %2650 = vmatpush.xpose.msra.mxu0 %v2619
        %2651 = vmatmul.f32.gmra.mxu0 %v2596
        %v2652 = vpop.f32.mrf.mxu0
        %v2653 = vadd.f32 0.0, %v2652
        %2654 = vmatmul.f32.gmra.mxu0 %v2599
        %v2655 = vpop.f32.mrf.mxu0
        %v2656 = vadd.f32 0.0, %v2655
        %2657 = vmatmul.f32.gmra.mxu0 %v2602
        %v2658 = vpop.f32.mrf.mxu0
        %v2659 = vadd.f32 0.0, %v2658
        %2660 = vmatmul.f32.gmra.mxu0 %v2605
        %v2661 = vpop.f32.mrf.mxu0
        %v2662 = vadd.f32 0.0, %v2661
        %2663 = vmatmul.f32.gmra.mxu0 %v2608
        %v2664 = vpop.f32.mrf.mxu0
        %v2665 = vadd.f32 0.0, %v2664
        %2666 = vmatmul.f32.gmra.mxu0 %v2611
        %v2667 = vpop.f32.mrf.mxu0
        %v2668 = vadd.f32 0.0, %v2667
        %2669 = vmatmul.f32.gmra.mxu0 %v2614
        %v2670 = vpop.f32.mrf.mxu0
        %v2671 = vadd.f32 0.0, %v2670
        %2672 = vmatmul.f32.gmra.mxu0 %v2617
        %v2673 = vpop.f32.mrf.mxu0
        %v2674 = vadd.f32 0.0, %v2673
        %2675 = vdwg.mxu0
        %vm2676 = vcmask 523264
        %v2677 = vsel %vm2676, %v2653, -inf
        %2678 = vmax.xlane.f32.xlu0 %v2677
        %v2679 = vpop.xlane.xlu0 %2678
        %v2680 = vsel %vm2676, %v2656, -inf
        %2681 = vmax.xlane.f32.xlu0 %v2680
        %v2682 = vpop.xlane.xlu0 %2681
        %v2683 = vsel %vm2676, %v2659, -inf
        %2684 = vmax.xlane.f32.xlu0 %v2683
        %v2685 = vpop.xlane.xlu0 %2684
        %v2686 = vsel %vm2676, %v2662, -inf
        %2687 = vmax.xlane.f32.xlu0 %v2686
        %v2688 = vpop.xlane.xlu0 %2687
        %v2689 = vsel %vm2676, %v2665, -inf
        %2690 = vmax.xlane.f32.xlu0 %v2689
        %v2691 = vpop.xlane.xlu0 %2690
        %v2692 = vsel %vm2676, %v2668, -inf
        %2693 = vmax.xlane.f32.xlu0 %v2692
        %v2694 = vpop.xlane.xlu0 %2693
        %v2695 = vsel %vm2676, %v2671, -inf
        %2696 = vmax.xlane.f32.xlu0 %v2695
        %v2697 = vpop.xlane.xlu0 %2696
        %v2698 = vsel %vm2676, %v2674, -inf
        %2699 = vmax.xlane.f32.xlu0 %v2698
        %v2700 = vpop.xlane.xlu0 %2699
        %v2701 = vsub.f32 %v2653, %v2679
        %v2702 = vsub.f32 %v2656, %v2682
        %v2703 = vsub.f32 %v2659, %v2685
        %v2704 = vsub.f32 %v2662, %v2688
        %v2705 = vsub.f32 %v2665, %v2691
        %v2706 = vsub.f32 %v2668, %v2694
        %v2707 = vsub.f32 %v2671, %v2697
        %v2708 = vsub.f32 %v2674, %v2700
        %v2709 = vmul.f32 %v2701, 1.442695
        %v2710 = vpow.pop %v2709
        %v2711 = vmul.f32 %v2702, 1.442695
        %v2712 = vpow.pop %v2711
        %v2713 = vmul.f32 %v2703, 1.442695
        %v2714 = vpow.pop %v2713
        %v2715 = vmul.f32 %v2704, 1.442695
        %v2716 = vpow.pop %v2715
        %v2717 = vmul.f32 %v2705, 1.442695
        %v2718 = vpow.pop %v2717
        %v2719 = vmul.f32 %v2706, 1.442695
        %v2720 = vpow.pop %v2719
        %v2721 = vmul.f32 %v2707, 1.442695
        %v2722 = vpow.pop %v2721
        %v2723 = vmul.f32 %v2708, 1.442695
        %v2724 = vpow.pop %v2723
        %v2725 = vsel %vm2676, %v2710, 0.0
        %2726 = vadd.xlane.f32.xlu0 %v2725
        %v2727 = vpop.xlane.xlu0 %2726
        %v2728 = vsel %vm2676, %v2712, 0.0
        %2729 = vadd.xlane.f32.xlu0 %v2728
        %v2730 = vpop.xlane.xlu0 %2729
        %v2731 = vsel %vm2676, %v2714, 0.0
        %2732 = vadd.xlane.f32.xlu0 %v2731
        %v2733 = vpop.xlane.xlu0 %2732
        %v2734 = vsel %vm2676, %v2716, 0.0
        %2735 = vadd.xlane.f32.xlu0 %v2734
        %v2736 = vpop.xlane.xlu0 %2735
        %v2737 = vsel %vm2676, %v2718, 0.0
        %2738 = vadd.xlane.f32.xlu0 %v2737
        %v2739 = vpop.xlane.xlu0 %2738
        %v2740 = vsel %vm2676, %v2720, 0.0
        %2741 = vadd.xlane.f32.xlu0 %v2740
        %v2742 = vpop.xlane.xlu0 %2741
        %v2743 = vsel %vm2676, %v2722, 0.0
        %2744 = vadd.xlane.f32.xlu0 %v2743
        %v2745 = vpop.xlane.xlu0 %2744
        %v2746 = vsel %vm2676, %v2724, 0.0
        %2747 = vadd.xlane.f32.xlu0 %v2746
        %v2748 = vpop.xlane.xlu0 %2747
        %v2749 = vrcp.pop %v2727
        %v2750 = vrcp.pop %v2730
        %v2751 = vrcp.pop %v2733
        %v2752 = vrcp.pop %v2736
        %v2753 = vrcp.pop %v2739
        %v2754 = vrcp.pop %v2742
        %v2755 = vrcp.pop %v2745
        %v2756 = vrcp.pop %v2748
        %v2757 = vmul.f32 %v2710, %v2749
        %v2758 = vmul.f32 %v2712, %v2750
        %v2759 = vmul.f32 %v2714, %v2751
        %v2760 = vmul.f32 %v2716, %v2752
        %v2761 = vmul.f32 %v2718, %v2753
        %v2762 = vmul.f32 %v2720, %v2754
        %v2763 = vmul.f32 %v2722, %v2755
        %v2764 = vmul.f32 %v2724, %v2756
        %v2765 = vpack.c.bf16 %v2758, %v2757
        %v2766 = vpack.c.bf16 %v2760, %v2759
        %v2767 = vpack.c.bf16 %v2762, %v2761
        %v2768 = vpack.c.bf16 %v2764, %v2763
        %v2769 = vpack.c.bf16 %v2546, %v2544
        %v2770 = vpack.c.bf16 %v2551, %v2549
        %v2771 = vpack.c.bf16 %v2556, %v2554
        %v2772 = vpack.c.bf16 %v2561, %v2559
        %2777 = vrot.lane.b32.xlu0 %v2769, 64
        %v2778 = vpop.permute.xlu0 %2777
        %2779 = vrot.lane.b32.xlu0 %v2770, 64
        %v2780 = vpop.permute.xlu0 %2779
        %2781 = vrot.lane.b32.xlu0 %v2771, 64
        %v2782 = vpop.permute.xlu0 %2781
        %2783 = vrot.lane.b32.xlu0 %v2772, 64
        %v2784 = vpop.permute.xlu0 %2783
        %v2790 = vsel %vm2676, %v2765, 0
        %v2793 = vsel %vm2676, %v2766, 0
        %v2796 = vsel %vm2676, %v2767, 0
        %v2799 = vsel %vm2676, %v2768, 0
        %2801 = vmatpush.bf16.msra.mxu0 0
        %2802 = vmatpush.bf16.msra.mxu0 0
        %2803 = vmatpush.bf16.msra.mxu0 0
        %2804 = vmatpush.bf16.msra.mxu0 0
        %2805 = vmatpush.bf16.msra.mxu0 %v2784
        %2806 = vmatpush.bf16.msra.mxu0 %v2782
        %2807 = vmatpush.bf16.msra.mxu0 %v2780
        %2808 = vmatpush.bf16.msra.mxu0 %v2778
        %2809 = vmatmul.bf16.gmra.mxu0 %v2790
        %v2810 = vpop.f32.mrf.mxu0
        %v2811 = vadd.f32 0.0, %v2810
        %v2812 = vpop.f32.mrf.mxu0
        %v2813 = vadd.f32 0.0, %v2812
        %2814 = vmatmul.bf16.gmra.mxu0 %v2793
        %v2815 = vpop.f32.mrf.mxu0
        %v2816 = vadd.f32 0.0, %v2815
        %v2817 = vpop.f32.mrf.mxu0
        %v2818 = vadd.f32 0.0, %v2817
        %2819 = vmatmul.bf16.gmra.mxu0 %v2796
        %v2820 = vpop.f32.mrf.mxu0
        %v2821 = vadd.f32 0.0, %v2820
        %v2822 = vpop.f32.mrf.mxu0
        %v2823 = vadd.f32 0.0, %v2822
        %2824 = vmatmul.bf16.gmra.mxu0 %v2799
        %v2825 = vpop.f32.mrf.mxu0
        %v2826 = vadd.f32 0.0, %v2825
        %v2827 = vpop.f32.mrf.mxu0
        %v2828 = vadd.f32 0.0, %v2827
        %2829 = vdwg.mxu0
        %v2830 = vld [vmem:[%s9] sm:$0xff]
        %v2831 = vpack.c.bf16 %v2830, %v2830
        %v2832 = vpack.c.bf16 %v2813, %v2811
        %v2833 = vpack.c.bf16 %v2818, %v2816
        %v2834 = vpack.c.bf16 %v2823, %v2821
        %v2835 = vpack.c.bf16 %v2828, %v2826
        %2836 = vrot.lane.b32.xlu0 %v2563, 120
        %v2837 = vpop.permute.xlu0 %2836
        %2838 = vrot.lane.b32.xlu0 %v2564, 120
        %v2839 = vpop.permute.xlu0 %2838
        %2840 = vrot.lane.b32.xlu0 %v2565, 120
        %v2841 = vpop.permute.xlu0 %2840
        %2842 = vrot.lane.b32.xlu0 %v2566, 120
        %v2843 = vpop.permute.xlu0 %2842
        %2844 = vrot.lane.b32.xlu0 %v2567, 120
        %v2845 = vpop.permute.xlu0 %2844
        %2846 = vrot.lane.b32.xlu0 %v2568, 120
        %v2847 = vpop.permute.xlu0 %2846
        %2848 = vrot.lane.b32.xlu0 %v2569, 120
        %v2849 = vpop.permute.xlu0 %2848
        %2850 = vrot.lane.b32.xlu0 %v2570, 120
        %v2851 = vpop.permute.xlu0 %2850
        %2852 = vrot.lane.b32.xlu0 %v2544, 88
        %v2853 = vpop.permute.xlu0 %2852
        %2854 = vrot.lane.b32.xlu0 %v2546, 88
        %v2855 = vpop.permute.xlu0 %2854
        %2856 = vrot.lane.b32.xlu0 %v2549, 88
        %v2857 = vpop.permute.xlu0 %2856
        %2858 = vrot.lane.b32.xlu0 %v2551, 88
        %v2859 = vpop.permute.xlu0 %2858
        %2860 = vrot.lane.b32.xlu0 %v2554, 88
        %v2861 = vpop.permute.xlu0 %2860
        %2862 = vrot.lane.b32.xlu0 %v2556, 88
        %v2863 = vpop.permute.xlu0 %2862
        %2864 = vrot.lane.b32.xlu0 %v2559, 88
        %v2865 = vpop.permute.xlu0 %2864
        %2866 = vrot.lane.b32.xlu0 %v2561, 88
        %v2867 = vpop.permute.xlu0 %2866
        %v2868 = vsel %vm834, %v2837, 0
        %v2870 = vsel %vm834, %v2839, 0
        %v2872 = vsel %vm834, %v2841, 0
        %v2874 = vsel %vm834, %v2843, 0
        %v2876 = vsel %vm834, %v2845, 0
        %v2878 = vsel %vm834, %v2847, 0
        %v2880 = vsel %vm834, %v2849, 0
        %v2882 = vsel %vm834, %v2851, 0
        %v2884 = vsel %vm834, %v2853, 0
        %v2886 = vsel %vm834, %v2855, 0
        %v2888 = vsel %vm834, %v2857, 0
        %v2890 = vsel %vm834, %v2859, 0
        %v2892 = vsel %vm834, %v2861, 0
        %v2894 = vsel %vm834, %v2863, 0
        %v2896 = vsel %vm834, %v2865, 0
        %v2898 = vsel %vm834, %v2867, 0
        %2900 = vmatpush.xpose.msra.mxu0 0.0
        %2901 = vmatpush.xpose.msra.mxu0 0.0
        %2902 = vmatpush.xpose.msra.mxu0 0.0
        %2903 = vmatpush.xpose.msra.mxu0 0.0
        %2904 = vmatpush.xpose.msra.mxu0 0.0
        %2905 = vmatpush.xpose.msra.mxu0 0.0
        %2906 = vmatpush.xpose.msra.mxu0 0.0
        %2907 = vmatpush.xpose.msra.mxu0 0.0
        %2908 = vmatpush.xpose.msra.mxu0 %v2898
        %2909 = vmatpush.xpose.msra.mxu0 %v2896
        %2910 = vmatpush.xpose.msra.mxu0 %v2894
        %2911 = vmatpush.xpose.msra.mxu0 %v2892
        %2912 = vmatpush.xpose.msra.mxu0 %v2890
        %2913 = vmatpush.xpose.msra.mxu0 %v2888
        %2914 = vmatpush.xpose.msra.mxu0 %v2886
        %2915 = vmatpush.xpose.msra.mxu0 %v2884
        %2916 = vmatmul.f32.gmra.mxu0 %v2868
        %v2917 = vpop.f32.mrf.mxu0
        %v2918 = vadd.f32 0.0, %v2917
        %2919 = vmatmul.f32.gmra.mxu0 %v2870
        %v2920 = vpop.f32.mrf.mxu0
        %v2921 = vadd.f32 0.0, %v2920
        %2922 = vmatmul.f32.gmra.mxu0 %v2872
        %v2923 = vpop.f32.mrf.mxu0
        %v2924 = vadd.f32 0.0, %v2923
        %2925 = vmatmul.f32.gmra.mxu0 %v2874
        %v2926 = vpop.f32.mrf.mxu0
        %v2927 = vadd.f32 0.0, %v2926
        %2928 = vmatmul.f32.gmra.mxu0 %v2876
        %v2929 = vpop.f32.mrf.mxu0
        %v2930 = vadd.f32 0.0, %v2929
        %2931 = vmatmul.f32.gmra.mxu0 %v2878
        %v2932 = vpop.f32.mrf.mxu0
        %v2933 = vadd.f32 0.0, %v2932
        %2934 = vmatmul.f32.gmra.mxu0 %v2880
        %v2935 = vpop.f32.mrf.mxu0
        %v2936 = vadd.f32 0.0, %v2935
        %2937 = vmatmul.f32.gmra.mxu0 %v2882
        %v2938 = vpop.f32.mrf.mxu0
        %v2939 = vadd.f32 0.0, %v2938
        %2940 = vdwg.mxu0
        %v2941 = vsel %vm2676, %v2918, -inf
        %2942 = vmax.xlane.f32.xlu0 %v2941
        %v2943 = vpop.xlane.xlu0 %2942
        %v2944 = vsel %vm2676, %v2921, -inf
        %2945 = vmax.xlane.f32.xlu0 %v2944
        %v2946 = vpop.xlane.xlu0 %2945
        %v2947 = vsel %vm2676, %v2924, -inf
        %2948 = vmax.xlane.f32.xlu0 %v2947
        %v2949 = vpop.xlane.xlu0 %2948
        %v2950 = vsel %vm2676, %v2927, -inf
        %2951 = vmax.xlane.f32.xlu0 %v2950
        %v2952 = vpop.xlane.xlu0 %2951
        %v2953 = vsel %vm2676, %v2930, -inf
        %2954 = vmax.xlane.f32.xlu0 %v2953
        %v2955 = vpop.xlane.xlu0 %2954
        %v2956 = vsel %vm2676, %v2933, -inf
        %2957 = vmax.xlane.f32.xlu0 %v2956
        %v2958 = vpop.xlane.xlu0 %2957
        %v2959 = vsel %vm2676, %v2936, -inf
        %2960 = vmax.xlane.f32.xlu0 %v2959
        %v2961 = vpop.xlane.xlu0 %2960
        %v2962 = vsel %vm2676, %v2939, -inf
        %2963 = vmax.xlane.f32.xlu0 %v2962
        %v2964 = vpop.xlane.xlu0 %2963
        %v2965 = vsub.f32 %v2918, %v2943
        %v2966 = vsub.f32 %v2921, %v2946
        %v2967 = vsub.f32 %v2924, %v2949
        %v2968 = vsub.f32 %v2927, %v2952
        %v2969 = vsub.f32 %v2930, %v2955
        %v2970 = vsub.f32 %v2933, %v2958
        %v2971 = vsub.f32 %v2936, %v2961
        %v2972 = vsub.f32 %v2939, %v2964
        %v2973 = vmul.f32 %v2965, 1.442695
        %v2974 = vpow.pop %v2973
        %v2975 = vmul.f32 %v2966, 1.442695
        %v2976 = vpow.pop %v2975
        %v2977 = vmul.f32 %v2967, 1.442695
        %v2978 = vpow.pop %v2977
        %v2979 = vmul.f32 %v2968, 1.442695
        %v2980 = vpow.pop %v2979
        %v2981 = vmul.f32 %v2969, 1.442695
        %v2982 = vpow.pop %v2981
        %v2983 = vmul.f32 %v2970, 1.442695
        %v2984 = vpow.pop %v2983
        %v2985 = vmul.f32 %v2971, 1.442695
        %v2986 = vpow.pop %v2985
        %v2987 = vmul.f32 %v2972, 1.442695
        %v2988 = vpow.pop %v2987
        %v2989 = vsel %vm2676, %v2974, 0.0
        %2990 = vadd.xlane.f32.xlu0 %v2989
        %v2991 = vpop.xlane.xlu0 %2990
        %v2992 = vsel %vm2676, %v2976, 0.0
        %2993 = vadd.xlane.f32.xlu0 %v2992
        %v2994 = vpop.xlane.xlu0 %2993
        %v2995 = vsel %vm2676, %v2978, 0.0
        %2996 = vadd.xlane.f32.xlu0 %v2995
        %v2997 = vpop.xlane.xlu0 %2996
        %v2998 = vsel %vm2676, %v2980, 0.0
        %2999 = vadd.xlane.f32.xlu0 %v2998
        %v3000 = vpop.xlane.xlu0 %2999
        %v3001 = vsel %vm2676, %v2982, 0.0
        %3002 = vadd.xlane.f32.xlu0 %v3001
        %v3003 = vpop.xlane.xlu0 %3002
        %v3004 = vsel %vm2676, %v2984, 0.0
        %3005 = vadd.xlane.f32.xlu0 %v3004
        %v3006 = vpop.xlane.xlu0 %3005
        %v3007 = vsel %vm2676, %v2986, 0.0
        %3008 = vadd.xlane.f32.xlu0 %v3007
        %v3009 = vpop.xlane.xlu0 %3008
        %v3010 = vsel %vm2676, %v2988, 0.0
        %3011 = vadd.xlane.f32.xlu0 %v3010
        %v3012 = vpop.xlane.xlu0 %3011
        %v3013 = vrcp.pop %v2991
        %v3014 = vrcp.pop %v2994
        %v3015 = vrcp.pop %v2997
        %v3016 = vrcp.pop %v3000
        %v3017 = vrcp.pop %v3003
        %v3018 = vrcp.pop %v3006
        %v3019 = vrcp.pop %v3009
        %v3020 = vrcp.pop %v3012
        %v3021 = vmul.f32 %v2974, %v3013
        %v3022 = vmul.f32 %v2976, %v3014
        %v3023 = vmul.f32 %v2978, %v3015
        %v3024 = vmul.f32 %v2980, %v3016
        %v3025 = vmul.f32 %v2982, %v3017
        %v3026 = vmul.f32 %v2984, %v3018
        %v3027 = vmul.f32 %v2986, %v3019
        %v3028 = vmul.f32 %v2988, %v3020
        %v3029 = vpack.c.bf16 %v3022, %v3021
        %v3030 = vpack.c.bf16 %v3024, %v3023
        %v3031 = vpack.c.bf16 %v3026, %v3025
        %v3032 = vpack.c.bf16 %v3028, %v3027
        %3033 = vrot.lane.b32.xlu0 %v2769, 56
        %v3034 = vpop.permute.xlu0 %3033
        %3035 = vrot.lane.b32.xlu0 %v2770, 56
        %v3036 = vpop.permute.xlu0 %3035
        %3037 = vrot.lane.b32.xlu0 %v2771, 56
        %v3038 = vpop.permute.xlu0 %3037
        %3039 = vrot.lane.b32.xlu0 %v2772, 56
        %v3040 = vpop.permute.xlu0 %3039
        %v3046 = vsel %vm2676, %v3029, 0
        %v3049 = vsel %vm2676, %v3030, 0
        %v3052 = vsel %vm2676, %v3031, 0
        %v3055 = vsel %vm2676, %v3032, 0
        %3057 = vmatpush.bf16.msra.mxu0 0
        %3058 = vmatpush.bf16.msra.mxu0 0
        %3059 = vmatpush.bf16.msra.mxu0 0
        %3060 = vmatpush.bf16.msra.mxu0 0
        %3061 = vmatpush.bf16.msra.mxu0 %v3040
        %3062 = vmatpush.bf16.msra.mxu0 %v3038
        %3063 = vmatpush.bf16.msra.mxu0 %v3036
        %3064 = vmatpush.bf16.msra.mxu0 %v3034
        %3065 = vmatmul.bf16.gmra.mxu0 %v3046
        %v3066 = vpop.f32.mrf.mxu0
        %v3067 = vadd.f32 0.0, %v3066
        %v3068 = vpop.f32.mrf.mxu0
        %v3069 = vadd.f32 0.0, %v3068
        %3070 = vmatmul.bf16.gmra.mxu0 %v3049
        %v3071 = vpop.f32.mrf.mxu0
        %v3072 = vadd.f32 0.0, %v3071
        %v3073 = vpop.f32.mrf.mxu0
        %v3074 = vadd.f32 0.0, %v3073
        %3075 = vmatmul.bf16.gmra.mxu0 %v3052
        %v3076 = vpop.f32.mrf.mxu0
        %v3077 = vadd.f32 0.0, %v3076
        %v3078 = vpop.f32.mrf.mxu0
        %v3079 = vadd.f32 0.0, %v3078
        %3080 = vmatmul.bf16.gmra.mxu0 %v3055
        %v3081 = vpop.f32.mrf.mxu0
        %v3082 = vadd.f32 0.0, %v3081
        %v3083 = vpop.f32.mrf.mxu0
        %v3084 = vadd.f32 0.0, %v3083
        %3085 = vdwg.mxu0
        %v3086 = vld [vmem:[%s9 + $0x8] sm:$0xff]
        %v3087 = vpack.c.bf16 %v3086, %v3086
        %v3088 = vpack.c.bf16 %v3069, %v3067
        %v3089 = vpack.c.bf16 %v3074, %v3072
        %v3090 = vpack.c.bf16 %v3079, %v3077
        %v3091 = vpack.c.bf16 %v3084, %v3082
        %v3093 = vsel %vm834, %v3088, 0
        %v3096 = vsel %vm834, %v3089, 0
        %v3099 = vsel %vm834, %v3090, 0
        %v3102 = vsel %vm834, %v3091, 0
        %vm3104 = vcmask 1043456
        %v3106 = vsel %vm3104, %v3087, 0
        %3108 = vmatpush.bf16.msra.mxu0 0
        %3109 = vmatpush.bf16.msra.mxu0 0
        %3110 = vmatpush.bf16.msra.mxu0 0
        %3111 = vmatpush.bf16.msra.mxu0 0
        %3112 = vmatpush.bf16.msra.mxu0 0
        %3113 = vmatpush.bf16.msra.mxu0 0
        %3114 = vmatpush.bf16.msra.mxu0 0
        %3115 = vmatpush.bf16.msra.mxu0 %v3106
        %3116 = vmatmul.bf16.gmra.mxu0 %v3093
        %v3117 = vpop.f32.mrf.mxu0
        %v3118 = vadd.f32 0.0, %v3117
        %v3119 = vpop.f32.mrf.mxu0
        %v3120 = vadd.f32 0.0, %v3119
        %3121 = vmatmul.bf16.gmra.mxu0 %v3096
        %v3122 = vpop.f32.mrf.mxu0
        %v3123 = vadd.f32 0.0, %v3122
        %v3124 = vpop.f32.mrf.mxu0
        %v3125 = vadd.f32 0.0, %v3124
        %3126 = vmatmul.bf16.gmra.mxu0 %v3099
        %v3127 = vpop.f32.mrf.mxu0
        %v3128 = vadd.f32 0.0, %v3127
        %v3129 = vpop.f32.mrf.mxu0
        %v3130 = vadd.f32 0.0, %v3129
        %3131 = vmatmul.bf16.gmra.mxu0 %v3102
        %v3132 = vpop.f32.mrf.mxu0
        %v3133 = vadd.f32 0.0, %v3132
        %v3134 = vpop.f32.mrf.mxu0
        %v3135 = vadd.f32 0.0, %v3134
        %3136 = vdwg.mxu0
        %v3138 = vsel %vm834, %v2832, 0
        %v3141 = vsel %vm834, %v2833, 0
        %v3144 = vsel %vm834, %v2834, 0
        %v3147 = vsel %vm834, %v2835, 0
        %v3150 = vsel %vm3104, %v2831, 0
        %3152 = vmatpush.bf16.msra.mxu0 0
        %3153 = vmatpush.bf16.msra.mxu0 0
        %3154 = vmatpush.bf16.msra.mxu0 0
        %3155 = vmatpush.bf16.msra.mxu0 0
        %3156 = vmatpush.bf16.msra.mxu0 0
        %3157 = vmatpush.bf16.msra.mxu0 0
        %3158 = vmatpush.bf16.msra.mxu0 0
        %3159 = vmatpush.bf16.msra.mxu0 %v3150
        %3160 = vmatmul.bf16.gmra.mxu0 %v3138
        %v3161 = vpop.f32.mrf.mxu0
        %v3162 = vadd.f32 %v3118, %v3161
        %v3163 = vpop.f32.mrf.mxu0
        %v3164 = vadd.f32 %v3120, %v3163
        %3165 = vmatmul.bf16.gmra.mxu0 %v3141
        %v3166 = vpop.f32.mrf.mxu0
        %v3167 = vadd.f32 %v3123, %v3166
        %v3168 = vpop.f32.mrf.mxu0
        %v3169 = vadd.f32 %v3125, %v3168
        %3170 = vmatmul.bf16.gmra.mxu0 %v3144
        %v3171 = vpop.f32.mrf.mxu0
        %v3172 = vadd.f32 %v3128, %v3171
        %v3173 = vpop.f32.mrf.mxu0
        %v3174 = vadd.f32 %v3130, %v3173
        %3175 = vmatmul.bf16.gmra.mxu0 %v3147
        %v3176 = vpop.f32.mrf.mxu0
        %v3177 = vadd.f32 %v3133, %v3176
        %v3178 = vpop.f32.mrf.mxu0
        %v3179 = vadd.f32 %v3135, %v3178
        %3180 = vdwg.mxu0
        %3181 = vrot.lane.b32.xlu0 %v2563, 112
        %v3182 = vpop.permute.xlu0 %3181
        %3183 = vrot.lane.b32.xlu0 %v2564, 112
        %v3184 = vpop.permute.xlu0 %3183
        %3185 = vrot.lane.b32.xlu0 %v2565, 112
        %v3186 = vpop.permute.xlu0 %3185
        %3187 = vrot.lane.b32.xlu0 %v2566, 112
        %v3188 = vpop.permute.xlu0 %3187
        %3189 = vrot.lane.b32.xlu0 %v2567, 112
        %v3190 = vpop.permute.xlu0 %3189
        %3191 = vrot.lane.b32.xlu0 %v2568, 112
        %v3192 = vpop.permute.xlu0 %3191
        %3193 = vrot.lane.b32.xlu0 %v2569, 112
        %v3194 = vpop.permute.xlu0 %3193
        %3195 = vrot.lane.b32.xlu0 %v2570, 112
        %v3196 = vpop.permute.xlu0 %3195
        %3197 = vrot.lane.b32.xlu0 %v2544, 80
        %v3198 = vpop.permute.xlu0 %3197
        %3199 = vrot.lane.b32.xlu0 %v2546, 80
        %v3200 = vpop.permute.xlu0 %3199
        %3201 = vrot.lane.b32.xlu0 %v2549, 80
        %v3202 = vpop.permute.xlu0 %3201
        %3203 = vrot.lane.b32.xlu0 %v2551, 80
        %v3204 = vpop.permute.xlu0 %3203
        %3205 = vrot.lane.b32.xlu0 %v2554, 80
        %v3206 = vpop.permute.xlu0 %3205
        %3207 = vrot.lane.b32.xlu0 %v2556, 80
        %v3208 = vpop.permute.xlu0 %3207
        %3209 = vrot.lane.b32.xlu0 %v2559, 80
        %v3210 = vpop.permute.xlu0 %3209
        %3211 = vrot.lane.b32.xlu0 %v2561, 80
        %v3212 = vpop.permute.xlu0 %3211
        %v3213 = vsel %vm834, %v3182, 0
        %v3215 = vsel %vm834, %v3184, 0
        %v3217 = vsel %vm834, %v3186, 0
        %v3219 = vsel %vm834, %v3188, 0
        %v3221 = vsel %vm834, %v3190, 0
        %v3223 = vsel %vm834, %v3192, 0
        %v3225 = vsel %vm834, %v3194, 0
        %v3227 = vsel %vm834, %v3196, 0
        %v3229 = vsel %vm834, %v3198, 0
        %v3231 = vsel %vm834, %v3200, 0
        %v3233 = vsel %vm834, %v3202, 0
        %v3235 = vsel %vm834, %v3204, 0
        %v3237 = vsel %vm834, %v3206, 0
        %v3239 = vsel %vm834, %v3208, 0
        %v3241 = vsel %vm834, %v3210, 0
        %v3243 = vsel %vm834, %v3212, 0
        %3245 = vmatpush.xpose.msra.mxu0 0.0
        %3246 = vmatpush.xpose.msra.mxu0 0.0
        %3247 = vmatpush.xpose.msra.mxu0 0.0
        %3248 = vmatpush.xpose.msra.mxu0 0.0
        %3249 = vmatpush.xpose.msra.mxu0 0.0
        %3250 = vmatpush.xpose.msra.mxu0 0.0
        %3251 = vmatpush.xpose.msra.mxu0 0.0
        %3252 = vmatpush.xpose.msra.mxu0 0.0
        %3253 = vmatpush.xpose.msra.mxu0 %v3243
        %3254 = vmatpush.xpose.msra.mxu0 %v3241
        %3255 = vmatpush.xpose.msra.mxu0 %v3239
        %3256 = vmatpush.xpose.msra.mxu0 %v3237
        %3257 = vmatpush.xpose.msra.mxu0 %v3235
        %3258 = vmatpush.xpose.msra.mxu0 %v3233
        %3259 = vmatpush.xpose.msra.mxu0 %v3231
        %3260 = vmatpush.xpose.msra.mxu0 %v3229
        %3261 = vmatmul.f32.gmra.mxu0 %v3213
        %v3262 = vpop.f32.mrf.mxu0
        %v3263 = vadd.f32 0.0, %v3262
        %3264 = vmatmul.f32.gmra.mxu0 %v3215
        %v3265 = vpop.f32.mrf.mxu0
        %v3266 = vadd.f32 0.0, %v3265
        %3267 = vmatmul.f32.gmra.mxu0 %v3217
        %v3268 = vpop.f32.mrf.mxu0
        %v3269 = vadd.f32 0.0, %v3268
        %3270 = vmatmul.f32.gmra.mxu0 %v3219
        %v3271 = vpop.f32.mrf.mxu0
        %v3272 = vadd.f32 0.0, %v3271
        %3273 = vmatmul.f32.gmra.mxu0 %v3221
        %v3274 = vpop.f32.mrf.mxu0
        %v3275 = vadd.f32 0.0, %v3274
        %3276 = vmatmul.f32.gmra.mxu0 %v3223
        %v3277 = vpop.f32.mrf.mxu0
        %v3278 = vadd.f32 0.0, %v3277
        %3279 = vmatmul.f32.gmra.mxu0 %v3225
        %v3280 = vpop.f32.mrf.mxu0
        %v3281 = vadd.f32 0.0, %v3280
        %3282 = vmatmul.f32.gmra.mxu0 %v3227
        %v3283 = vpop.f32.mrf.mxu0
        %v3284 = vadd.f32 0.0, %v3283
        %3285 = vdwg.mxu0
        %v3286 = vsel %vm2676, %v3263, -inf
        %3287 = vmax.xlane.f32.xlu0 %v3286
        %v3288 = vpop.xlane.xlu0 %3287
        %v3289 = vsel %vm2676, %v3266, -inf
        %3290 = vmax.xlane.f32.xlu0 %v3289
        %v3291 = vpop.xlane.xlu0 %3290
        %v3292 = vsel %vm2676, %v3269, -inf
        %3293 = vmax.xlane.f32.xlu0 %v3292
        %v3294 = vpop.xlane.xlu0 %3293
        %v3295 = vsel %vm2676, %v3272, -inf
        %3296 = vmax.xlane.f32.xlu0 %v3295
        %v3297 = vpop.xlane.xlu0 %3296
        %v3298 = vsel %vm2676, %v3275, -inf
        %3299 = vmax.xlane.f32.xlu0 %v3298
        %v3300 = vpop.xlane.xlu0 %3299
        %v3301 = vsel %vm2676, %v3278, -inf
        %3302 = vmax.xlane.f32.xlu0 %v3301
        %v3303 = vpop.xlane.xlu0 %3302
        %v3304 = vsel %vm2676, %v3281, -inf
        %3305 = vmax.xlane.f32.xlu0 %v3304
        %v3306 = vpop.xlane.xlu0 %3305
        %v3307 = vsel %vm2676, %v3284, -inf
        %3308 = vmax.xlane.f32.xlu0 %v3307
        %v3309 = vpop.xlane.xlu0 %3308
        %v3310 = vsub.f32 %v3263, %v3288
        %v3311 = vsub.f32 %v3266, %v3291
        %v3312 = vsub.f32 %v3269, %v3294
        %v3313 = vsub.f32 %v3272, %v3297
        %v3314 = vsub.f32 %v3275, %v3300
        %v3315 = vsub.f32 %v3278, %v3303
        %v3316 = vsub.f32 %v3281, %v3306
        %v3317 = vsub.f32 %v3284, %v3309
        %v3318 = vmul.f32 %v3310, 1.442695
        %v3319 = vpow.pop %v3318
        %v3320 = vmul.f32 %v3311, 1.442695
        %v3321 = vpow.pop %v3320
        %v3322 = vmul.f32 %v3312, 1.442695
        %v3323 = vpow.pop %v3322
        %v3324 = vmul.f32 %v3313, 1.442695
        %v3325 = vpow.pop %v3324
        %v3326 = vmul.f32 %v3314, 1.442695
        %v3327 = vpow.pop %v3326
        %v3328 = vmul.f32 %v3315, 1.442695
        %v3329 = vpow.pop %v3328
        %v3330 = vmul.f32 %v3316, 1.442695
        %v3331 = vpow.pop %v3330
        %v3332 = vmul.f32 %v3317, 1.442695
        %v3333 = vpow.pop %v3332
        %v3334 = vsel %vm2676, %v3319, 0.0
        %3335 = vadd.xlane.f32.xlu0 %v3334
        %v3336 = vpop.xlane.xlu0 %3335
        %v3337 = vsel %vm2676, %v3321, 0.0
        %3338 = vadd.xlane.f32.xlu0 %v3337
        %v3339 = vpop.xlane.xlu0 %3338
        %v3340 = vsel %vm2676, %v3323, 0.0
        %3341 = vadd.xlane.f32.xlu0 %v3340
        %v3342 = vpop.xlane.xlu0 %3341
        %v3343 = vsel %vm2676, %v3325, 0.0
        %3344 = vadd.xlane.f32.xlu0 %v3343
        %v3345 = vpop.xlane.xlu0 %3344
        %v3346 = vsel %vm2676, %v3327, 0.0
        %3347 = vadd.xlane.f32.xlu0 %v3346
        %v3348 = vpop.xlane.xlu0 %3347
        %v3349 = vsel %vm2676, %v3329, 0.0
        %3350 = vadd.xlane.f32.xlu0 %v3349
        %v3351 = vpop.xlane.xlu0 %3350
        %v3352 = vsel %vm2676, %v3331, 0.0
        %3353 = vadd.xlane.f32.xlu0 %v3352
        %v3354 = vpop.xlane.xlu0 %3353
        %v3355 = vsel %vm2676, %v3333, 0.0
        %3356 = vadd.xlane.f32.xlu0 %v3355
        %v3357 = vpop.xlane.xlu0 %3356
        %v3358 = vrcp.pop %v3336
        %v3359 = vrcp.pop %v3339
        %v3360 = vrcp.pop %v3342
        %v3361 = vrcp.pop %v3345
        %v3362 = vrcp.pop %v3348
        %v3363 = vrcp.pop %v3351
        %v3364 = vrcp.pop %v3354
        %v3365 = vrcp.pop %v3357
        %v3366 = vmul.f32 %v3319, %v3358
        %v3367 = vmul.f32 %v3321, %v3359
        %v3368 = vmul.f32 %v3323, %v3360
        %v3369 = vmul.f32 %v3325, %v3361
        %v3370 = vmul.f32 %v3327, %v3362
        %v3371 = vmul.f32 %v3329, %v3363
        %v3372 = vmul.f32 %v3331, %v3364
        %v3373 = vmul.f32 %v3333, %v3365
        %v3374 = vpack.c.bf16 %v3367, %v3366
        %v3375 = vpack.c.bf16 %v3369, %v3368
        %v3376 = vpack.c.bf16 %v3371, %v3370
        %v3377 = vpack.c.bf16 %v3373, %v3372
        %3378 = vrot.lane.b32.xlu0 %v2769, 48
        %v3379 = vpop.permute.xlu0 %3378
        %3380 = vrot.lane.b32.xlu0 %v2770, 48
        %v3381 = vpop.permute.xlu0 %3380
        %3382 = vrot.lane.b32.xlu0 %v2771, 48
        %v3383 = vpop.permute.xlu0 %3382
        %3384 = vrot.lane.b32.xlu0 %v2772, 48
        %v3385 = vpop.permute.xlu0 %3384
        %v3391 = vsel %vm2676, %v3374, 0
        %v3394 = vsel %vm2676, %v3375, 0
        %v3397 = vsel %vm2676, %v3376, 0
        %v3400 = vsel %vm2676, %v3377, 0
        %3402 = vmatpush.bf16.msra.mxu0 0
        %3403 = vmatpush.bf16.msra.mxu0 0
        %3404 = vmatpush.bf16.msra.mxu0 0
        %3405 = vmatpush.bf16.msra.mxu0 0
        %3406 = vmatpush.bf16.msra.mxu0 %v3385
        %3407 = vmatpush.bf16.msra.mxu0 %v3383
        %3408 = vmatpush.bf16.msra.mxu0 %v3381
        %3409 = vmatpush.bf16.msra.mxu0 %v3379
        %3410 = vmatmul.bf16.gmra.mxu0 %v3391
        %v3411 = vpop.f32.mrf.mxu0
        %v3412 = vadd.f32 0.0, %v3411
        %v3413 = vpop.f32.mrf.mxu0
        %v3414 = vadd.f32 0.0, %v3413
        %3415 = vmatmul.bf16.gmra.mxu0 %v3394
        %v3416 = vpop.f32.mrf.mxu0
        %v3417 = vadd.f32 0.0, %v3416
        %v3418 = vpop.f32.mrf.mxu0
        %v3419 = vadd.f32 0.0, %v3418
        %3420 = vmatmul.bf16.gmra.mxu0 %v3397
        %v3421 = vpop.f32.mrf.mxu0
        %v3422 = vadd.f32 0.0, %v3421
        %v3423 = vpop.f32.mrf.mxu0
        %v3424 = vadd.f32 0.0, %v3423
        %3425 = vmatmul.bf16.gmra.mxu0 %v3400
        %v3426 = vpop.f32.mrf.mxu0
        %v3427 = vadd.f32 0.0, %v3426
        %v3428 = vpop.f32.mrf.mxu0
        %v3429 = vadd.f32 0.0, %v3428
        %3430 = vdwg.mxu0
        %v3431 = vld [vmem:[%s9 + $0x10] sm:$0xff]
        %v3432 = vpack.c.bf16 %v3431, %v3431
        %v3433 = vpack.c.bf16 %v3414, %v3412
        %v3434 = vpack.c.bf16 %v3419, %v3417
        %v3435 = vpack.c.bf16 %v3424, %v3422
        %v3436 = vpack.c.bf16 %v3429, %v3427
        %v3438 = vsel %vm834, %v3433, 0
        %v3441 = vsel %vm834, %v3434, 0
        %v3444 = vsel %vm834, %v3435, 0
        %v3447 = vsel %vm834, %v3436, 0
        %v3450 = vsel %vm3104, %v3432, 0
        %3452 = vmatpush.bf16.msra.mxu0 0
        %3453 = vmatpush.bf16.msra.mxu0 0
        %3454 = vmatpush.bf16.msra.mxu0 0
        %3455 = vmatpush.bf16.msra.mxu0 0
        %3456 = vmatpush.bf16.msra.mxu0 0
        %3457 = vmatpush.bf16.msra.mxu0 0
        %3458 = vmatpush.bf16.msra.mxu0 0
        %3459 = vmatpush.bf16.msra.mxu0 %v3450
        %3460 = vmatmul.bf16.gmra.mxu0 %v3438
        %v3461 = vpop.f32.mrf.mxu0
        %v3462 = vadd.f32 0.0, %v3461
        %v3463 = vpop.f32.mrf.mxu0
        %v3464 = vadd.f32 0.0, %v3463
        %3465 = vmatmul.bf16.gmra.mxu0 %v3441
        %v3466 = vpop.f32.mrf.mxu0
        %v3467 = vadd.f32 0.0, %v3466
        %v3468 = vpop.f32.mrf.mxu0
        %v3469 = vadd.f32 0.0, %v3468
        %3470 = vmatmul.bf16.gmra.mxu0 %v3444
        %v3471 = vpop.f32.mrf.mxu0
        %v3472 = vadd.f32 0.0, %v3471
        %v3473 = vpop.f32.mrf.mxu0
        %v3474 = vadd.f32 0.0, %v3473
        %3475 = vmatmul.bf16.gmra.mxu0 %v3447
        %v3476 = vpop.f32.mrf.mxu0
        %v3477 = vadd.f32 0.0, %v3476
        %v3478 = vpop.f32.mrf.mxu0
        %v3479 = vadd.f32 0.0, %v3478
        %3480 = vdwg.mxu0
        %v3481 = vadd.f32 %v3162, %v3462
        %v3482 = vadd.f32 %v3164, %v3464
        %v3483 = vadd.f32 %v3167, %v3467
        %v3484 = vadd.f32 %v3169, %v3469
        %v3485 = vadd.f32 %v3172, %v3472
        %v3486 = vadd.f32 %v3174, %v3474
        %v3487 = vadd.f32 %v3177, %v3477
        %v3488 = vadd.f32 %v3179, %v3479
        %3489 = vrot.lane.b32.xlu0 %v2563, 104
        %v3490 = vpop.permute.xlu0 %3489
        %3491 = vrot.lane.b32.xlu0 %v2564, 104
        %v3492 = vpop.permute.xlu0 %3491
        %3493 = vrot.lane.b32.xlu0 %v2565, 104
        %v3494 = vpop.permute.xlu0 %3493
        %3495 = vrot.lane.b32.xlu0 %v2566, 104
        %v3496 = vpop.permute.xlu0 %3495
        %3497 = vrot.lane.b32.xlu0 %v2567, 104
        %v3498 = vpop.permute.xlu0 %3497
        %3499 = vrot.lane.b32.xlu0 %v2568, 104
        %v3500 = vpop.permute.xlu0 %3499
        %3501 = vrot.lane.b32.xlu0 %v2569, 104
        %v3502 = vpop.permute.xlu0 %3501
        %3503 = vrot.lane.b32.xlu0 %v2570, 104
        %v3504 = vpop.permute.xlu0 %3503
        %3505 = vrot.lane.b32.xlu0 %v2544, 72
        %v3506 = vpop.permute.xlu0 %3505
        %3507 = vrot.lane.b32.xlu0 %v2546, 72
        %v3508 = vpop.permute.xlu0 %3507
        %3509 = vrot.lane.b32.xlu0 %v2549, 72
        %v3510 = vpop.permute.xlu0 %3509
        %3511 = vrot.lane.b32.xlu0 %v2551, 72
        %v3512 = vpop.permute.xlu0 %3511
        %3513 = vrot.lane.b32.xlu0 %v2554, 72
        %v3514 = vpop.permute.xlu0 %3513
        %3515 = vrot.lane.b32.xlu0 %v2556, 72
        %v3516 = vpop.permute.xlu0 %3515
        %3517 = vrot.lane.b32.xlu0 %v2559, 72
        %v3518 = vpop.permute.xlu0 %3517
        %3519 = vrot.lane.b32.xlu0 %v2561, 72
        %v3520 = vpop.permute.xlu0 %3519
        %v3521 = vsel %vm834, %v3490, 0
        %v3523 = vsel %vm834, %v3492, 0
        %v3525 = vsel %vm834, %v3494, 0
        %v3527 = vsel %vm834, %v3496, 0
        %v3529 = vsel %vm834, %v3498, 0
        %v3531 = vsel %vm834, %v3500, 0
        %v3533 = vsel %vm834, %v3502, 0
        %v3535 = vsel %vm834, %v3504, 0
        %v3537 = vsel %vm834, %v3506, 0
        %v3539 = vsel %vm834, %v3508, 0
        %v3541 = vsel %vm834, %v3510, 0
        %v3543 = vsel %vm834, %v3512, 0
        %v3545 = vsel %vm834, %v3514, 0
        %v3547 = vsel %vm834, %v3516, 0
        %v3549 = vsel %vm834, %v3518, 0
        %v3551 = vsel %vm834, %v3520, 0
        %3553 = vmatpush.xpose.msra.mxu0 0.0
        %3554 = vmatpush.xpose.msra.mxu0 0.0
        %3555 = vmatpush.xpose.msra.mxu0 0.0
        %3556 = vmatpush.xpose.msra.mxu0 0.0
        %3557 = vmatpush.xpose.msra.mxu0 0.0
        %3558 = vmatpush.xpose.msra.mxu0 0.0
        %3559 = vmatpush.xpose.msra.mxu0 0.0
        %3560 = vmatpush.xpose.msra.mxu0 0.0
        %3561 = vmatpush.xpose.msra.mxu0 %v3551
        %3562 = vmatpush.xpose.msra.mxu0 %v3549
        %3563 = vmatpush.xpose.msra.mxu0 %v3547
        %3564 = vmatpush.xpose.msra.mxu0 %v3545
        %3565 = vmatpush.xpose.msra.mxu0 %v3543
        %3566 = vmatpush.xpose.msra.mxu0 %v3541
        %3567 = vmatpush.xpose.msra.mxu0 %v3539
        %3568 = vmatpush.xpose.msra.mxu0 %v3537
        %3569 = vmatmul.f32.gmra.mxu0 %v3521
        %v3570 = vpop.f32.mrf.mxu0
        %v3571 = vadd.f32 0.0, %v3570
        %3572 = vmatmul.f32.gmra.mxu0 %v3523
        %v3573 = vpop.f32.mrf.mxu0
        %v3574 = vadd.f32 0.0, %v3573
        %3575 = vmatmul.f32.gmra.mxu0 %v3525
        %v3576 = vpop.f32.mrf.mxu0
        %v3577 = vadd.f32 0.0, %v3576
        %3578 = vmatmul.f32.gmra.mxu0 %v3527
        %v3579 = vpop.f32.mrf.mxu0
        %v3580 = vadd.f32 0.0, %v3579
        %3581 = vmatmul.f32.gmra.mxu0 %v3529
        %v3582 = vpop.f32.mrf.mxu0
        %v3583 = vadd.f32 0.0, %v3582
        %3584 = vmatmul.f32.gmra.mxu0 %v3531
        %v3585 = vpop.f32.mrf.mxu0
        %v3586 = vadd.f32 0.0, %v3585
        %3587 = vmatmul.f32.gmra.mxu0 %v3533
        %v3588 = vpop.f32.mrf.mxu0
        %v3589 = vadd.f32 0.0, %v3588
        %3590 = vmatmul.f32.gmra.mxu0 %v3535
        %v3591 = vpop.f32.mrf.mxu0
        %v3592 = vadd.f32 0.0, %v3591
        %3593 = vdwg.mxu0
        %v3594 = vsel %vm2676, %v3571, -inf
        %3595 = vmax.xlane.f32.xlu0 %v3594
        %v3596 = vpop.xlane.xlu0 %3595
        %v3597 = vsel %vm2676, %v3574, -inf
        %3598 = vmax.xlane.f32.xlu0 %v3597
        %v3599 = vpop.xlane.xlu0 %3598
        %v3600 = vsel %vm2676, %v3577, -inf
        %3601 = vmax.xlane.f32.xlu0 %v3600
        %v3602 = vpop.xlane.xlu0 %3601
        %v3603 = vsel %vm2676, %v3580, -inf
        %3604 = vmax.xlane.f32.xlu0 %v3603
        %v3605 = vpop.xlane.xlu0 %3604
        %v3606 = vsel %vm2676, %v3583, -inf
        %3607 = vmax.xlane.f32.xlu0 %v3606
        %v3608 = vpop.xlane.xlu0 %3607
        %v3609 = vsel %vm2676, %v3586, -inf
        %3610 = vmax.xlane.f32.xlu0 %v3609
        %v3611 = vpop.xlane.xlu0 %3610
        %v3612 = vsel %vm2676, %v3589, -inf
        %3613 = vmax.xlane.f32.xlu0 %v3612
        %v3614 = vpop.xlane.xlu0 %3613
        %v3615 = vsel %vm2676, %v3592, -inf
        %3616 = vmax.xlane.f32.xlu0 %v3615
        %v3617 = vpop.xlane.xlu0 %3616
        %v3618 = vsub.f32 %v3571, %v3596
        %v3619 = vsub.f32 %v3574, %v3599
        %v3620 = vsub.f32 %v3577, %v3602
        %v3621 = vsub.f32 %v3580, %v3605
        %v3622 = vsub.f32 %v3583, %v3608
        %v3623 = vsub.f32 %v3586, %v3611
        %v3624 = vsub.f32 %v3589, %v3614
        %v3625 = vsub.f32 %v3592, %v3617
        %v3626 = vmul.f32 %v3618, 1.442695
        %v3627 = vpow.pop %v3626
        %v3628 = vmul.f32 %v3619, 1.442695
        %v3629 = vpow.pop %v3628
        %v3630 = vmul.f32 %v3620, 1.442695
        %v3631 = vpow.pop %v3630
        %v3632 = vmul.f32 %v3621, 1.442695
        %v3633 = vpow.pop %v3632
        %v3634 = vmul.f32 %v3622, 1.442695
        %v3635 = vpow.pop %v3634
        %v3636 = vmul.f32 %v3623, 1.442695
        %v3637 = vpow.pop %v3636
        %v3638 = vmul.f32 %v3624, 1.442695
        %v3639 = vpow.pop %v3638
        %v3640 = vmul.f32 %v3625, 1.442695
        %v3641 = vpow.pop %v3640
        %v3642 = vsel %vm2676, %v3627, 0.0
        %3643 = vadd.xlane.f32.xlu0 %v3642
        %v3644 = vpop.xlane.xlu0 %3643
        %v3645 = vsel %vm2676, %v3629, 0.0
        %3646 = vadd.xlane.f32.xlu0 %v3645
        %v3647 = vpop.xlane.xlu0 %3646
        %v3648 = vsel %vm2676, %v3631, 0.0
        %3649 = vadd.xlane.f32.xlu0 %v3648
        %v3650 = vpop.xlane.xlu0 %3649
        %v3651 = vsel %vm2676, %v3633, 0.0
        %3652 = vadd.xlane.f32.xlu0 %v3651
        %v3653 = vpop.xlane.xlu0 %3652
        %v3654 = vsel %vm2676, %v3635, 0.0
        %3655 = vadd.xlane.f32.xlu0 %v3654
        %v3656 = vpop.xlane.xlu0 %3655
        %v3657 = vsel %vm2676, %v3637, 0.0
        %3658 = vadd.xlane.f32.xlu0 %v3657
        %v3659 = vpop.xlane.xlu0 %3658
        %v3660 = vsel %vm2676, %v3639, 0.0
        %3661 = vadd.xlane.f32.xlu0 %v3660
        %v3662 = vpop.xlane.xlu0 %3661
        %v3663 = vsel %vm2676, %v3641, 0.0
        %3664 = vadd.xlane.f32.xlu0 %v3663
        %v3665 = vpop.xlane.xlu0 %3664
        %v3666 = vrcp.pop %v3644
        %v3667 = vrcp.pop %v3647
        %v3668 = vrcp.pop %v3650
        %v3669 = vrcp.pop %v3653
        %v3670 = vrcp.pop %v3656
        %v3671 = vrcp.pop %v3659
        %v3672 = vrcp.pop %v3662
        %v3673 = vrcp.pop %v3665
        %v3674 = vmul.f32 %v3627, %v3666
        %v3675 = vmul.f32 %v3629, %v3667
        %v3676 = vmul.f32 %v3631, %v3668
        %v3677 = vmul.f32 %v3633, %v3669
        %v3678 = vmul.f32 %v3635, %v3670
        %v3679 = vmul.f32 %v3637, %v3671
        %v3680 = vmul.f32 %v3639, %v3672
        %v3681 = vmul.f32 %v3641, %v3673
        %v3682 = vpack.c.bf16 %v3675, %v3674
        %v3683 = vpack.c.bf16 %v3677, %v3676
        %v3684 = vpack.c.bf16 %v3679, %v3678
        %v3685 = vpack.c.bf16 %v3681, %v3680
        %3686 = vrot.lane.b32.xlu0 %v2769, 40
        %v3687 = vpop.permute.xlu0 %3686
        %3688 = vrot.lane.b32.xlu0 %v2770, 40
        %v3689 = vpop.permute.xlu0 %3688
        %3690 = vrot.lane.b32.xlu0 %v2771, 40
        %v3691 = vpop.permute.xlu0 %3690
        %3692 = vrot.lane.b32.xlu0 %v2772, 40
        %v3693 = vpop.permute.xlu0 %3692
        %v3699 = vsel %vm2676, %v3682, 0
        %v3702 = vsel %vm2676, %v3683, 0
        %v3705 = vsel %vm2676, %v3684, 0
        %v3708 = vsel %vm2676, %v3685, 0
        %3710 = vmatpush.bf16.msra.mxu0 0
        %3711 = vmatpush.bf16.msra.mxu0 0
        %3712 = vmatpush.bf16.msra.mxu0 0
        %3713 = vmatpush.bf16.msra.mxu0 0
        %3714 = vmatpush.bf16.msra.mxu0 %v3693
        %3715 = vmatpush.bf16.msra.mxu0 %v3691
        %3716 = vmatpush.bf16.msra.mxu0 %v3689
        %3717 = vmatpush.bf16.msra.mxu0 %v3687
        %3718 = vmatmul.bf16.gmra.mxu0 %v3699
        %v3719 = vpop.f32.mrf.mxu0
        %v3720 = vadd.f32 0.0, %v3719
        %v3721 = vpop.f32.mrf.mxu0
        %v3722 = vadd.f32 0.0, %v3721
        %3723 = vmatmul.bf16.gmra.mxu0 %v3702
        %v3724 = vpop.f32.mrf.mxu0
        %v3725 = vadd.f32 0.0, %v3724
        %v3726 = vpop.f32.mrf.mxu0
        %v3727 = vadd.f32 0.0, %v3726
        %3728 = vmatmul.bf16.gmra.mxu0 %v3705
        %v3729 = vpop.f32.mrf.mxu0
        %v3730 = vadd.f32 0.0, %v3729
        %v3731 = vpop.f32.mrf.mxu0
        %v3732 = vadd.f32 0.0, %v3731
        %3733 = vmatmul.bf16.gmra.mxu0 %v3708
        %v3734 = vpop.f32.mrf.mxu0
        %v3735 = vadd.f32 0.0, %v3734
        %v3736 = vpop.f32.mrf.mxu0
        %v3737 = vadd.f32 0.0, %v3736
        %3738 = vdwg.mxu0
        %v3739 = vld [vmem:[%s9 + $0x18] sm:$0xff]
        %v3740 = vpack.c.bf16 %v3739, %v3739
        %v3741 = vpack.c.bf16 %v3722, %v3720
        %v3742 = vpack.c.bf16 %v3727, %v3725
        %v3743 = vpack.c.bf16 %v3732, %v3730
        %v3744 = vpack.c.bf16 %v3737, %v3735
        %v3746 = vsel %vm834, %v3741, 0
        %v3749 = vsel %vm834, %v3742, 0
        %v3752 = vsel %vm834, %v3743, 0
        %v3755 = vsel %vm834, %v3744, 0
        %v3758 = vsel %vm3104, %v3740, 0
        %3760 = vmatpush.bf16.msra.mxu0 0
        %3761 = vmatpush.bf16.msra.mxu0 0
        %3762 = vmatpush.bf16.msra.mxu0 0
        %3763 = vmatpush.bf16.msra.mxu0 0
        %3764 = vmatpush.bf16.msra.mxu0 0
        %3765 = vmatpush.bf16.msra.mxu0 0
        %3766 = vmatpush.bf16.msra.mxu0 0
        %3767 = vmatpush.bf16.msra.mxu0 %v3758
        %3768 = vmatmul.bf16.gmra.mxu0 %v3746
        %v3769 = vpop.f32.mrf.mxu0
        %v3770 = vadd.f32 0.0, %v3769
        %v3771 = vpop.f32.mrf.mxu0
        %v3772 = vadd.f32 0.0, %v3771
        %3773 = vmatmul.bf16.gmra.mxu0 %v3749
        %v3774 = vpop.f32.mrf.mxu0
        %v3775 = vadd.f32 0.0, %v3774
        %v3776 = vpop.f32.mrf.mxu0
        %v3777 = vadd.f32 0.0, %v3776
        %3778 = vmatmul.bf16.gmra.mxu0 %v3752
        %v3779 = vpop.f32.mrf.mxu0
        %v3780 = vadd.f32 0.0, %v3779
        %v3781 = vpop.f32.mrf.mxu0
        %v3782 = vadd.f32 0.0, %v3781
        %3783 = vmatmul.bf16.gmra.mxu0 %v3755
        %v3784 = vpop.f32.mrf.mxu0
        %v3785 = vadd.f32 0.0, %v3784
        %v3786 = vpop.f32.mrf.mxu0
        %v3787 = vadd.f32 0.0, %v3786
        %3788 = vdwg.mxu0
        %v3789 = vadd.f32 %v3481, %v3770
        %v3790 = vadd.f32 %v3482, %v3772
        %v3791 = vadd.f32 %v3483, %v3775
        %v3792 = vadd.f32 %v3484, %v3777
        %v3793 = vadd.f32 %v3485, %v3780
        %v3794 = vadd.f32 %v3486, %v3782
        %v3795 = vadd.f32 %v3487, %v3785
        %v3796 = vadd.f32 %v3488, %v3787
        %v3797 = vld [vmem:[%s10] sm:$0x1]
        %v3799 = vperm.slane %v3797, 0
        %v3801 = vadd.f32 %v3789, %v3799
        %v3802 = vadd.f32 %v3790, %v3799
        %v3803 = vadd.f32 %v3791, %v3799
        %v3804 = vadd.f32 %v3792, %v3799
        %v3805 = vadd.f32 %v3793, %v3799
        %v3806 = vadd.f32 %v3794, %v3799
        %v3807 = vadd.f32 %v3795, %v3799
        %v3808 = vadd.f32 %v3796, %v3799
        %v3809 = vld [vmem:[%s11] sm:$0x1]
        %v3810 = vld [vmem:[%s12] sm:$0x1]
        %v3811 = vld [vmem:[%s13] sm:$0xff]
        %v3812 = vld [vmem:[%s13 + $0x8] sm:$0xff]
        %v3813 = vld [vmem:[%s13 + $0x10] sm:$0xff]
        %v3814 = vld [vmem:[%s13 + $0x18] sm:$0xff]
        %v3815 = vsel %vm616, %v3801, 0.0
        %v3816 = vsel %vm616, %v3802, 0.0
        %v3817 = vadd.f32 %v3815, %v3816
        %v3818 = vsel %vm616, %v3803, 0.0
        %v3819 = vadd.f32 %v3817, %v3818
        %v3820 = vsel %vm616, %v3804, 0.0
        %v3821 = vadd.f32 %v3819, %v3820
        %v3822 = vsel %vm616, %v3805, 0.0
        %v3823 = vadd.f32 %v3821, %v3822
        %v3824 = vsel %vm616, %v3806, 0.0
        %v3825 = vadd.f32 %v3823, %v3824
        %v3826 = vsel %vm616, %v3807, 0.0
        %v3827 = vadd.f32 %v3825, %v3826
        %v3828 = vsel %vm616, %v3808, 0.0
        %v3829 = vadd.f32 %v3827, %v3828
        %v3830 = vrot.slane %v3829, 4
        %v3831 = vadd.f32 %v3829, %v3830
        %v3832 = vrot.slane %v3831, 2
        %v3833 = vadd.f32 %v3831, %v3832
        %v3834 = vrot.slane %v3833, 1
        %v3835 = vadd.f32 %v3833, %v3834
        %v3837 = vsel %vm616, %v3835, 0
        %3839 = vmatpush.msra.mxu0 0.0
        %3840 = vmatpush.msra.mxu0 0.0
        %3841 = vmatpush.msra.mxu0 0.0
        %3842 = vmatpush.msra.mxu0 0.0
        %3843 = vmatpush.msra.mxu0 0.0
        %3844 = vmatpush.msra.mxu0 0.0
        %3845 = vmatpush.msra.mxu0 0.0
        %3846 = vmatpush.msra.mxu0 0.0
        %3847 = vmatpush.msra.mxu0 0.0
        %3848 = vmatpush.msra.mxu0 0.0
        %3849 = vmatpush.msra.mxu0 0.0
        %3850 = vmatpush.msra.mxu0 0.0
        %v3851 = vand.u32 %v3814, 4294901760
        %3852 = vmatpush.msra.mxu0 %v3851
        %v3853 = vand.u32 %v3813, 4294901760
        %3854 = vmatpush.msra.mxu0 %v3853
        %v3855 = vand.u32 %v3812, 4294901760
        %3856 = vmatpush.msra.mxu0 %v3855
        %v3857 = vand.u32 %v3811, 4294901760
        %3858 = vmatpush.msra.mxu0 %v3857
        %v3859 = vand.u32 %v3837, 4294901760
        %v3860 = vsub.f32 %v3837, %v3859
        %v3861 = vand.u32 %v3860, 4294901760
        %v3862 = vsub.f32 %v3860, %v3861
        %v3863 = vand.u32 %v3862, 4294901760
        %3864 = vmatmul.f32.gmra.mxu0 %v3863
        %v3865 = vpop.f32.mrf.mxu0
        %v3866 = vadd.f32 0.0, %v3865
        %3867 = vdwg.mxu0
        %3868 = vmatpush.msra.mxu0 0.0
        %3869 = vmatpush.msra.mxu0 0.0
        %3870 = vmatpush.msra.mxu0 0.0
        %3871 = vmatpush.msra.mxu0 0.0
        %3872 = vmatpush.msra.mxu0 0.0
        %3873 = vmatpush.msra.mxu0 0.0
        %3874 = vmatpush.msra.mxu0 0.0
        %3875 = vmatpush.msra.mxu0 0.0
        %3876 = vmatpush.msra.mxu0 0.0
        %3877 = vmatpush.msra.mxu0 0.0
        %3878 = vmatpush.msra.mxu0 0.0
        %3879 = vmatpush.msra.mxu0 0.0
        %v3880 = vand.u32 %v3814, 4294901760
        %v3881 = vsub.f32 %v3814, %v3880
        %v3882 = vand.u32 %v3881, 4294901760
        %v3883 = vsub.f32 %v3881, %v3882
        %v3884 = vand.u32 %v3883, 4294901760
        %3885 = vmatpush.msra.mxu0 %v3884
        %v3886 = vand.u32 %v3813, 4294901760
        %v3887 = vsub.f32 %v3813, %v3886
        %v3888 = vand.u32 %v3887, 4294901760
        %v3889 = vsub.f32 %v3887, %v3888
        %v3890 = vand.u32 %v3889, 4294901760
        %3891 = vmatpush.msra.mxu0 %v3890
        %v3892 = vand.u32 %v3812, 4294901760
        %v3893 = vsub.f32 %v3812, %v3892
        %v3894 = vand.u32 %v3893, 4294901760
        %v3895 = vsub.f32 %v3893, %v3894
        %v3896 = vand.u32 %v3895, 4294901760
        %3897 = vmatpush.msra.mxu0 %v3896
        %v3898 = vand.u32 %v3811, 4294901760
        %v3899 = vsub.f32 %v3811, %v3898
        %v3900 = vand.u32 %v3899, 4294901760
        %v3901 = vsub.f32 %v3899, %v3900
        %v3902 = vand.u32 %v3901, 4294901760
        %3903 = vmatpush.msra.mxu0 %v3902
        %v3904 = vand.u32 %v3837, 4294901760
        %3905 = vmatmul.f32.gmra.mxu0 %v3904
        %v3906 = vpop.f32.mrf.mxu0
        %v3907 = vadd.f32 %v3866, %v3906
        %3908 = vdwg.mxu0
        %3909 = vmatpush.msra.mxu0 0.0
        %3910 = vmatpush.msra.mxu0 0.0
        %3911 = vmatpush.msra.mxu0 0.0
        %3912 = vmatpush.msra.mxu0 0.0
        %3913 = vmatpush.msra.mxu0 0.0
        %3914 = vmatpush.msra.mxu0 0.0
        %3915 = vmatpush.msra.mxu0 0.0
        %3916 = vmatpush.msra.mxu0 0.0
        %3917 = vmatpush.msra.mxu0 0.0
        %3918 = vmatpush.msra.mxu0 0.0
        %3919 = vmatpush.msra.mxu0 0.0
        %3920 = vmatpush.msra.mxu0 0.0
        %v3921 = vand.u32 %v3814, 4294901760
        %v3922 = vsub.f32 %v3814, %v3921
        %3923 = vmatpush.msra.mxu0 %v3922
        %v3924 = vand.u32 %v3813, 4294901760
        %v3925 = vsub.f32 %v3813, %v3924
        %3926 = vmatpush.msra.mxu0 %v3925
        %v3927 = vand.u32 %v3812, 4294901760
        %v3928 = vsub.f32 %v3812, %v3927
        %3929 = vmatpush.msra.mxu0 %v3928
        %v3930 = vand.u32 %v3811, 4294901760
        %v3931 = vsub.f32 %v3811, %v3930
        %3932 = vmatpush.msra.mxu0 %v3931
        %v3933 = vand.u32 %v3837, 4294901760
        %v3934 = vsub.f32 %v3837, %v3933
        %3935 = vmatmul.f32.gmra.mxu0 %v3934
        %v3936 = vpop.f32.mrf.mxu0
        %v3937 = vadd.f32 %v3907, %v3936
        %3938 = vdwg.mxu0
        %3939 = vmatpush.msra.mxu0 0.0
        %3940 = vmatpush.msra.mxu0 0.0
        %3941 = vmatpush.msra.mxu0 0.0
        %3942 = vmatpush.msra.mxu0 0.0
        %3943 = vmatpush.msra.mxu0 0.0
        %3944 = vmatpush.msra.mxu0 0.0
        %3945 = vmatpush.msra.mxu0 0.0
        %3946 = vmatpush.msra.mxu0 0.0
        %3947 = vmatpush.msra.mxu0 0.0
        %3948 = vmatpush.msra.mxu0 0.0
        %3949 = vmatpush.msra.mxu0 0.0
        %3950 = vmatpush.msra.mxu0 0.0
        %v3951 = vand.u32 %v3814, 4294901760
        %3952 = vmatpush.msra.mxu0 %v3951
        %v3953 = vand.u32 %v3813, 4294901760
        %3954 = vmatpush.msra.mxu0 %v3953
        %v3955 = vand.u32 %v3812, 4294901760
        %3956 = vmatpush.msra.mxu0 %v3955
        %v3957 = vand.u32 %v3811, 4294901760
        %3958 = vmatpush.msra.mxu0 %v3957
        %v3959 = vand.u32 %v3837, 4294901760
        %v3960 = vsub.f32 %v3837, %v3959
        %v3961 = vand.u32 %v3960, 4294901760
        %3962 = vmatmul.f32.gmra.mxu0 %v3961
        %v3963 = vpop.f32.mrf.mxu0
        %v3964 = vadd.f32 %v3937, %v3963
        %3965 = vdwg.mxu0
        %3966 = vmatpush.msra.mxu0 0.0
        %3967 = vmatpush.msra.mxu0 0.0
        %3968 = vmatpush.msra.mxu0 0.0
        %3969 = vmatpush.msra.mxu0 0.0
        %3970 = vmatpush.msra.mxu0 0.0
        %3971 = vmatpush.msra.mxu0 0.0
        %3972 = vmatpush.msra.mxu0 0.0
        %3973 = vmatpush.msra.mxu0 0.0
        %3974 = vmatpush.msra.mxu0 0.0
        %3975 = vmatpush.msra.mxu0 0.0
        %3976 = vmatpush.msra.mxu0 0.0
        %3977 = vmatpush.msra.mxu0 0.0
        %v3978 = vand.u32 %v3814, 4294901760
        %v3979 = vsub.f32 %v3814, %v3978
        %v3980 = vand.u32 %v3979, 4294901760
        %3981 = vmatpush.msra.mxu0 %v3980
        %v3982 = vand.u32 %v3813, 4294901760
        %v3983 = vsub.f32 %v3813, %v3982
        %v3984 = vand.u32 %v3983, 4294901760
        %3985 = vmatpush.msra.mxu0 %v3984
        %v3986 = vand.u32 %v3812, 4294901760
        %v3987 = vsub.f32 %v3812, %v3986
        %v3988 = vand.u32 %v3987, 4294901760
        %3989 = vmatpush.msra.mxu0 %v3988
        %v3990 = vand.u32 %v3811, 4294901760
        %v3991 = vsub.f32 %v3811, %v3990
        %v3992 = vand.u32 %v3991, 4294901760
        %3993 = vmatpush.msra.mxu0 %v3992
        %v3994 = vand.u32 %v3837, 4294901760
        %3995 = vmatmul.f32.gmra.mxu0 %v3994
        %v3996 = vpop.f32.mrf.mxu0
        %v3997 = vadd.f32 %v3964, %v3996
        %3998 = vdwg.mxu0
        %3999 = vmatpush.msra.mxu0 0.0
        %4000 = vmatpush.msra.mxu0 0.0
        %4001 = vmatpush.msra.mxu0 0.0
        %4002 = vmatpush.msra.mxu0 0.0
        %4003 = vmatpush.msra.mxu0 0.0
        %4004 = vmatpush.msra.mxu0 0.0
        %4005 = vmatpush.msra.mxu0 0.0
        %4006 = vmatpush.msra.mxu0 0.0
        %4007 = vmatpush.msra.mxu0 0.0
        %4008 = vmatpush.msra.mxu0 0.0
        %4009 = vmatpush.msra.mxu0 0.0
        %4010 = vmatpush.msra.mxu0 0.0
        %v4011 = vand.u32 %v3814, 4294901760
        %4012 = vmatpush.msra.mxu0 %v4011
        %v4013 = vand.u32 %v3813, 4294901760
        %4014 = vmatpush.msra.mxu0 %v4013
        %v4015 = vand.u32 %v3812, 4294901760
        %4016 = vmatpush.msra.mxu0 %v4015
        %v4017 = vand.u32 %v3811, 4294901760
        %4018 = vmatpush.msra.mxu0 %v4017
        %v4019 = vand.u32 %v3837, 4294901760
        %4020 = vmatmul.f32.gmra.mxu0 %v4019
        %v4021 = vpop.f32.mrf.mxu0
        %v4022 = vadd.f32 %v3997, %v4021
        %4023 = vdwg.mxu0
        %v4024 = vmul.f32 %v4022, %v832
        %v4026 = vsel %vm834, %v4024, 0
        %v4029 = vsel %vm834, %v3811, 0
        %v4032 = vsel %vm834, %v3812, 0
        %v4035 = vsel %vm834, %v3813, 0
        %v4038 = vsel %vm834, %v3814, 0
        %4040 = vmatpush.xpose.msra.mxu0 0.0
        %4041 = vmatpush.xpose.msra.mxu0 0.0
        %4042 = vmatpush.xpose.msra.mxu0 0.0
        %4043 = vmatpush.xpose.msra.mxu0 0.0
        %4044 = vmatpush.xpose.msra.mxu0 0.0
        %4045 = vmatpush.xpose.msra.mxu0 0.0
        %4046 = vmatpush.xpose.msra.mxu0 0.0
        %4047 = vmatpush.xpose.msra.mxu0 0.0
        %4048 = vmatpush.xpose.msra.mxu0 0.0
        %4049 = vmatpush.xpose.msra.mxu0 0.0
        %4050 = vmatpush.xpose.msra.mxu0 0.0
        %4051 = vmatpush.xpose.msra.mxu0 0.0
        %v4052 = vand.u32 %v4038, 4294901760
        %4053 = vmatpush.xpose.msra.mxu0 %v4052
        %v4054 = vand.u32 %v4035, 4294901760
        %4055 = vmatpush.xpose.msra.mxu0 %v4054
        %v4056 = vand.u32 %v4032, 4294901760
        %4057 = vmatpush.xpose.msra.mxu0 %v4056
        %v4058 = vand.u32 %v4029, 4294901760
        %4059 = vmatpush.xpose.msra.mxu0 %v4058
        %v4060 = vand.u32 %v4026, 4294901760
        %v4061 = vsub.f32 %v4026, %v4060
        %v4062 = vand.u32 %v4061, 4294901760
        %v4063 = vsub.f32 %v4061, %v4062
        %v4064 = vand.u32 %v4063, 4294901760
        %4065 = vmatmul.f32.gmra.mxu0 %v4064
        %v4066 = vpop.f32.mrf.mxu0
        %v4067 = vadd.f32 0.0, %v4066
        %4068 = vdwg.mxu0
        %4069 = vmatpush.xpose.msra.mxu0 0.0
        %4070 = vmatpush.xpose.msra.mxu0 0.0
        %4071 = vmatpush.xpose.msra.mxu0 0.0
        %4072 = vmatpush.xpose.msra.mxu0 0.0
        %4073 = vmatpush.xpose.msra.mxu0 0.0
        %4074 = vmatpush.xpose.msra.mxu0 0.0
        %4075 = vmatpush.xpose.msra.mxu0 0.0
        %4076 = vmatpush.xpose.msra.mxu0 0.0
        %4077 = vmatpush.xpose.msra.mxu0 0.0
        %4078 = vmatpush.xpose.msra.mxu0 0.0
        %4079 = vmatpush.xpose.msra.mxu0 0.0
        %4080 = vmatpush.xpose.msra.mxu0 0.0
        %v4081 = vand.u32 %v4038, 4294901760
        %v4082 = vsub.f32 %v4038, %v4081
        %v4083 = vand.u32 %v4082, 4294901760
        %v4084 = vsub.f32 %v4082, %v4083
        %v4085 = vand.u32 %v4084, 4294901760
        %4086 = vmatpush.xpose.msra.mxu0 %v4085
        %v4087 = vand.u32 %v4035, 4294901760
        %v4088 = vsub.f32 %v4035, %v4087
        %v4089 = vand.u32 %v4088, 4294901760
        %v4090 = vsub.f32 %v4088, %v4089
        %v4091 = vand.u32 %v4090, 4294901760
        %4092 = vmatpush.xpose.msra.mxu0 %v4091
        %v4093 = vand.u32 %v4032, 4294901760
        %v4094 = vsub.f32 %v4032, %v4093
        %v4095 = vand.u32 %v4094, 4294901760
        %v4096 = vsub.f32 %v4094, %v4095
        %v4097 = vand.u32 %v4096, 4294901760
        %4098 = vmatpush.xpose.msra.mxu0 %v4097
        %v4099 = vand.u32 %v4029, 4294901760
        %v4100 = vsub.f32 %v4029, %v4099
        %v4101 = vand.u32 %v4100, 4294901760
        %v4102 = vsub.f32 %v4100, %v4101
        %v4103 = vand.u32 %v4102, 4294901760
        %4104 = vmatpush.xpose.msra.mxu0 %v4103
        %v4105 = vand.u32 %v4026, 4294901760
        %4106 = vmatmul.f32.gmra.mxu0 %v4105
        %v4107 = vpop.f32.mrf.mxu0
        %v4108 = vadd.f32 %v4067, %v4107
        %4109 = vdwg.mxu0
        %4110 = vmatpush.xpose.msra.mxu0 0.0
        %4111 = vmatpush.xpose.msra.mxu0 0.0
        %4112 = vmatpush.xpose.msra.mxu0 0.0
        %4113 = vmatpush.xpose.msra.mxu0 0.0
        %4114 = vmatpush.xpose.msra.mxu0 0.0
        %4115 = vmatpush.xpose.msra.mxu0 0.0
        %4116 = vmatpush.xpose.msra.mxu0 0.0
        %4117 = vmatpush.xpose.msra.mxu0 0.0
        %4118 = vmatpush.xpose.msra.mxu0 0.0
        %4119 = vmatpush.xpose.msra.mxu0 0.0
        %4120 = vmatpush.xpose.msra.mxu0 0.0
        %4121 = vmatpush.xpose.msra.mxu0 0.0
        %v4122 = vand.u32 %v4038, 4294901760
        %v4123 = vsub.f32 %v4038, %v4122
        %4124 = vmatpush.xpose.msra.mxu0 %v4123
        %v4125 = vand.u32 %v4035, 4294901760
        %v4126 = vsub.f32 %v4035, %v4125
        %4127 = vmatpush.xpose.msra.mxu0 %v4126
        %v4128 = vand.u32 %v4032, 4294901760
        %v4129 = vsub.f32 %v4032, %v4128
        %4130 = vmatpush.xpose.msra.mxu0 %v4129
        %v4131 = vand.u32 %v4029, 4294901760
        %v4132 = vsub.f32 %v4029, %v4131
        %4133 = vmatpush.xpose.msra.mxu0 %v4132
        %v4134 = vand.u32 %v4026, 4294901760
        %v4135 = vsub.f32 %v4026, %v4134
        %4136 = vmatmul.f32.gmra.mxu0 %v4135
        %v4137 = vpop.f32.mrf.mxu0
        %v4138 = vadd.f32 %v4108, %v4137
        %4139 = vdwg.mxu0
        %4140 = vmatpush.xpose.msra.mxu0 0.0
        %4141 = vmatpush.xpose.msra.mxu0 0.0
        %4142 = vmatpush.xpose.msra.mxu0 0.0
        %4143 = vmatpush.xpose.msra.mxu0 0.0
        %4144 = vmatpush.xpose.msra.mxu0 0.0
        %4145 = vmatpush.xpose.msra.mxu0 0.0
        %4146 = vmatpush.xpose.msra.mxu0 0.0
        %4147 = vmatpush.xpose.msra.mxu0 0.0
        %4148 = vmatpush.xpose.msra.mxu0 0.0
        %4149 = vmatpush.xpose.msra.mxu0 0.0
        %4150 = vmatpush.xpose.msra.mxu0 0.0
        %4151 = vmatpush.xpose.msra.mxu0 0.0
        %v4152 = vand.u32 %v4038, 4294901760
        %4153 = vmatpush.xpose.msra.mxu0 %v4152
        %v4154 = vand.u32 %v4035, 4294901760
        %4155 = vmatpush.xpose.msra.mxu0 %v4154
        %v4156 = vand.u32 %v4032, 4294901760
        %4157 = vmatpush.xpose.msra.mxu0 %v4156
        %v4158 = vand.u32 %v4029, 4294901760
        %4159 = vmatpush.xpose.msra.mxu0 %v4158
        %v4160 = vand.u32 %v4026, 4294901760
        %v4161 = vsub.f32 %v4026, %v4160
        %v4162 = vand.u32 %v4161, 4294901760
        %4163 = vmatmul.f32.gmra.mxu0 %v4162
        %v4164 = vpop.f32.mrf.mxu0
        %v4165 = vadd.f32 %v4138, %v4164
        %4166 = vdwg.mxu0
        %4167 = vmatpush.xpose.msra.mxu0 0.0
        %4168 = vmatpush.xpose.msra.mxu0 0.0
        %4169 = vmatpush.xpose.msra.mxu0 0.0
        %4170 = vmatpush.xpose.msra.mxu0 0.0
        %4171 = vmatpush.xpose.msra.mxu0 0.0
        %4172 = vmatpush.xpose.msra.mxu0 0.0
        %4173 = vmatpush.xpose.msra.mxu0 0.0
        %4174 = vmatpush.xpose.msra.mxu0 0.0
        %4175 = vmatpush.xpose.msra.mxu0 0.0
        %4176 = vmatpush.xpose.msra.mxu0 0.0
        %4177 = vmatpush.xpose.msra.mxu0 0.0
        %4178 = vmatpush.xpose.msra.mxu0 0.0
        %v4179 = vand.u32 %v4038, 4294901760
        %v4180 = vsub.f32 %v4038, %v4179
        %v4181 = vand.u32 %v4180, 4294901760
        %4182 = vmatpush.xpose.msra.mxu0 %v4181
        %v4183 = vand.u32 %v4035, 4294901760
        %v4184 = vsub.f32 %v4035, %v4183
        %v4185 = vand.u32 %v4184, 4294901760
        %4186 = vmatpush.xpose.msra.mxu0 %v4185
        %v4187 = vand.u32 %v4032, 4294901760
        %v4188 = vsub.f32 %v4032, %v4187
        %v4189 = vand.u32 %v4188, 4294901760
        %4190 = vmatpush.xpose.msra.mxu0 %v4189
        %v4191 = vand.u32 %v4029, 4294901760
        %v4192 = vsub.f32 %v4029, %v4191
        %v4193 = vand.u32 %v4192, 4294901760
        %4194 = vmatpush.xpose.msra.mxu0 %v4193
        %v4195 = vand.u32 %v4026, 4294901760
        %4196 = vmatmul.f32.gmra.mxu0 %v4195
        %v4197 = vpop.f32.mrf.mxu0
        %v4198 = vadd.f32 %v4165, %v4197
        %4199 = vdwg.mxu0
        %4200 = vmatpush.xpose.msra.mxu0 0.0
        %4201 = vmatpush.xpose.msra.mxu0 0.0
        %4202 = vmatpush.xpose.msra.mxu0 0.0
        %4203 = vmatpush.xpose.msra.mxu0 0.0
        %4204 = vmatpush.xpose.msra.mxu0 0.0
        %4205 = vmatpush.xpose.msra.mxu0 0.0
        %4206 = vmatpush.xpose.msra.mxu0 0.0
        %4207 = vmatpush.xpose.msra.mxu0 0.0
        %4208 = vmatpush.xpose.msra.mxu0 0.0
        %4209 = vmatpush.xpose.msra.mxu0 0.0
        %4210 = vmatpush.xpose.msra.mxu0 0.0
        %4211 = vmatpush.xpose.msra.mxu0 0.0
        %v4212 = vand.u32 %v4038, 4294901760
        %4213 = vmatpush.xpose.msra.mxu0 %v4212
        %v4214 = vand.u32 %v4035, 4294901760
        %4215 = vmatpush.xpose.msra.mxu0 %v4214
        %v4216 = vand.u32 %v4032, 4294901760
        %4217 = vmatpush.xpose.msra.mxu0 %v4216
        %v4218 = vand.u32 %v4029, 4294901760
        %4219 = vmatpush.xpose.msra.mxu0 %v4218
        %v4220 = vand.u32 %v4026, 4294901760
        %4221 = vmatmul.f32.gmra.mxu0 %v4220
        %v4222 = vpop.f32.mrf.mxu0
        %v4223 = vadd.f32 %v4198, %v4222
        %4224 = vdwg.mxu0
        %v4225 = vperm.slane %v4223, 0
        %v4226 = vsub.f32 %v3801, %v4225
        %v4227 = vsub.f32 %v3802, %v4225
        %v4228 = vsub.f32 %v3803, %v4225
        %v4229 = vsub.f32 %v3804, %v4225
        %v4230 = vsub.f32 %v3805, %v4225
        %v4231 = vsub.f32 %v3806, %v4225
        %v4232 = vsub.f32 %v3807, %v4225
        %v4233 = vsub.f32 %v3808, %v4225
        %v4234 = vmul.f32 %v4226, %v4226
        %v4235 = vmul.f32 %v4227, %v4227
        %v4236 = vmul.f32 %v4228, %v4228
        %v4237 = vmul.f32 %v4229, %v4229
        %v4238 = vmul.f32 %v4230, %v4230
        %v4239 = vmul.f32 %v4231, %v4231
        %v4240 = vmul.f32 %v4232, %v4232
        %v4241 = vmul.f32 %v4233, %v4233
        %v4242 = vsel %vm616, %v4234, 0.0
        %v4243 = vsel %vm616, %v4235, 0.0
        %v4244 = vadd.f32 %v4242, %v4243
        %v4245 = vsel %vm616, %v4236, 0.0
        %v4246 = vadd.f32 %v4244, %v4245
        %v4247 = vsel %vm616, %v4237, 0.0
        %v4248 = vadd.f32 %v4246, %v4247
        %v4249 = vsel %vm616, %v4238, 0.0
        %v4250 = vadd.f32 %v4248, %v4249
        %v4251 = vsel %vm616, %v4239, 0.0
        %v4252 = vadd.f32 %v4250, %v4251
        %v4253 = vsel %vm616, %v4240, 0.0
        %v4254 = vadd.f32 %v4252, %v4253
        %v4255 = vsel %vm616, %v4241, 0.0
        %v4256 = vadd.f32 %v4254, %v4255
        %v4257 = vrot.slane %v4256, 4
        %v4258 = vadd.f32 %v4256, %v4257
        %v4259 = vrot.slane %v4258, 2
        %v4260 = vadd.f32 %v4258, %v4259
        %v4261 = vrot.slane %v4260, 1
        %v4262 = vadd.f32 %v4260, %v4261
        %v4264 = vsel %vm616, %v4262, 0
        %4266 = vmatpush.msra.mxu0 0.0
        %4267 = vmatpush.msra.mxu0 0.0
        %4268 = vmatpush.msra.mxu0 0.0
        %4269 = vmatpush.msra.mxu0 0.0
        %4270 = vmatpush.msra.mxu0 0.0
        %4271 = vmatpush.msra.mxu0 0.0
        %4272 = vmatpush.msra.mxu0 0.0
        %4273 = vmatpush.msra.mxu0 0.0
        %4274 = vmatpush.msra.mxu0 0.0
        %4275 = vmatpush.msra.mxu0 0.0
        %4276 = vmatpush.msra.mxu0 0.0
        %4277 = vmatpush.msra.mxu0 0.0
        %v4278 = vand.u32 %v3814, 4294901760
        %4279 = vmatpush.msra.mxu0 %v4278
        %v4280 = vand.u32 %v3813, 4294901760
        %4281 = vmatpush.msra.mxu0 %v4280
        %v4282 = vand.u32 %v3812, 4294901760
        %4283 = vmatpush.msra.mxu0 %v4282
        %v4284 = vand.u32 %v3811, 4294901760
        %4285 = vmatpush.msra.mxu0 %v4284
        %v4286 = vand.u32 %v4264, 4294901760
        %v4287 = vsub.f32 %v4264, %v4286
        %v4288 = vand.u32 %v4287, 4294901760
        %v4289 = vsub.f32 %v4287, %v4288
        %v4290 = vand.u32 %v4289, 4294901760
        %4291 = vmatmul.f32.gmra.mxu0 %v4290
        %v4292 = vpop.f32.mrf.mxu0
        %v4293 = vadd.f32 0.0, %v4292
        %4294 = vdwg.mxu0
        %4295 = vmatpush.msra.mxu0 0.0
        %4296 = vmatpush.msra.mxu0 0.0
        %4297 = vmatpush.msra.mxu0 0.0
        %4298 = vmatpush.msra.mxu0 0.0
        %4299 = vmatpush.msra.mxu0 0.0
        %4300 = vmatpush.msra.mxu0 0.0
        %4301 = vmatpush.msra.mxu0 0.0
        %4302 = vmatpush.msra.mxu0 0.0
        %4303 = vmatpush.msra.mxu0 0.0
        %4304 = vmatpush.msra.mxu0 0.0
        %4305 = vmatpush.msra.mxu0 0.0
        %4306 = vmatpush.msra.mxu0 0.0
        %v4307 = vand.u32 %v3814, 4294901760
        %v4308 = vsub.f32 %v3814, %v4307
        %v4309 = vand.u32 %v4308, 4294901760
        %v4310 = vsub.f32 %v4308, %v4309
        %v4311 = vand.u32 %v4310, 4294901760
        %4312 = vmatpush.msra.mxu0 %v4311
        %v4313 = vand.u32 %v3813, 4294901760
        %v4314 = vsub.f32 %v3813, %v4313
        %v4315 = vand.u32 %v4314, 4294901760
        %v4316 = vsub.f32 %v4314, %v4315
        %v4317 = vand.u32 %v4316, 4294901760
        %4318 = vmatpush.msra.mxu0 %v4317
        %v4319 = vand.u32 %v3812, 4294901760
        %v4320 = vsub.f32 %v3812, %v4319
        %v4321 = vand.u32 %v4320, 4294901760
        %v4322 = vsub.f32 %v4320, %v4321
        %v4323 = vand.u32 %v4322, 4294901760
        %4324 = vmatpush.msra.mxu0 %v4323
        %v4325 = vand.u32 %v3811, 4294901760
        %v4326 = vsub.f32 %v3811, %v4325
        %v4327 = vand.u32 %v4326, 4294901760
        %v4328 = vsub.f32 %v4326, %v4327
        %v4329 = vand.u32 %v4328, 4294901760
        %4330 = vmatpush.msra.mxu0 %v4329
        %v4331 = vand.u32 %v4264, 4294901760
        %4332 = vmatmul.f32.gmra.mxu0 %v4331
        %v4333 = vpop.f32.mrf.mxu0
        %v4334 = vadd.f32 %v4293, %v4333
        %4335 = vdwg.mxu0
        %4336 = vmatpush.msra.mxu0 0.0
        %4337 = vmatpush.msra.mxu0 0.0
        %4338 = vmatpush.msra.mxu0 0.0
        %4339 = vmatpush.msra.mxu0 0.0
        %4340 = vmatpush.msra.mxu0 0.0
        %4341 = vmatpush.msra.mxu0 0.0
        %4342 = vmatpush.msra.mxu0 0.0
        %4343 = vmatpush.msra.mxu0 0.0
        %4344 = vmatpush.msra.mxu0 0.0
        %4345 = vmatpush.msra.mxu0 0.0
        %4346 = vmatpush.msra.mxu0 0.0
        %4347 = vmatpush.msra.mxu0 0.0
        %v4348 = vand.u32 %v3814, 4294901760
        %v4349 = vsub.f32 %v3814, %v4348
        %4350 = vmatpush.msra.mxu0 %v4349
        %v4351 = vand.u32 %v3813, 4294901760
        %v4352 = vsub.f32 %v3813, %v4351
        %4353 = vmatpush.msra.mxu0 %v4352
        %v4354 = vand.u32 %v3812, 4294901760
        %v4355 = vsub.f32 %v3812, %v4354
        %4356 = vmatpush.msra.mxu0 %v4355
        %v4357 = vand.u32 %v3811, 4294901760
        %v4358 = vsub.f32 %v3811, %v4357
        %4359 = vmatpush.msra.mxu0 %v4358
        %v4360 = vand.u32 %v4264, 4294901760
        %v4361 = vsub.f32 %v4264, %v4360
        %4362 = vmatmul.f32.gmra.mxu0 %v4361
        %v4363 = vpop.f32.mrf.mxu0
        %v4364 = vadd.f32 %v4334, %v4363
        %4365 = vdwg.mxu0
        %4366 = vmatpush.msra.mxu0 0.0
        %4367 = vmatpush.msra.mxu0 0.0
        %4368 = vmatpush.msra.mxu0 0.0
        %4369 = vmatpush.msra.mxu0 0.0
        %4370 = vmatpush.msra.mxu0 0.0
        %4371 = vmatpush.msra.mxu0 0.0
        %4372 = vmatpush.msra.mxu0 0.0
        %4373 = vmatpush.msra.mxu0 0.0
        %4374 = vmatpush.msra.mxu0 0.0
        %4375 = vmatpush.msra.mxu0 0.0
        %4376 = vmatpush.msra.mxu0 0.0
        %4377 = vmatpush.msra.mxu0 0.0
        %v4378 = vand.u32 %v3814, 4294901760
        %4379 = vmatpush.msra.mxu0 %v4378
        %v4380 = vand.u32 %v3813, 4294901760
        %4381 = vmatpush.msra.mxu0 %v4380
        %v4382 = vand.u32 %v3812, 4294901760
        %4383 = vmatpush.msra.mxu0 %v4382
        %v4384 = vand.u32 %v3811, 4294901760
        %4385 = vmatpush.msra.mxu0 %v4384
        %v4386 = vand.u32 %v4264, 4294901760
        %v4387 = vsub.f32 %v4264, %v4386
        %v4388 = vand.u32 %v4387, 4294901760
        %4389 = vmatmul.f32.gmra.mxu0 %v4388
        %v4390 = vpop.f32.mrf.mxu0
        %v4391 = vadd.f32 %v4364, %v4390
        %4392 = vdwg.mxu0
        %4393 = vmatpush.msra.mxu0 0.0
        %4394 = vmatpush.msra.mxu0 0.0
        %4395 = vmatpush.msra.mxu0 0.0
        %4396 = vmatpush.msra.mxu0 0.0
        %4397 = vmatpush.msra.mxu0 0.0
        %4398 = vmatpush.msra.mxu0 0.0
        %4399 = vmatpush.msra.mxu0 0.0
        %4400 = vmatpush.msra.mxu0 0.0
        %4401 = vmatpush.msra.mxu0 0.0
        %4402 = vmatpush.msra.mxu0 0.0
        %4403 = vmatpush.msra.mxu0 0.0
        %4404 = vmatpush.msra.mxu0 0.0
        %v4405 = vand.u32 %v3814, 4294901760
        %v4406 = vsub.f32 %v3814, %v4405
        %v4407 = vand.u32 %v4406, 4294901760
        %4408 = vmatpush.msra.mxu0 %v4407
        %v4409 = vand.u32 %v3813, 4294901760
        %v4410 = vsub.f32 %v3813, %v4409
        %v4411 = vand.u32 %v4410, 4294901760
        %4412 = vmatpush.msra.mxu0 %v4411
        %v4413 = vand.u32 %v3812, 4294901760
        %v4414 = vsub.f32 %v3812, %v4413
        %v4415 = vand.u32 %v4414, 4294901760
        %4416 = vmatpush.msra.mxu0 %v4415
        %v4417 = vand.u32 %v3811, 4294901760
        %v4418 = vsub.f32 %v3811, %v4417
        %v4419 = vand.u32 %v4418, 4294901760
        %4420 = vmatpush.msra.mxu0 %v4419
        %v4421 = vand.u32 %v4264, 4294901760
        %4422 = vmatmul.f32.gmra.mxu0 %v4421
        %v4423 = vpop.f32.mrf.mxu0
        %v4424 = vadd.f32 %v4391, %v4423
        %4425 = vdwg.mxu0
        %4426 = vmatpush.msra.mxu0 0.0
        %4427 = vmatpush.msra.mxu0 0.0
        %4428 = vmatpush.msra.mxu0 0.0
        %4429 = vmatpush.msra.mxu0 0.0
        %4430 = vmatpush.msra.mxu0 0.0
        %4431 = vmatpush.msra.mxu0 0.0
        %4432 = vmatpush.msra.mxu0 0.0
        %4433 = vmatpush.msra.mxu0 0.0
        %4434 = vmatpush.msra.mxu0 0.0
        %4435 = vmatpush.msra.mxu0 0.0
        %4436 = vmatpush.msra.mxu0 0.0
        %4437 = vmatpush.msra.mxu0 0.0
        %v4438 = vand.u32 %v3814, 4294901760
        %4439 = vmatpush.msra.mxu0 %v4438
        %v4440 = vand.u32 %v3813, 4294901760
        %4441 = vmatpush.msra.mxu0 %v4440
        %v4442 = vand.u32 %v3812, 4294901760
        %4443 = vmatpush.msra.mxu0 %v4442
        %v4444 = vand.u32 %v3811, 4294901760
        %4445 = vmatpush.msra.mxu0 %v4444
        %v4446 = vand.u32 %v4264, 4294901760
        %4447 = vmatmul.f32.gmra.mxu0 %v4446
        %v4448 = vpop.f32.mrf.mxu0
        %v4449 = vadd.f32 %v4424, %v4448
        %4450 = vdwg.mxu0
        %v4451 = vmul.f32 %v4449, %v832
        %v4453 = vsel %vm834, %v4451, 0
        %4455 = vmatpush.xpose.msra.mxu0 0.0
        %4456 = vmatpush.xpose.msra.mxu0 0.0
        %4457 = vmatpush.xpose.msra.mxu0 0.0
        %4458 = vmatpush.xpose.msra.mxu0 0.0
        %4459 = vmatpush.xpose.msra.mxu0 0.0
        %4460 = vmatpush.xpose.msra.mxu0 0.0
        %4461 = vmatpush.xpose.msra.mxu0 0.0
        %4462 = vmatpush.xpose.msra.mxu0 0.0
        %4463 = vmatpush.xpose.msra.mxu0 0.0
        %4464 = vmatpush.xpose.msra.mxu0 0.0
        %4465 = vmatpush.xpose.msra.mxu0 0.0
        %4466 = vmatpush.xpose.msra.mxu0 0.0
        %v4467 = vand.u32 %v4038, 4294901760
        %4468 = vmatpush.xpose.msra.mxu0 %v4467
        %v4469 = vand.u32 %v4035, 4294901760
        %4470 = vmatpush.xpose.msra.mxu0 %v4469
        %v4471 = vand.u32 %v4032, 4294901760
        %4472 = vmatpush.xpose.msra.mxu0 %v4471
        %v4473 = vand.u32 %v4029, 4294901760
        %4474 = vmatpush.xpose.msra.mxu0 %v4473
        %v4475 = vand.u32 %v4453, 4294901760
        %v4476 = vsub.f32 %v4453, %v4475
        %v4477 = vand.u32 %v4476, 4294901760
        %v4478 = vsub.f32 %v4476, %v4477
        %v4479 = vand.u32 %v4478, 4294901760
        %4480 = vmatmul.f32.gmra.mxu0 %v4479
        %v4481 = vpop.f32.mrf.mxu0
        %v4482 = vadd.f32 1e-05, %v4481
        %4483 = vdwg.mxu0
        %4484 = vmatpush.xpose.msra.mxu0 0.0
        %4485 = vmatpush.xpose.msra.mxu0 0.0
        %4486 = vmatpush.xpose.msra.mxu0 0.0
        %4487 = vmatpush.xpose.msra.mxu0 0.0
        %4488 = vmatpush.xpose.msra.mxu0 0.0
        %4489 = vmatpush.xpose.msra.mxu0 0.0
        %4490 = vmatpush.xpose.msra.mxu0 0.0
        %4491 = vmatpush.xpose.msra.mxu0 0.0
        %4492 = vmatpush.xpose.msra.mxu0 0.0
        %4493 = vmatpush.xpose.msra.mxu0 0.0
        %4494 = vmatpush.xpose.msra.mxu0 0.0
        %4495 = vmatpush.xpose.msra.mxu0 0.0
        %v4496 = vand.u32 %v4038, 4294901760
        %v4497 = vsub.f32 %v4038, %v4496
        %v4498 = vand.u32 %v4497, 4294901760
        %v4499 = vsub.f32 %v4497, %v4498
        %v4500 = vand.u32 %v4499, 4294901760
        %4501 = vmatpush.xpose.msra.mxu0 %v4500
        %v4502 = vand.u32 %v4035, 4294901760
        %v4503 = vsub.f32 %v4035, %v4502
        %v4504 = vand.u32 %v4503, 4294901760
        %v4505 = vsub.f32 %v4503, %v4504
        %v4506 = vand.u32 %v4505, 4294901760
        %4507 = vmatpush.xpose.msra.mxu0 %v4506
        %v4508 = vand.u32 %v4032, 4294901760
        %v4509 = vsub.f32 %v4032, %v4508
        %v4510 = vand.u32 %v4509, 4294901760
        %v4511 = vsub.f32 %v4509, %v4510
        %v4512 = vand.u32 %v4511, 4294901760
        %4513 = vmatpush.xpose.msra.mxu0 %v4512
        %v4514 = vand.u32 %v4029, 4294901760
        %v4515 = vsub.f32 %v4029, %v4514
        %v4516 = vand.u32 %v4515, 4294901760
        %v4517 = vsub.f32 %v4515, %v4516
        %v4518 = vand.u32 %v4517, 4294901760
        %4519 = vmatpush.xpose.msra.mxu0 %v4518
        %v4520 = vand.u32 %v4453, 4294901760
        %4521 = vmatmul.f32.gmra.mxu0 %v4520
        %v4522 = vpop.f32.mrf.mxu0
        %v4523 = vadd.f32 %v4482, %v4522
        %4524 = vdwg.mxu0
        %4525 = vmatpush.xpose.msra.mxu0 0.0
        %4526 = vmatpush.xpose.msra.mxu0 0.0
        %4527 = vmatpush.xpose.msra.mxu0 0.0
        %4528 = vmatpush.xpose.msra.mxu0 0.0
        %4529 = vmatpush.xpose.msra.mxu0 0.0
        %4530 = vmatpush.xpose.msra.mxu0 0.0
        %4531 = vmatpush.xpose.msra.mxu0 0.0
        %4532 = vmatpush.xpose.msra.mxu0 0.0
        %4533 = vmatpush.xpose.msra.mxu0 0.0
        %4534 = vmatpush.xpose.msra.mxu0 0.0
        %4535 = vmatpush.xpose.msra.mxu0 0.0
        %4536 = vmatpush.xpose.msra.mxu0 0.0
        %v4537 = vand.u32 %v4038, 4294901760
        %v4538 = vsub.f32 %v4038, %v4537
        %4539 = vmatpush.xpose.msra.mxu0 %v4538
        %v4540 = vand.u32 %v4035, 4294901760
        %v4541 = vsub.f32 %v4035, %v4540
        %4542 = vmatpush.xpose.msra.mxu0 %v4541
        %v4543 = vand.u32 %v4032, 4294901760
        %v4544 = vsub.f32 %v4032, %v4543
        %4545 = vmatpush.xpose.msra.mxu0 %v4544
        %v4546 = vand.u32 %v4029, 4294901760
        %v4547 = vsub.f32 %v4029, %v4546
        %4548 = vmatpush.xpose.msra.mxu0 %v4547
        %v4549 = vand.u32 %v4453, 4294901760
        %v4550 = vsub.f32 %v4453, %v4549
        %4551 = vmatmul.f32.gmra.mxu0 %v4550
        %v4552 = vpop.f32.mrf.mxu0
        %v4553 = vadd.f32 %v4523, %v4552
        %4554 = vdwg.mxu0
        %4555 = vmatpush.xpose.msra.mxu0 0.0
        %4556 = vmatpush.xpose.msra.mxu0 0.0
        %4557 = vmatpush.xpose.msra.mxu0 0.0
        %4558 = vmatpush.xpose.msra.mxu0 0.0
        %4559 = vmatpush.xpose.msra.mxu0 0.0
        %4560 = vmatpush.xpose.msra.mxu0 0.0
        %4561 = vmatpush.xpose.msra.mxu0 0.0
        %4562 = vmatpush.xpose.msra.mxu0 0.0
        %4563 = vmatpush.xpose.msra.mxu0 0.0
        %4564 = vmatpush.xpose.msra.mxu0 0.0
        %4565 = vmatpush.xpose.msra.mxu0 0.0
        %4566 = vmatpush.xpose.msra.mxu0 0.0
        %v4567 = vand.u32 %v4038, 4294901760
        %4568 = vmatpush.xpose.msra.mxu0 %v4567
        %v4569 = vand.u32 %v4035, 4294901760
        %4570 = vmatpush.xpose.msra.mxu0 %v4569
        %v4571 = vand.u32 %v4032, 4294901760
        %4572 = vmatpush.xpose.msra.mxu0 %v4571
        %v4573 = vand.u32 %v4029, 4294901760
        %4574 = vmatpush.xpose.msra.mxu0 %v4573
        %v4575 = vand.u32 %v4453, 4294901760
        %v4576 = vsub.f32 %v4453, %v4575
        %v4577 = vand.u32 %v4576, 4294901760
        %4578 = vmatmul.f32.gmra.mxu0 %v4577
        %v4579 = vpop.f32.mrf.mxu0
        %v4580 = vadd.f32 %v4553, %v4579
        %4581 = vdwg.mxu0
        %4582 = vmatpush.xpose.msra.mxu0 0.0
        %4583 = vmatpush.xpose.msra.mxu0 0.0
        %4584 = vmatpush.xpose.msra.mxu0 0.0
        %4585 = vmatpush.xpose.msra.mxu0 0.0
        %4586 = vmatpush.xpose.msra.mxu0 0.0
        %4587 = vmatpush.xpose.msra.mxu0 0.0
        %4588 = vmatpush.xpose.msra.mxu0 0.0
        %4589 = vmatpush.xpose.msra.mxu0 0.0
        %4590 = vmatpush.xpose.msra.mxu0 0.0
        %4591 = vmatpush.xpose.msra.mxu0 0.0
        %4592 = vmatpush.xpose.msra.mxu0 0.0
        %4593 = vmatpush.xpose.msra.mxu0 0.0
        %v4594 = vand.u32 %v4038, 4294901760
        %v4595 = vsub.f32 %v4038, %v4594
        %v4596 = vand.u32 %v4595, 4294901760
        %4597 = vmatpush.xpose.msra.mxu0 %v4596
        %v4598 = vand.u32 %v4035, 4294901760
        %v4599 = vsub.f32 %v4035, %v4598
        %v4600 = vand.u32 %v4599, 4294901760
        %4601 = vmatpush.xpose.msra.mxu0 %v4600
        %v4602 = vand.u32 %v4032, 4294901760
        %v4603 = vsub.f32 %v4032, %v4602
        %v4604 = vand.u32 %v4603, 4294901760
        %4605 = vmatpush.xpose.msra.mxu0 %v4604
        %v4606 = vand.u32 %v4029, 4294901760
        %v4607 = vsub.f32 %v4029, %v4606
        %v4608 = vand.u32 %v4607, 4294901760
        %4609 = vmatpush.xpose.msra.mxu0 %v4608
        %v4610 = vand.u32 %v4453, 4294901760
        %4611 = vmatmul.f32.gmra.mxu0 %v4610
        %v4612 = vpop.f32.mrf.mxu0
        %v4613 = vadd.f32 %v4580, %v4612
        %4614 = vdwg.mxu0
        %4615 = vmatpush.xpose.msra.mxu0 0.0
        %4616 = vmatpush.xpose.msra.mxu0 0.0
        %4617 = vmatpush.xpose.msra.mxu0 0.0
        %4618 = vmatpush.xpose.msra.mxu0 0.0
        %4619 = vmatpush.xpose.msra.mxu0 0.0
        %4620 = vmatpush.xpose.msra.mxu0 0.0
        %4621 = vmatpush.xpose.msra.mxu0 0.0
        %4622 = vmatpush.xpose.msra.mxu0 0.0
        %4623 = vmatpush.xpose.msra.mxu0 0.0
        %4624 = vmatpush.xpose.msra.mxu0 0.0
        %4625 = vmatpush.xpose.msra.mxu0 0.0
        %4626 = vmatpush.xpose.msra.mxu0 0.0
        %v4627 = vand.u32 %v4038, 4294901760
        %4628 = vmatpush.xpose.msra.mxu0 %v4627
        %v4629 = vand.u32 %v4035, 4294901760
        %4630 = vmatpush.xpose.msra.mxu0 %v4629
        %v4631 = vand.u32 %v4032, 4294901760
        %4632 = vmatpush.xpose.msra.mxu0 %v4631
        %v4633 = vand.u32 %v4029, 4294901760
        %4634 = vmatpush.xpose.msra.mxu0 %v4633
        %v4635 = vand.u32 %v4453, 4294901760
        %4636 = vmatmul.f32.gmra.mxu0 %v4635
        %v4637 = vpop.f32.mrf.mxu0
        %v4638 = vadd.f32 %v4613, %v4637
        %4639 = vdwg.mxu0
        %v4640 = vrsqrt.pop %v4638
        %v4641 = vmul.f32 %v4640, %v4638
        %v4642 = vmul.f32 %v4641, %v4640
        %v4643 = vmul.f32 0.5, %v4642
        %v4644 = vsub.f32 1.5, %v4643
        %v4645 = vmul.f32 %v4640, %v4644
        %vm4646 = vweird.f32 %v4638
        %vm4647 = vweird.f32 %v4640
        %vm4648 = vmor %vm4646, %vm4647
        %v4649 = vsel %vm4648, %v4640, %v4645
        %v4650 = vperm.slane %v4649, 0
        %v4651 = vmul.f32 %v4226, %v4650
        %v4652 = vmul.f32 %v4227, %v4650
        %v4653 = vmul.f32 %v4228, %v4650
        %v4654 = vmul.f32 %v4229, %v4650
        %v4655 = vmul.f32 %v4230, %v4650
        %v4656 = vmul.f32 %v4231, %v4650
        %v4657 = vmul.f32 %v4232, %v4650
        %v4658 = vmul.f32 %v4233, %v4650
        %v4660 = vperm.slane %v3809, 0
        %v4662 = vmul.f32 %v4651, %v4660
        %v4663 = vmul.f32 %v4652, %v4660
        %v4664 = vmul.f32 %v4653, %v4660
        %v4665 = vmul.f32 %v4654, %v4660
        %v4666 = vmul.f32 %v4655, %v4660
        %v4667 = vmul.f32 %v4656, %v4660
        %v4668 = vmul.f32 %v4657, %v4660
        %v4669 = vmul.f32 %v4658, %v4660
        %v4671 = vperm.slane %v3810, 0
        %v4673 = vadd.f32 %v4662, %v4671
        %v4674 = vadd.f32 %v4663, %v4671
        %v4675 = vadd.f32 %v4664, %v4671
        %v4676 = vadd.f32 %v4665, %v4671
        %v4677 = vadd.f32 %v4666, %v4671
        %v4678 = vadd.f32 %v4667, %v4671
        %v4679 = vadd.f32 %v4668, %v4671
        %v4680 = vadd.f32 %v4669, %v4671
        %v4681 = vmul.f32 %v4673, 0.5
        %v4682 = vmul.f32 %v4674, 0.5
        %v4683 = vmul.f32 %v4675, 0.5
        %v4684 = vmul.f32 %v4676, 0.5
        %v4685 = vmul.f32 %v4677, 0.5
        %v4686 = vmul.f32 %v4678, 0.5
        %v4687 = vmul.f32 %v4679, 0.5
        %v4688 = vmul.f32 %v4680, 0.5
        %v4689 = vmul.f32 %v4673, 0.044715
        %v4690 = vmul.f32 %v4674, 0.044715
        %v4691 = vmul.f32 %v4675, 0.044715
        %v4692 = vmul.f32 %v4676, 0.044715
        %v4693 = vmul.f32 %v4677, 0.044715
        %v4694 = vmul.f32 %v4678, 0.044715
        %v4695 = vmul.f32 %v4679, 0.044715
        %v4696 = vmul.f32 %v4680, 0.044715
        %v4697 = vmul.f32 %v4689, %v4673
        %v4698 = vmul.f32 %v4690, %v4674
        %v4699 = vmul.f32 %v4691, %v4675
        %v4700 = vmul.f32 %v4692, %v4676
        %v4701 = vmul.f32 %v4693, %v4677
        %v4702 = vmul.f32 %v4694, %v4678
        %v4703 = vmul.f32 %v4695, %v4679
        %v4704 = vmul.f32 %v4696, %v4680
        %v4705 = vmul.f32 %v4697, %v4673
        %v4706 = vmul.f32 %v4698, %v4674
        %v4707 = vmul.f32 %v4699, %v4675
        %v4708 = vmul.f32 %v4700, %v4676
        %v4709 = vmul.f32 %v4701, %v4677
        %v4710 = vmul.f32 %v4702, %v4678
        %v4711 = vmul.f32 %v4703, %v4679
        %v4712 = vmul.f32 %v4704, %v4680
        %v4713 = vadd.f32 %v4673, %v4705
        %v4714 = vadd.f32 %v4674, %v4706
        %v4715 = vadd.f32 %v4675, %v4707
        %v4716 = vadd.f32 %v4676, %v4708
        %v4717 = vadd.f32 %v4677, %v4709
        %v4718 = vadd.f32 %v4678, %v4710
        %v4719 = vadd.f32 %v4679, %v4711
        %v4720 = vadd.f32 %v4680, %v4712
        %v4721 = vmul.f32 %v4713, 0.7978846
        %v4722 = vmul.f32 %v4714, 0.7978846
        %v4723 = vmul.f32 %v4715, 0.7978846
        %v4724 = vmul.f32 %v4716, 0.7978846
        %v4725 = vmul.f32 %v4717, 0.7978846
        %v4726 = vmul.f32 %v4718, 0.7978846
        %v4727 = vmul.f32 %v4719, 0.7978846
        %v4728 = vmul.f32 %v4720, 0.7978846
        %v4729 = vtanh.pop %v4721
        %v4730 = vtanh.pop %v4722
        %v4731 = vtanh.pop %v4723
        %v4732 = vtanh.pop %v4724
        %v4733 = vtanh.pop %v4725
        %v4734 = vtanh.pop %v4726
        %v4735 = vtanh.pop %v4727
        %v4736 = vtanh.pop %v4728
        %v4737 = vadd.f32 %v4729, 1.0
        %v4738 = vadd.f32 %v4730, 1.0
        %v4739 = vadd.f32 %v4731, 1.0
        %v4740 = vadd.f32 %v4732, 1.0
        %v4741 = vadd.f32 %v4733, 1.0
        %v4742 = vadd.f32 %v4734, 1.0
        %v4743 = vadd.f32 %v4735, 1.0
        %v4744 = vadd.f32 %v4736, 1.0
        %v4745 = vmul.f32 %v4681, %v4737
        %v4746 = vmul.f32 %v4682, %v4738
        %v4747 = vmul.f32 %v4683, %v4739
        %v4748 = vmul.f32 %v4684, %v4740
        %v4749 = vmul.f32 %v4685, %v4741
        %v4750 = vmul.f32 %v4686, %v4742
        %v4751 = vmul.f32 %v4687, %v4743
        %v4752 = vmul.f32 %v4688, %v4744
        %v4753 = vrot.slane %v4745, 7
        %v4754 = vrot.slane %v4746, 7
        %v4755 = vrot.slane %v4747, 7
        %v4756 = vrot.slane %v4748, 7
        %v4757 = vrot.slane %v4749, 7
        %v4758 = vrot.slane %v4750, 7
        %v4759 = vrot.slane %v4751, 7
        %v4760 = vrot.slane %v4752, 7
        %v4761 = vsel %vm1571, %v4759, %v4760
        %v4762 = vsel %vm1571, %v4758, %v4759
        %v4763 = vsel %vm1571, %v4757, %v4758
        %v4764 = vsel %vm1571, %v4756, %v4757
        %v4765 = vsel %vm1571, %v4755, %v4756
        %v4766 = vsel %vm1571, %v4754, %v4755
        %v4767 = vsel %vm1571, %v4753, %v4754
        %v4768 = vsel %vm1571, %v4760, %v4753
        %v4769 = vmul.f32 %v4761, %v1612
        %v4770 = vmul.f32 %v4768, %v1613
        %v4771 = vmul.f32 %v4767, %v1614
        %v4772 = vmul.f32 %v4766, %v1615
        %v4773 = vmul.f32 %v4765, %v1616
        %v4774 = vmul.f32 %v4764, %v1617
        %v4775 = vmul.f32 %v4763, %v1618
        %v4776 = vmul.f32 %v4762, %v1619
        %v4777 = vpack.c.bf16 %v4770, %v4769
        %v4778 = vpack.c.bf16 %v4772, %v4771
        %v4779 = vpack.c.bf16 %v4774, %v4773
        %v4780 = vpack.c.bf16 %v4776, %v4775
        %v4781 = vld [vmem:[%s14] sm:$0xf]
        %v4782 = vld [vmem:[%s14 + $0x4] sm:$0xf]
        %v4783 = vld [vmem:[%s14 + $0x8] sm:$0xf]
        %v4784 = vld [vmem:[%s14 + $0xc] sm:$0xf]
        %v4785 = vmul.f32 %v4752, %v1644
        %v4786 = vmul.f32 %v4745, %v1645
        %v4787 = vmul.f32 %v4746, %v1646
        %v4788 = vmul.f32 %v4747, %v1647
        %v4789 = vmul.f32 %v4748, %v1648
        %v4790 = vmul.f32 %v4749, %v1649
        %v4791 = vmul.f32 %v4750, %v1650
        %v4792 = vmul.f32 %v4751, %v1651
        %v4793 = vpack.c.bf16 %v4786, %v4785
        %v4794 = vpack.c.bf16 %v4788, %v4787
        %v4795 = vpack.c.bf16 %v4790, %v4789
        %v4796 = vpack.c.bf16 %v4792, %v4791
        %s4797 = scalar_lea.vmem %s14, 16
        %v4798 = vld [vmem:[%s4797] sm:$0xf]
        %v4799 = vld [vmem:[%s4797 + $0x4] sm:$0xf]
        %v4800 = vld [vmem:[%s4797 + $0x8] sm:$0xf]
        %v4801 = vld [vmem:[%s4797 + $0xc] sm:$0xf]
        %v4806 = vunpack.c.l.b16 %v4798
        %v4807 = vunpack.c.l.b16 %v4799
        %v4808 = vunpack.c.l.b16 %v4800
        %v4809 = vunpack.c.l.b16 %v4801
        %v4810 = vpack.c.b16 %v4807, %v4806
        %v4811 = vpack.c.b16 %v4809, %v4808
        %v4815 = vsel %vm616, %v4793, 0
        %v4818 = vsel %vm616, %v4794, 0
        %v4821 = vsel %vm616, %v4795, 0
        %v4824 = vsel %vm616, %v4796, 0
        %4826 = vmatpush.bf16.msra.mxu0 0
        %4827 = vmatpush.bf16.msra.mxu0 0
        %4828 = vmatpush.bf16.msra.mxu0 0
        %4829 = vmatpush.bf16.msra.mxu0 0
        %4830 = vmatpush.bf16.msra.mxu0 0
        %4831 = vmatpush.bf16.msra.mxu0 0
        %4832 = vmatpush.bf16.msra.mxu0 %v4811
        %4833 = vmatpush.bf16.msra.mxu0 %v4810
        %4834 = vmatmul.bf16.gmra.mxu0 %v4815
        %v4835 = vpop.f32.mrf.mxu0
        %v4836 = vadd.f32 0.0, %v4835
        %v4837 = vpop.f32.mrf.mxu0
        %v4838 = vadd.f32 0.0, %v4837
        %4839 = vmatmul.bf16.gmra.mxu0 %v4818
        %v4840 = vpop.f32.mrf.mxu0
        %v4841 = vadd.f32 0.0, %v4840
        %v4842 = vpop.f32.mrf.mxu0
        %v4843 = vadd.f32 0.0, %v4842
        %4844 = vmatmul.bf16.gmra.mxu0 %v4821
        %v4845 = vpop.f32.mrf.mxu0
        %v4846 = vadd.f32 0.0, %v4845
        %v4847 = vpop.f32.mrf.mxu0
        %v4848 = vadd.f32 0.0, %v4847
        %4849 = vmatmul.bf16.gmra.mxu0 %v4824
        %v4850 = vpop.f32.mrf.mxu0
        %v4851 = vadd.f32 0.0, %v4850
        %v4852 = vpop.f32.mrf.mxu0
        %v4853 = vadd.f32 0.0, %v4852
        %4854 = vdwg.mxu0
        %v4859 = vunpack.c.l.b16 %v4781
        %v4860 = vunpack.c.l.b16 %v4782
        %v4861 = vunpack.c.l.b16 %v4783
        %v4862 = vunpack.c.l.b16 %v4784
        %v4863 = vpack.c.b16 %v4860, %v4859
        %v4864 = vpack.c.b16 %v4862, %v4861
        %v4868 = vsel %vm616, %v4777, 0
        %v4871 = vsel %vm616, %v4778, 0
        %v4874 = vsel %vm616, %v4779, 0
        %v4877 = vsel %vm616, %v4780, 0
        %4879 = vmatpush.bf16.msra.mxu0 0
        %4880 = vmatpush.bf16.msra.mxu0 0
        %4881 = vmatpush.bf16.msra.mxu0 0
        %4882 = vmatpush.bf16.msra.mxu0 0
        %4883 = vmatpush.bf16.msra.mxu0 0
        %4884 = vmatpush.bf16.msra.mxu0 0
        %4885 = vmatpush.bf16.msra.mxu0 %v4864
        %4886 = vmatpush.bf16.msra.mxu0 %v4863
        %4887 = vmatmul.bf16.gmra.mxu0 %v4868
        %v4888 = vpop.f32.mrf.mxu0
        %v4889 = vadd.f32 %v4836, %v4888
        %v4890 = vpop.f32.mrf.mxu0
        %v4891 = vadd.f32 %v4838, %v4890
        %4892 = vmatmul.bf16.gmra.mxu0 %v4871
        %v4893 = vpop.f32.mrf.mxu0
        %v4894 = vadd.f32 %v4841, %v4893
        %v4895 = vpop.f32.mrf.mxu0
        %v4896 = vadd.f32 %v4843, %v4895
        %4897 = vmatmul.bf16.gmra.mxu0 %v4874
        %v4898 = vpop.f32.mrf.mxu0
        %v4899 = vadd.f32 %v4846, %v4898
        %v4900 = vpop.f32.mrf.mxu0
        %v4901 = vadd.f32 %v4848, %v4900
        %4902 = vmatmul.bf16.gmra.mxu0 %v4877
        %v4903 = vpop.f32.mrf.mxu0
        %v4904 = vadd.f32 %v4851, %v4903
        %v4905 = vpop.f32.mrf.mxu0
        %v4906 = vadd.f32 %v4853, %v4905
        %4907 = vdwg.mxu0
        %v4908 = vrot.slane %v4745, 1
        %v4909 = vrot.slane %v4746, 1
        %v4910 = vrot.slane %v4747, 1
        %v4911 = vrot.slane %v4748, 1
        %v4912 = vrot.slane %v4749, 1
        %v4913 = vrot.slane %v4750, 1
        %v4914 = vrot.slane %v4751, 1
        %v4915 = vrot.slane %v4752, 1
        %v4916 = vsel %vm1783, %v4914, %v4915
        %v4917 = vsel %vm1783, %v4913, %v4914
        %v4918 = vsel %vm1783, %v4912, %v4913
        %v4919 = vsel %vm1783, %v4911, %v4912
        %v4920 = vsel %vm1783, %v4910, %v4911
        %v4921 = vsel %vm1783, %v4909, %v4910
        %v4922 = vsel %vm1783, %v4908, %v4909
        %v4923 = vsel %vm1783, %v4915, %v4908
        %v4924 = vmul.f32 %v4923, %v1816
        %v4925 = vmul.f32 %v4922, %v1817
        %v4926 = vmul.f32 %v4921, %v1818
        %v4927 = vmul.f32 %v4920, %v1819
        %v4928 = vmul.f32 %v4919, %v1820
        %v4929 = vmul.f32 %v4918, %v1821
        %v4930 = vmul.f32 %v4917, %v1822
        %v4931 = vmul.f32 %v4916, %v1823
        %v4932 = vpack.c.bf16 %v4925, %v4924
        %v4933 = vpack.c.bf16 %v4927, %v4926
        %v4934 = vpack.c.bf16 %v4929, %v4928
        %v4935 = vpack.c.bf16 %v4931, %v4930
        %s4936 = scalar_lea.vmem %s14, 32
        %v4937 = vld [vmem:[%s4936] sm:$0xf]
        %v4938 = vld [vmem:[%s4936 + $0x4] sm:$0xf]
        %v4939 = vld [vmem:[%s4936 + $0x8] sm:$0xf]
        %v4940 = vld [vmem:[%s4936 + $0xc] sm:$0xf]
        %v4945 = vunpack.c.l.b16 %v4937
        %v4946 = vunpack.c.l.b16 %v4938
        %v4947 = vunpack.c.l.b16 %v4939
        %v4948 = vunpack.c.l.b16 %v4940
        %v4949 = vpack.c.b16 %v4946, %v4945
        %v4950 = vpack.c.b16 %v4948, %v4947
        %v4954 = vsel %vm616, %v4932, 0
        %v4957 = vsel %vm616, %v4933, 0
        %v4960 = vsel %vm616, %v4934, 0
        %v4963 = vsel %vm616, %v4935, 0
        %4965 = vmatpush.bf16.msra.mxu0 0
        %4966 = vmatpush.bf16.msra.mxu0 0
        %4967 = vmatpush.bf16.msra.mxu0 0
        %4968 = vmatpush.bf16.msra.mxu0 0
        %4969 = vmatpush.bf16.msra.mxu0 0
        %4970 = vmatpush.bf16.msra.mxu0 0
        %4971 = vmatpush.bf16.msra.mxu0 %v4950
        %4972 = vmatpush.bf16.msra.mxu0 %v4949
        %4973 = vmatmul.bf16.gmra.mxu0 %v4954
        %v4974 = vpop.f32.mrf.mxu0
        %v4975 = vadd.f32 0.0, %v4974
        %v4976 = vpop.f32.mrf.mxu0
        %v4977 = vadd.f32 0.0, %v4976
        %4978 = vmatmul.bf16.gmra.mxu0 %v4957
        %v4979 = vpop.f32.mrf.mxu0
        %v4980 = vadd.f32 0.0, %v4979
        %v4981 = vpop.f32.mrf.mxu0
        %v4982 = vadd.f32 0.0, %v4981
        %4983 = vmatmul.bf16.gmra.mxu0 %v4960
        %v4984 = vpop.f32.mrf.mxu0
        %v4985 = vadd.f32 0.0, %v4984
        %v4986 = vpop.f32.mrf.mxu0
        %v4987 = vadd.f32 0.0, %v4986
        %4988 = vmatmul.bf16.gmra.mxu0 %v4963
        %v4989 = vpop.f32.mrf.mxu0
        %v4990 = vadd.f32 0.0, %v4989
        %v4991 = vpop.f32.mrf.mxu0
        %v4992 = vadd.f32 0.0, %v4991
        %4993 = vdwg.mxu0
        %v4994 = vadd.f32 %v4889, %v4975
        %v4995 = vadd.f32 %v4891, %v4977
        %v4996 = vadd.f32 %v4894, %v4980
        %v4997 = vadd.f32 %v4896, %v4982
        %v4998 = vadd.f32 %v4899, %v4985
        %v4999 = vadd.f32 %v4901, %v4987
        %v5000 = vadd.f32 %v4904, %v4990
        %v5001 = vadd.f32 %v4906, %v4992
        %v5002 = vmul.f32 %v4768, %v1910
        %v5003 = vmul.f32 %v4767, %v1911
        %v5004 = vmul.f32 %v4766, %v1912
        %v5005 = vmul.f32 %v4765, %v1913
        %v5006 = vmul.f32 %v4764, %v1914
        %v5007 = vmul.f32 %v4763, %v1915
        %v5008 = vmul.f32 %v4762, %v1916
        %v5009 = vmul.f32 %v4761, %v1917
        %v5010 = vpack.c.bf16 %v5003, %v5002
        %v5011 = vpack.c.bf16 %v5005, %v5004
        %v5012 = vpack.c.bf16 %v5007, %v5006
        %v5013 = vpack.c.bf16 %v5009, %v5008
        %s5014 = scalar_lea.vmem %s14, 48
        %v5015 = vld [vmem:[%s5014] sm:$0xf]
        %v5016 = vld [vmem:[%s5014 + $0x4] sm:$0xf]
        %v5017 = vld [vmem:[%s5014 + $0x8] sm:$0xf]
        %v5018 = vld [vmem:[%s5014 + $0xc] sm:$0xf]
        %v5023 = vunpack.c.l.b16 %v5015
        %v5024 = vunpack.c.l.b16 %v5016
        %v5025 = vunpack.c.l.b16 %v5017
        %v5026 = vunpack.c.l.b16 %v5018
        %v5027 = vpack.c.b16 %v5024, %v5023
        %v5028 = vpack.c.b16 %v5026, %v5025
        %v5032 = vsel %vm616, %v5010, 0
        %v5035 = vsel %vm616, %v5011, 0
        %v5038 = vsel %vm616, %v5012, 0
        %v5041 = vsel %vm616, %v5013, 0
        %5043 = vmatpush.bf16.msra.mxu0 0
        %5044 = vmatpush.bf16.msra.mxu0 0
        %5045 = vmatpush.bf16.msra.mxu0 0
        %5046 = vmatpush.bf16.msra.mxu0 0
        %5047 = vmatpush.bf16.msra.mxu0 0
        %5048 = vmatpush.bf16.msra.mxu0 0
        %5049 = vmatpush.bf16.msra.mxu0 %v5028
        %5050 = vmatpush.bf16.msra.mxu0 %v5027
        %5051 = vmatmul.bf16.gmra.mxu0 %v5032
        %v5052 = vpop.f32.mrf.mxu0
        %v5053 = vadd.f32 0.0, %v5052
        %v5054 = vpop.f32.mrf.mxu0
        %v5055 = vadd.f32 0.0, %v5054
        %5056 = vmatmul.bf16.gmra.mxu0 %v5035
        %v5057 = vpop.f32.mrf.mxu0
        %v5058 = vadd.f32 0.0, %v5057
        %v5059 = vpop.f32.mrf.mxu0
        %v5060 = vadd.f32 0.0, %v5059
        %5061 = vmatmul.bf16.gmra.mxu0 %v5038
        %v5062 = vpop.f32.mrf.mxu0
        %v5063 = vadd.f32 0.0, %v5062
        %v5064 = vpop.f32.mrf.mxu0
        %v5065 = vadd.f32 0.0, %v5064
        %5066 = vmatmul.bf16.gmra.mxu0 %v5041
        %v5067 = vpop.f32.mrf.mxu0
        %v5068 = vadd.f32 0.0, %v5067
        %v5069 = vpop.f32.mrf.mxu0
        %v5070 = vadd.f32 0.0, %v5069
        %5071 = vdwg.mxu0
        %v5072 = vadd.f32 %v4994, %v5053
        %v5073 = vadd.f32 %v4995, %v5055
        %v5074 = vadd.f32 %v4996, %v5058
        %v5075 = vadd.f32 %v4997, %v5060
        %v5076 = vadd.f32 %v4998, %v5063
        %v5077 = vadd.f32 %v4999, %v5065
        %v5078 = vadd.f32 %v5000, %v5068
        %v5079 = vadd.f32 %v5001, %v5070
        %v5080 = vpack.c.bf16 %v4746, %v4745
        %v5081 = vpack.c.bf16 %v4748, %v4747
        %v5082 = vpack.c.bf16 %v4750, %v4749
        %v5083 = vpack.c.bf16 %v4752, %v4751
        %s5084 = scalar_lea.vmem %s14, 64
        %v5085 = vld [vmem:[%s5084] sm:$0xf]
        %v5086 = vld [vmem:[%s5084 + $0x4] sm:$0xf]
        %v5087 = vld [vmem:[%s5084 + $0x8] sm:$0xf]
        %v5088 = vld [vmem:[%s5084 + $0xc] sm:$0xf]
        %v5093 = vunpack.c.l.b16 %v5085
        %v5094 = vunpack.c.l.b16 %v5086
        %v5095 = vunpack.c.l.b16 %v5087
        %v5096 = vunpack.c.l.b16 %v5088
        %v5097 = vpack.c.b16 %v5094, %v5093
        %v5098 = vpack.c.b16 %v5096, %v5095
        %v5102 = vsel %vm616, %v5080, 0
        %v5105 = vsel %vm616, %v5081, 0
        %v5108 = vsel %vm616, %v5082, 0
        %v5111 = vsel %vm616, %v5083, 0
        %5113 = vmatpush.bf16.msra.mxu0 0
        %5114 = vmatpush.bf16.msra.mxu0 0
        %5115 = vmatpush.bf16.msra.mxu0 0
        %5116 = vmatpush.bf16.msra.mxu0 0
        %5117 = vmatpush.bf16.msra.mxu0 0
        %5118 = vmatpush.bf16.msra.mxu0 0
        %5119 = vmatpush.bf16.msra.mxu0 %v5098
        %5120 = vmatpush.bf16.msra.mxu0 %v5097
        %5121 = vmatmul.bf16.gmra.mxu0 %v5102
        %v5122 = vpop.f32.mrf.mxu0
        %v5123 = vadd.f32 0.0, %v5122
        %v5124 = vpop.f32.mrf.mxu0
        %v5125 = vadd.f32 0.0, %v5124
        %5126 = vmatmul.bf16.gmra.mxu0 %v5105
        %v5127 = vpop.f32.mrf.mxu0
        %v5128 = vadd.f32 0.0, %v5127
        %v5129 = vpop.f32.mrf.mxu0
        %v5130 = vadd.f32 0.0, %v5129
        %5131 = vmatmul.bf16.gmra.mxu0 %v5108
        %v5132 = vpop.f32.mrf.mxu0
        %v5133 = vadd.f32 0.0, %v5132
        %v5134 = vpop.f32.mrf.mxu0
        %v5135 = vadd.f32 0.0, %v5134
        %5136 = vmatmul.bf16.gmra.mxu0 %v5111
        %v5137 = vpop.f32.mrf.mxu0
        %v5138 = vadd.f32 0.0, %v5137
        %v5139 = vpop.f32.mrf.mxu0
        %v5140 = vadd.f32 0.0, %v5139
        %5141 = vdwg.mxu0
        %v5142 = vadd.f32 %v5072, %v5123
        %v5143 = vadd.f32 %v5073, %v5125
        %v5144 = vadd.f32 %v5074, %v5128
        %v5145 = vadd.f32 %v5075, %v5130
        %v5146 = vadd.f32 %v5076, %v5133
        %v5147 = vadd.f32 %v5077, %v5135
        %v5148 = vadd.f32 %v5078, %v5138
        %v5149 = vadd.f32 %v5079, %v5140
        %v5150 = vmul.f32 %v4922, %v2074
        %v5151 = vmul.f32 %v4921, %v2075
        %v5152 = vmul.f32 %v4920, %v2076
        %v5153 = vmul.f32 %v4919, %v2077
        %v5154 = vmul.f32 %v4918, %v2078
        %v5155 = vmul.f32 %v4917, %v2079
        %v5156 = vmul.f32 %v4916, %v2080
        %v5157 = vmul.f32 %v4923, %v2081
        %v5158 = vpack.c.bf16 %v5151, %v5150
        %v5159 = vpack.c.bf16 %v5153, %v5152
        %v5160 = vpack.c.bf16 %v5155, %v5154
        %v5161 = vpack.c.bf16 %v5157, %v5156
        %s5162 = scalar_lea.vmem %s14, 80
        %v5163 = vld [vmem:[%s5162] sm:$0xf]
        %v5164 = vld [vmem:[%s5162 + $0x4] sm:$0xf]
        %v5165 = vld [vmem:[%s5162 + $0x8] sm:$0xf]
        %v5166 = vld [vmem:[%s5162 + $0xc] sm:$0xf]
        %v5171 = vunpack.c.l.b16 %v5163
        %v5172 = vunpack.c.l.b16 %v5164
        %v5173 = vunpack.c.l.b16 %v5165
        %v5174 = vunpack.c.l.b16 %v5166
        %v5175 = vpack.c.b16 %v5172, %v5171
        %v5176 = vpack.c.b16 %v5174, %v5173
        %v5180 = vsel %vm616, %v5158, 0
        %v5183 = vsel %vm616, %v5159, 0
        %v5186 = vsel %vm616, %v5160, 0
        %v5189 = vsel %vm616, %v5161, 0
        %5191 = vmatpush.bf16.msra.mxu0 0
        %5192 = vmatpush.bf16.msra.mxu0 0
        %5193 = vmatpush.bf16.msra.mxu0 0
        %5194 = vmatpush.bf16.msra.mxu0 0
        %5195 = vmatpush.bf16.msra.mxu0 0
        %5196 = vmatpush.bf16.msra.mxu0 0
        %5197 = vmatpush.bf16.msra.mxu0 %v5176
        %5198 = vmatpush.bf16.msra.mxu0 %v5175
        %5199 = vmatmul.bf16.gmra.mxu0 %v5180
        %v5200 = vpop.f32.mrf.mxu0
        %v5201 = vadd.f32 0.0, %v5200
        %v5202 = vpop.f32.mrf.mxu0
        %v5203 = vadd.f32 0.0, %v5202
        %5204 = vmatmul.bf16.gmra.mxu0 %v5183
        %v5205 = vpop.f32.mrf.mxu0
        %v5206 = vadd.f32 0.0, %v5205
        %v5207 = vpop.f32.mrf.mxu0
        %v5208 = vadd.f32 0.0, %v5207
        %5209 = vmatmul.bf16.gmra.mxu0 %v5186
        %v5210 = vpop.f32.mrf.mxu0
        %v5211 = vadd.f32 0.0, %v5210
        %v5212 = vpop.f32.mrf.mxu0
        %v5213 = vadd.f32 0.0, %v5212
        %5214 = vmatmul.bf16.gmra.mxu0 %v5189
        %v5215 = vpop.f32.mrf.mxu0
        %v5216 = vadd.f32 0.0, %v5215
        %v5217 = vpop.f32.mrf.mxu0
        %v5218 = vadd.f32 0.0, %v5217
        %5219 = vdwg.mxu0
        %v5220 = vadd.f32 %v5142, %v5201
        %v5221 = vadd.f32 %v5143, %v5203
        %v5222 = vadd.f32 %v5144, %v5206
        %v5223 = vadd.f32 %v5145, %v5208
        %v5224 = vadd.f32 %v5146, %v5211
        %v5225 = vadd.f32 %v5147, %v5213
        %v5226 = vadd.f32 %v5148, %v5216
        %v5227 = vadd.f32 %v5149, %v5218
        %v5228 = vmul.f32 %v4767, %v2184
        %v5229 = vmul.f32 %v4766, %v2185
        %v5230 = vmul.f32 %v4765, %v2186
        %v5231 = vmul.f32 %v4764, %v2187
        %v5232 = vmul.f32 %v4763, %v2188
        %v5233 = vmul.f32 %v4762, %v2189
        %v5234 = vmul.f32 %v4761, %v2190
        %v5235 = vmul.f32 %v4768, %v2191
        %v5236 = vpack.c.bf16 %v5229, %v5228
        %v5237 = vpack.c.bf16 %v5231, %v5230
        %v5238 = vpack.c.bf16 %v5233, %v5232
        %v5239 = vpack.c.bf16 %v5235, %v5234
        %s5240 = scalar_lea.vmem %s14, 96
        %v5241 = vld [vmem:[%s5240] sm:$0xf]
        %v5242 = vld [vmem:[%s5240 + $0x4] sm:$0xf]
        %v5243 = vld [vmem:[%s5240 + $0x8] sm:$0xf]
        %v5244 = vld [vmem:[%s5240 + $0xc] sm:$0xf]
        %v5249 = vunpack.c.l.b16 %v5241
        %v5250 = vunpack.c.l.b16 %v5242
        %v5251 = vunpack.c.l.b16 %v5243
        %v5252 = vunpack.c.l.b16 %v5244
        %v5253 = vpack.c.b16 %v5250, %v5249
        %v5254 = vpack.c.b16 %v5252, %v5251
        %v5258 = vsel %vm616, %v5236, 0
        %v5261 = vsel %vm616, %v5237, 0
        %v5264 = vsel %vm616, %v5238, 0
        %v5267 = vsel %vm616, %v5239, 0
        %5269 = vmatpush.bf16.msra.mxu0 0
        %5270 = vmatpush.bf16.msra.mxu0 0
        %5271 = vmatpush.bf16.msra.mxu0 0
        %5272 = vmatpush.bf16.msra.mxu0 0
        %5273 = vmatpush.bf16.msra.mxu0 0
        %5274 = vmatpush.bf16.msra.mxu0 0
        %5275 = vmatpush.bf16.msra.mxu0 %v5254
        %5276 = vmatpush.bf16.msra.mxu0 %v5253
        %5277 = vmatmul.bf16.gmra.mxu0 %v5258
        %v5278 = vpop.f32.mrf.mxu0
        %v5279 = vadd.f32 0.0, %v5278
        %v5280 = vpop.f32.mrf.mxu0
        %v5281 = vadd.f32 0.0, %v5280
        %5282 = vmatmul.bf16.gmra.mxu0 %v5261
        %v5283 = vpop.f32.mrf.mxu0
        %v5284 = vadd.f32 0.0, %v5283
        %v5285 = vpop.f32.mrf.mxu0
        %v5286 = vadd.f32 0.0, %v5285
        %5287 = vmatmul.bf16.gmra.mxu0 %v5264
        %v5288 = vpop.f32.mrf.mxu0
        %v5289 = vadd.f32 0.0, %v5288
        %v5290 = vpop.f32.mrf.mxu0
        %v5291 = vadd.f32 0.0, %v5290
        %5292 = vmatmul.bf16.gmra.mxu0 %v5267
        %v5293 = vpop.f32.mrf.mxu0
        %v5294 = vadd.f32 0.0, %v5293
        %v5295 = vpop.f32.mrf.mxu0
        %v5296 = vadd.f32 0.0, %v5295
        %5297 = vdwg.mxu0
        %v5298 = vadd.f32 %v5220, %v5279
        %v5299 = vadd.f32 %v5221, %v5281
        %v5300 = vadd.f32 %v5222, %v5284
        %v5301 = vadd.f32 %v5223, %v5286
        %v5302 = vadd.f32 %v5224, %v5289
        %v5303 = vadd.f32 %v5225, %v5291
        %v5304 = vadd.f32 %v5226, %v5294
        %v5305 = vadd.f32 %v5227, %v5296
        %v5306 = vmul.f32 %v4746, %v2278
        %v5307 = vmul.f32 %v4747, %v2279
        %v5308 = vmul.f32 %v4748, %v2280
        %v5309 = vmul.f32 %v4749, %v2281
        %v5310 = vmul.f32 %v4750, %v2282
        %v5311 = vmul.f32 %v4751, %v2283
        %v5312 = vmul.f32 %v4752, %v2284
        %v5313 = vmul.f32 %v4745, %v2285
        %v5314 = vpack.c.bf16 %v5307, %v5306
        %v5315 = vpack.c.bf16 %v5309, %v5308
        %v5316 = vpack.c.bf16 %v5311, %v5310
        %v5317 = vpack.c.bf16 %v5313, %v5312
        %s5318 = scalar_lea.vmem %s14, 112
        %v5319 = vld [vmem:[%s5318] sm:$0xf]
        %v5320 = vld [vmem:[%s5318 + $0x4] sm:$0xf]
        %v5321 = vld [vmem:[%s5318 + $0x8] sm:$0xf]
        %v5322 = vld [vmem:[%s5318 + $0xc] sm:$0xf]
        %v5327 = vunpack.c.l.b16 %v5319
        %v5328 = vunpack.c.l.b16 %v5320
        %v5329 = vunpack.c.l.b16 %v5321
        %v5330 = vunpack.c.l.b16 %v5322
        %v5331 = vpack.c.b16 %v5328, %v5327
        %v5332 = vpack.c.b16 %v5330, %v5329
        %v5336 = vsel %vm616, %v5314, 0
        %v5339 = vsel %vm616, %v5315, 0
        %v5342 = vsel %vm616, %v5316, 0
        %v5345 = vsel %vm616, %v5317, 0
        %5347 = vmatpush.bf16.msra.mxu0 0
        %5348 = vmatpush.bf16.msra.mxu0 0
        %5349 = vmatpush.bf16.msra.mxu0 0
        %5350 = vmatpush.bf16.msra.mxu0 0
        %5351 = vmatpush.bf16.msra.mxu0 0
        %5352 = vmatpush.bf16.msra.mxu0 0
        %5353 = vmatpush.bf16.msra.mxu0 %v5332
        %5354 = vmatpush.bf16.msra.mxu0 %v5331
        %5355 = vmatmul.bf16.gmra.mxu0 %v5336
        %v5356 = vpop.f32.mrf.mxu0
        %v5357 = vadd.f32 0.0, %v5356
        %v5358 = vpop.f32.mrf.mxu0
        %v5359 = vadd.f32 0.0, %v5358
        %5360 = vmatmul.bf16.gmra.mxu0 %v5339
        %v5361 = vpop.f32.mrf.mxu0
        %v5362 = vadd.f32 0.0, %v5361
        %v5363 = vpop.f32.mrf.mxu0
        %v5364 = vadd.f32 0.0, %v5363
        %5365 = vmatmul.bf16.gmra.mxu0 %v5342
        %v5366 = vpop.f32.mrf.mxu0
        %v5367 = vadd.f32 0.0, %v5366
        %v5368 = vpop.f32.mrf.mxu0
        %v5369 = vadd.f32 0.0, %v5368
        %5370 = vmatmul.bf16.gmra.mxu0 %v5345
        %v5371 = vpop.f32.mrf.mxu0
        %v5372 = vadd.f32 0.0, %v5371
        %v5373 = vpop.f32.mrf.mxu0
        %v5374 = vadd.f32 0.0, %v5373
        %5375 = vdwg.mxu0
        %v5376 = vadd.f32 %v5298, %v5357
        %v5377 = vadd.f32 %v5299, %v5359
        %v5378 = vadd.f32 %v5300, %v5362
        %v5379 = vadd.f32 %v5301, %v5364
        %v5380 = vadd.f32 %v5302, %v5367
        %v5381 = vadd.f32 %v5303, %v5369
        %v5382 = vadd.f32 %v5304, %v5372
        %v5383 = vadd.f32 %v5305, %v5374
        %v5384 = vmul.f32 %v4921, %v2380
        %v5385 = vmul.f32 %v4920, %v2381
        %v5386 = vmul.f32 %v4919, %v2382
        %v5387 = vmul.f32 %v4918, %v2383
        %v5388 = vmul.f32 %v4917, %v2384
        %v5389 = vmul.f32 %v4916, %v2385
        %v5390 = vmul.f32 %v4923, %v2386
        %v5391 = vmul.f32 %v4922, %v2387
        %v5392 = vpack.c.bf16 %v5385, %v5384
        %v5393 = vpack.c.bf16 %v5387, %v5386
        %v5394 = vpack.c.bf16 %v5389, %v5388
        %v5395 = vpack.c.bf16 %v5391, %v5390
        %s5396 = scalar_lea.vmem %s14, 128
        %v5397 = vld [vmem:[%s5396] sm:$0xf]
        %v5398 = vld [vmem:[%s5396 + $0x4] sm:$0xf]
        %v5399 = vld [vmem:[%s5396 + $0x8] sm:$0xf]
        %v5400 = vld [vmem:[%s5396 + $0xc] sm:$0xf]
        %v5405 = vunpack.c.l.b16 %v5397
        %v5406 = vunpack.c.l.b16 %v5398
        %v5407 = vunpack.c.l.b16 %v5399
        %v5408 = vunpack.c.l.b16 %v5400
        %v5409 = vpack.c.b16 %v5406, %v5405
        %v5410 = vpack.c.b16 %v5408, %v5407
        %v5414 = vsel %vm616, %v5392, 0
        %v5417 = vsel %vm616, %v5393, 0
        %v5420 = vsel %vm616, %v5394, 0
        %v5423 = vsel %vm616, %v5395, 0
        %5425 = vmatpush.bf16.msra.mxu0 0
        %5426 = vmatpush.bf16.msra.mxu0 0
        %5427 = vmatpush.bf16.msra.mxu0 0
        %5428 = vmatpush.bf16.msra.mxu0 0
        %5429 = vmatpush.bf16.msra.mxu0 0
        %5430 = vmatpush.bf16.msra.mxu0 0
        %5431 = vmatpush.bf16.msra.mxu0 %v5410
        %5432 = vmatpush.bf16.msra.mxu0 %v5409
        %5433 = vmatmul.bf16.gmra.mxu0 %v5414
        %v5434 = vpop.f32.mrf.mxu0
        %v5435 = vadd.f32 0.0, %v5434
        %v5436 = vpop.f32.mrf.mxu0
        %v5437 = vadd.f32 0.0, %v5436
        %5438 = vmatmul.bf16.gmra.mxu0 %v5417
        %v5439 = vpop.f32.mrf.mxu0
        %v5440 = vadd.f32 0.0, %v5439
        %v5441 = vpop.f32.mrf.mxu0
        %v5442 = vadd.f32 0.0, %v5441
        %5443 = vmatmul.bf16.gmra.mxu0 %v5420
        %v5444 = vpop.f32.mrf.mxu0
        %v5445 = vadd.f32 0.0, %v5444
        %v5446 = vpop.f32.mrf.mxu0
        %v5447 = vadd.f32 0.0, %v5446
        %5448 = vmatmul.bf16.gmra.mxu0 %v5423
        %v5449 = vpop.f32.mrf.mxu0
        %v5450 = vadd.f32 0.0, %v5449
        %v5451 = vpop.f32.mrf.mxu0
        %v5452 = vadd.f32 0.0, %v5451
        %5453 = vdwg.mxu0
        %v5454 = vadd.f32 %v5376, %v5435
        %v5455 = vadd.f32 %v5377, %v5437
        %v5456 = vadd.f32 %v5378, %v5440
        %v5457 = vadd.f32 %v5379, %v5442
        %v5458 = vadd.f32 %v5380, %v5445
        %v5459 = vadd.f32 %v5381, %v5447
        %v5460 = vadd.f32 %v5382, %v5450
        %v5461 = vadd.f32 %v5383, %v5452
        %v5462 = vld [vmem:[%s15] sm:$0x1]
        %v5464 = vperm.slane %v5462, 0
        %v5466 = vadd.f32 %v5454, %v5464
        %v5467 = vadd.f32 %v5455, %v5464
        %v5468 = vadd.f32 %v5456, %v5464
        %v5469 = vadd.f32 %v5457, %v5464
        %v5470 = vadd.f32 %v5458, %v5464
        %v5471 = vadd.f32 %v5459, %v5464
        %v5472 = vadd.f32 %v5460, %v5464
        %v5473 = vadd.f32 %v5461, %v5464
        %v5474 = vadd.f32 %v5466, %v538
        %v5475 = vadd.f32 %v5467, %v539
        %v5476 = vadd.f32 %v5468, %v540
        %v5477 = vadd.f32 %v5469, %v541
        %v5478 = vadd.f32 %v5470, %v542
        %v5479 = vadd.f32 %v5471, %v543
        %v5480 = vadd.f32 %v5472, %v544
        %v5481 = vadd.f32 %v5473, %v545
        %5482 = vst.msk [vmem:[%s527] sm:$0xff] %vm616, %v5474
        %5483 = vst.msk [vmem:[%s527 + $0x8] sm:$0xff] %vm616, %v5475
        %5484 = vst.msk [vmem:[%s527 + $0x10] sm:$0xff] %vm616, %v5476
        %5485 = vst.msk [vmem:[%s527 + $0x18] sm:$0xff] %vm616, %v5477
        %5486 = vst.msk [vmem:[%s527 + $0x20] sm:$0xff] %vm616, %v5478
        %5487 = vst.msk [vmem:[%s527 + $0x28] sm:$0xff] %vm616, %v5479
        %5488 = vst.msk [vmem:[%s527 + $0x30] sm:$0xff] %vm616, %v5480
        %5489 = vst.msk [vmem:[%s527 + $0x38] sm:$0xff] %vm616, %v5481
        %s5490 = sand.u32 %s384, 1
        %s5491 = scalar_lea.sflag [#allocation3], %s5490
        %s5492 = sand.u32 %s384, 1
        %s5493 = smul.addr %s5492, 64
        %s5494 = scalar_lea.vmem [#allocation2], %s5493
        // Predicated region
        $region85: #{attention_guidance_block.1} parent=83 // pred_check
          %p5495 = pneg %p394
        $region86: #{attention_guidance_block.1} parent=83 // pred_check_branch
          %5497 = sbr.rel (%p5495) target = $region88
        $region87: #{attention_guidance_block.1} parent=83 // pred_region
          %5499 = vsyncadd %s5491, 0
          %s5500 = smul.addr %s30, 8
          %s5501 = smul.addr %s5500, 8
          %s5502 = scalar_lea.hbm %s16, %s5501
          %s5503 = sshll.u32 %s5494, 4
          %s5504 = int_to_ptr.vmem [resolvable:$true] %s5503
          %s5505 = sshll.u32 %s5502, 4
          %s5506 = int_to_ptr.hbm [resolvable:$true] %s5505
          %5511 = dma.vmem_to_hbm [thread:$0]  %s5504, 1024, %s5506, %s5491, 128, 128, 8
        $region88: #{attention_guidance_block.1} parent=83 // pred_fallthru
          _
      $region84: #{attention_guidance_block.1} parent=5 // pred_fallthru
        _
      %p5512 = scmp.le.s32.totalorder 2, %s25
      // Predicated region
      $region89: #{attention_guidance_block.1} parent=5 // pred_check
        %p5513 = pneg %p5512
      $region90: #{attention_guidance_block.1} parent=5 // pred_check_branch
        %5515 = sbr.rel (%p5513) target = $region92
      $region91: #{attention_guidance_block.1} parent=5 // pred_region
        %s5516 = ssub.s32 %s25, 2
        // Predicated region
        $region93: #{attention_guidance_block.1} parent=91 // pred_check
          %p5517 = pneg %p400
        $region94: #{attention_guidance_block.1} parent=91 // pred_check_branch
          %5519 = sbr.rel (%p5517) target = $region96
        $region95: #{attention_guidance_block.1} parent=91 // pred_region
          %s5520 = sand.u32 %s385, 1
          %s5521 = scalar_lea.sflag [#allocation3], %s5520
          %s5522 = sand.u32 %s385, 1
          %s5523 = smul.addr %s5522, 64
          %s5524 = scalar_lea.vmem [#allocation2], %s5523
          %5526 = dma.done %s5521, 1024
        $region96: #{attention_guidance_block.1} parent=91 // pred_fallthru
          _
      $region92: #{attention_guidance_block.1} parent=5 // pred_fallthru
        _
    $region6: #{attention_guidance_block.1} parent=1 // loop_footer
      %s29 = sadd.s32 1, %s25
    $region7: #{attention_guidance_block.1} parent=1 // loop_footer_branch
      %24 = sbr.rel target = $region3
    $region8: #{attention_guidance_block.1} parent=1 // loop_exit
      _
    %5527 = vsyncpa [#allocation3], 1
    %s5528 = scalar_lea.sflag [#allocation3], 1
    %5529 = vsyncpa %s5528, 1

</llo_original>
